<compile_context>
chip_gen: v7x
topology: tpu7x:2x2x1
jax: 0.10.0
libtpu: 0.0.40
codegen_flags: <defaults>
</compile_context>

<pallas_src>
import functools

import jax
import jax.numpy as jnp
from jax.experimental import pallas as pl
from jax.experimental.pallas import tpu as pltpu

_LANE = 128  # switch to per-tap MXU accumulation once Cin >= one lane


def _fused_dcgan_d_kernel(*refs, cfgs):
    """Runs every conv (+LeakyReLU) layer back-to-back on one batch tile.

    refs layout:
      refs[0]              : x_ref  (bb*Ho0*Wo0, KH0*KW0*nc) layer-0 im2col patches
      refs[1 : 1+2L]       : w0, b0, w1, b1, ...  packed weights / biases
      refs[1+2L]           : o_ref  (1, 1, bb) output tile
      refs[2+2L :]         : padded VMEM scratch for the inputs of layers 1..L-1
    """
    n_layers = len(cfgs)
    x_ref = refs[0]
    w_refs = refs[1:1 + 2 * n_layers:2]
    b_refs = refs[2:2 + 2 * n_layers:2]
    o_ref = refs[1 + 2 * n_layers]
    bufs = refs[2 + 2 * n_layers:]

    bb = o_ref.shape[-1]

    for li, c in enumerate(cfgs):
        KH, KW, s = c['KH'], c['KW'], c['stride']
        Ho, Wo, Cin, Cout = c['Ho'], c['Wo'], c['Cin'], c['Cout']
        M = bb * Ho * Wo

        # ---- gather this layer's input ------------------------------------
        if li == 0:
            # Layer 0 was im2col'ed in the wrapper: one dense (M, K0) load.
            taps = None
            patches = x_ref[...]
        else:
            in_buf = bufs[li - 1]
            taps = []
            for kh in range(KH):
                for kw in range(KW):
                    if s == 1:
                        tap = in_buf[:, pl.ds(kh, Ho), pl.ds(kw, Wo), :]
                    else:
                        tap = in_buf[:, pl.ds(kh, Ho, s), pl.ds(kw, Wo, s), :]
                    taps.append(tap.reshape(M, Cin))
            patches = None

        w = w_refs[li][...]

        # ---- contraction ----------------------------------------------------
        if c['vpu']:
            # Cout == 1 (final conv): VPU multiply + lane reduction; always
            # accumulate in f32 regardless of compute_dtype.
            if patches is None:
                patches = taps[0] if len(taps) == 1 else jnp.concatenate(taps, -1)
            prod = patches.astype(jnp.float32) * w.astype(jnp.float32)
            y = jnp.sum(prod, axis=-1, keepdims=True)
        elif patches is not None or Cin < _LANE:
            # Lane-concat im2col: ONE MXU matmul with K = KH*KW*Cin.
            if patches is None:
                patches = taps[0] if len(taps) == 1 else jnp.concatenate(taps, -1)
            y = jnp.dot(patches, w, preferred_element_type=jnp.float32)
        else:
            # Cin >= 128: per-tap MXU accumulation; never materializes the
            # (M, KH*KW*Cin) patch matrix in VMEM.
            y = jnp.zeros((M, Cout), jnp.float32)
            for t, tap in enumerate(taps):
                wt = w[t * Cin:(t + 1) * Cin, :]
                y = y + jnp.dot(tap, wt, preferred_element_type=jnp.float32)

        y = y + b_refs[li][...]                  # (1, Cout) f32 bias, broadcasts
        if c['lrelu']:
            y = jnp.maximum(y, 0.2 * y)          # LeakyReLU(0.2), f32 on the VPU

        # ---- writeback --------------------------------------------------------
        if li + 1 < n_layers:
            p = cfgs[li + 1]['pad']
            out_buf = bufs[li]                   # input buffer of layer li+1
            yv = y.reshape(bb, Ho, Wo, Cout).astype(out_buf.dtype)
            if p > 0:
                # Zero only the halo strips (interior is fully overwritten).
                Hp, Wp = Ho + 2 * p, Wo + 2 * p
                zrow = jnp.zeros((bb, p, Wp, Cout), out_buf.dtype)
                zcol = jnp.zeros((bb, Ho, p, Cout), out_buf.dtype)
                out_buf[:, pl.ds(0, p), :, :] = zrow
                out_buf[:, pl.ds(Hp - p, p), :, :] = zrow
                out_buf[:, pl.ds(p, Ho), pl.ds(0, p), :] = zcol
                out_buf[:, pl.ds(p, Ho), pl.ds(Wp - p, p), :] = zcol
                out_buf[:, pl.ds(p, Ho), pl.ds(p, Wo), :] = yv
            else:
                out_buf[...] = yv
        else:
            # Final layer: Ho == Wo == Cout == 1 -> (bb,) logits, lane-dense store.
            o_ref[...] = y.reshape(o_ref.shape).astype(o_ref.dtype)


def _build_layer_plan(layers, H, W, Cin0, compute_dtype):
    """Static per-layer configs + im2col-packed, pre-cast parameters."""
    cfgs, packed = [], []
    Hin, Win, Cin = H, W, Cin0
    for L in layers:
        KH, KW, wCin, Cout = L['w'].shape
        assert wCin == Cin, (wCin, Cin)
        s, p = L['stride'], L['pad']
        Ho = (Hin + 2 * p - KH) // s + 1
        Wo = (Win + 2 * p - KW) // s + 1
        K = KH * KW * Cin
        vpu = (Cout == 1)
        cfgs.append(dict(KH=KH, KW=KW, stride=s, pad=p, Hin=Hin, Win=Win,
                         Cin=Cin, Cout=Cout, Ho=Ho, Wo=Wo,
                         lrelu=L['lrelu'], vpu=vpu))
        if vpu:
            # Row vector for the VPU path; kept f32 for f32 accumulation.
            packed.append(L['w'].reshape(1, K).astype(jnp.float32))
        else:
            # im2col weight, pre-cast once to compute_dtype.
            packed.append(L['w'].reshape(K, Cout).astype(compute_dtype))
        packed.append(L['b'].reshape(1, Cout).astype(jnp.float32))
        Hin, Win, Cin = Ho, Wo, Cout
    return tuple(cfgs), packed, (Hin, Win, Cin)


def dcgan_d_nobn_forward(x_nchw, layers, *, batch_block=8,
                         compute_dtype=jnp.float32):
    """x_nchw: (B, nc, isize, isize) -> (B, 1), matching DCGAN_D_nobn.forward."""
    x = jnp.transpose(x_nchw, (0, 2, 3, 1)).astype(jnp.float32)  # NCHW -> NHWC
    B, H, W, C = x.shape
    bb = min(batch_block, B)
    while B % bb:           # largest divisor of B not exceeding batch_block
        bb -= 1
    nb = B // bb            # keep nb >= 2 when possible so v7x uses both TCs

    cfgs, packed, (Hf, Wf, Cf) = _build_layer_plan(layers, H, W, C, compute_dtype)
    assert (Hf, Wf, Cf) == (1, 1, 1), 'final conv must reduce to 1x1x1'

    # Wrapper-side im2col for layer 0 (Cin = nc = 3/4 is lane-sparse): pack the
    # KH*KW taps into the channel axis once in XLA so the kernel's first matmul
    # sees a dense K and needs no in-kernel staging / strided tap loads.
    c0 = cfgs[0]
    p0, s0 = c0['pad'], c0['stride']
    xp = jnp.pad(x, ((0, 0), (p0, p0), (p0, p0), (0, 0))) if p0 else x
    taps0 = []
    for kh in range(c0['KH']):
        for kw in range(c0['KW']):
            taps0.append(xp[:, kh:kh + s0 * c0['Ho']:s0,
                            kw:kw + s0 * c0['Wo']:s0, :])
    K0 = c0['KH'] * c0['KW'] * C
    x0 = jnp.concatenate(taps0, axis=-1)                     # (B, Ho0, Wo0, K0)
    x0 = x0.reshape(B * c0['Ho'] * c0['Wo'], K0).astype(compute_dtype)

    M0 = bb * c0['Ho'] * c0['Wo']
    in_specs = [pl.BlockSpec((M0, K0), lambda i: (i, 0))]
    for arr in packed:                       # weights/biases: whole-array blocks
        in_specs.append(pl.BlockSpec(arr.shape, lambda i: (0, 0)))
    out_spec = pl.BlockSpec((1, 1, bb), lambda i: (i, 0, 0))

    # Padded-activation VMEM scratch for the inputs of layers 1..L-1
    # (layer li reads bufs[li-1]); held in compute_dtype.
    # TODO(synk): for very large isize/ndf configs, ping-pong two buffers and
    # tile the patch matmul over Ho blocks instead of one buffer per layer.
    scratch = [pltpu.VMEM((bb, c['Hin'] + 2 * c['pad'],
                           c['Win'] + 2 * c['pad'], c['Cin']), compute_dtype)
               for c in cfgs[1:]]

    kernel = functools.partial(_fused_dcgan_d_kernel, cfgs=cfgs)

    out = pl.pallas_call(
        kernel,
        out_shape=jax.ShapeDtypeStruct((nb, 1, bb), jnp.float32),
        grid=(nb,),
        in_specs=in_specs,
        out_specs=out_spec,
        scratch_shapes=scratch,
        compiler_params=pltpu.CompilerParams(
            dimension_semantics=("parallel",),
            vmem_limit_bytes=48 * 1024 * 1024),   # fits v7x 64 MiB with headroom
    )(x0, *packed)
    return out.reshape(B, 1)                      # matches output.view(-1, 1)


def init_dcgan_d_nobn_params(key, isize, nz, nc, ndf, n_extra_layers=0):
    """Deterministic synthetic parameters mirroring DCGAN_D_nobn.__init__."""
    assert isize % 16 == 0, 'isize has to be a multiple of 16'
    keys = iter(jax.random.split(key, 64))

    def make_conv(cin, cout, k):
        w = 0.02 * jax.random.normal(next(keys), (k, k, cin, cout), jnp.float32)
        b = 0.01 * jax.random.normal(next(keys), (cout,), jnp.float32)
        return w, b

    layers = []
    # initial-conv: Conv2d(nc, ndf, 4, 2, 1) + LeakyReLU(0.2)
    w, b = make_conv(nc, ndf, 4)
    layers.append(dict(w=w, b=b, stride=2, pad=1, lrelu=True))
    csize, cndf = isize // 2, ndf
    # extra layers: Conv2d(cndf, cndf, 3, 1, 1) + LeakyReLU(0.2)
    for _ in range(n_extra_layers):
        w, b = make_conv(cndf, cndf, 3)
        layers.append(dict(w=w, b=b, stride=1, pad=1, lrelu=True))
    # pyramid: Conv2d(cndf, 2*cndf, 4, 2, 1) + LeakyReLU(0.2) until csize == 4
    while csize > 4:
        w, b = make_conv(cndf, cndf * 2, 4)
        layers.append(dict(w=w, b=b, stride=2, pad=1, lrelu=True))
        cndf *= 2
        csize //= 2
    # final: Conv2d(cndf, 1, 4, 1, 0), no activation
    w, b = make_conv(cndf, 1, 4)
    layers.append(dict(w=w, b=b, stride=1, pad=0, lrelu=False))
    return layers


def reference_forward(x_nchw, layers):
    """Plain-JAX reference (lax conv) for correctness checking."""
    x = x_nchw
    for L in layers:
        w_oihw = jnp.transpose(L['w'], (3, 2, 0, 1))  # HWIO -> OIHW
        x = jax.lax.conv_general_dilated(
            x, w_oihw, window_strides=(L['stride'], L['stride']),
            padding=[(L['pad'], L['pad'])] * 2,
            dimension_numbers=('NCHW', 'OIHW', 'NCHW'))
        x = x + L['b'].reshape(1, -1, 1, 1)
        if L['lrelu']:
            x = jnp.where(x > 0, x, 0.2 * x)
    return x.reshape(-1, 1)


if __name__ == "__main__":
    # Small config consistent with the module: isize multiple of 16; batch=8
    # so batch_block=4 gives a 2-step grid (both v7x TCs busy) and M0=256.
    # TODO(synk): ngpu>1 data_parallel branch of the module is a host-side
    # multi-device split, not translated (single-device kernel).
    batch, isize, nz, nc, ndf = 8, 16, 32, 4, 8
    n_extra_layers = 1

    key = jax.random.PRNGKey(0)
    k_x, k_p = jax.random.split(key)
    x = jax.random.normal(k_x, (batch, nc, isize, isize), jnp.float32)

    layers = init_dcgan_d_nobn_params(k_p, isize, nz, nc, ndf, n_extra_layers)

    out = dcgan_d_nobn_forward(x, layers, batch_block=4)
    out = jax.block_until_ready(out)
    assert out.shape == (batch, 1), out.shape

    ref = jax.block_until_ready(reference_forward(x, layers))
    assert jnp.allclose(out, ref, rtol=1e-4, atol=1e-4), (out, ref)

    print("KERNEL_OK")
</pallas_src>

<mosaic_0001>
module attributes {stable_mosaic.version = 11 : i64} {
  func.func @_fused_dcgan_d_kernel(%arg0: i32, %arg1: memref<256x64xf32, #tpu.memory_space<vmem>>, %arg2: memref<64x8xf32, #tpu.memory_space<vmem>>, %arg3: memref<1x8xf32, #tpu.memory_space<vmem>>, %arg4: memref<72x8xf32, #tpu.memory_space<vmem>>, %arg5: memref<1x8xf32, #tpu.memory_space<vmem>>, %arg6: memref<128x16xf32, #tpu.memory_space<vmem>>, %arg7: memref<1x16xf32, #tpu.memory_space<vmem>>, %arg8: memref<1x256xf32, #tpu.memory_space<vmem>>, %arg9: memref<1x1xf32, #tpu.memory_space<vmem>>, %arg10: memref<1x1x4xf32, #tpu.memory_space<vmem>>, %arg11: memref<4x10x10x8xf32, #tpu.memory_space<vmem>>, %arg12: memref<4x10x10x8xf32, #tpu.memory_space<vmem>>, %arg13: memref<4x4x4x16xf32, #tpu.memory_space<vmem>>) attributes {dimension_semantics = [#tpu.dimension_semantics<parallel>], iteration_bounds = array<i64: 2>, scalar_prefetch = 0 : i64, scratch_operands = 3 : i64, tpu.core_type = #tpu.core_type<tc>, window_params = [{transform_indices = @transform_0, window_bounds = array<i64: 256, 64>}, {pipeline_mode = #tpu.pipeline_mode<synchronous>, transform_indices = @transform_1, window_bounds = array<i64: 64, 8>}, {pipeline_mode = #tpu.pipeline_mode<synchronous>, transform_indices = @transform_2, window_bounds = array<i64: 1, 8>}, {pipeline_mode = #tpu.pipeline_mode<synchronous>, transform_indices = @transform_3, window_bounds = array<i64: 72, 8>}, {pipeline_mode = #tpu.pipeline_mode<synchronous>, transform_indices = @transform_4, window_bounds = array<i64: 1, 8>}, {pipeline_mode = #tpu.pipeline_mode<synchronous>, transform_indices = @transform_5, window_bounds = array<i64: 128, 16>}, {pipeline_mode = #tpu.pipeline_mode<synchronous>, transform_indices = @transform_6, window_bounds = array<i64: 1, 16>}, {pipeline_mode = #tpu.pipeline_mode<synchronous>, transform_indices = @transform_7, window_bounds = array<i64: 1, 256>}, {pipeline_mode = #tpu.pipeline_mode<synchronous>, transform_indices = @transform_8, window_bounds = array<i64: 1, 1>}, {transform_indices = @transform_9, window_bounds = array<i64: 1, 1, 4>}]} {
    %c0 = arith.constant 0 : index
    %c0_0 = arith.constant 0 : index
    %0 = vector.load %arg1[%c0, %c0_0] : memref<256x64xf32, #tpu.memory_space<vmem>>, vector<256x64xf32>
    %c0_1 = arith.constant 0 : index
    %c0_2 = arith.constant 0 : index
    %1 = vector.load %arg2[%c0_1, %c0_2] : memref<64x8xf32, #tpu.memory_space<vmem>>, vector<64x8xf32>
    %cst = arith.constant dense<0.000000e+00> : vector<256x8xf32>
    %2 = tpu.matmul %0, %1, %cst {dimension_numbers = #tpu.dot_dimension_numbers<[1], [0], [0], [1], [0, 0, 1, 1], [], []>} : vector<256x64xf32>, vector<64x8xf32>, vector<256x8xf32> -> vector<256x8xf32>
    %c0_3 = arith.constant 0 : index
    %c0_4 = arith.constant 0 : index
    %3 = vector.load %arg3[%c0_3, %c0_4] : memref<1x8xf32, #tpu.memory_space<vmem>>, vector<1x8xf32>
    %4 = vector.broadcast %3 : vector<1x8xf32> to vector<256x8xf32>
    %5 = arith.addf %2, %4 : vector<256x8xf32>
    %cst_5 = arith.constant 2.000000e-01 : f32
    %6 = vector.broadcast %cst_5 : f32 to vector<256x8xf32>
    %7 = arith.mulf %6, %5 : vector<256x8xf32>
    %8 = arith.maximumf %5, %7 : vector<256x8xf32>
    %9 = vector.shape_cast %8 : vector<256x8xf32> to vector<4x8x8x8xf32>
    %cst_6 = arith.constant 0.000000e+00 : f32
    %10 = vector.broadcast %cst_6 : f32 to vector<4x1x10x8xf32>
    %cst_7 = arith.constant 0.000000e+00 : f32
    %11 = vector.broadcast %cst_7 : f32 to vector<4x8x1x8xf32>
    %c0_8 = arith.constant 0 : index
    %c0_9 = arith.constant 0 : index
    %c0_10 = arith.constant 0 : index
    %c0_11 = arith.constant 0 : index
    %12 = vector.load %arg11[%c0_8, %c0_9, %c0_10, %c0_11] : memref<4x10x10x8xf32, #tpu.memory_space<vmem>>, vector<4x1x10x8xf32>
    tpu.vector_store %arg11[%c0_8, %c0_9, %c0_10, %c0_11], %10 {strides = array<i32>} : memref<4x10x10x8xf32, #tpu.memory_space<vmem>>, vector<4x1x10x8xf32>,
    %c0_12 = arith.constant 0 : index
    %c9 = arith.constant 9 : index
    %c0_13 = arith.constant 0 : index
    %c0_14 = arith.constant 0 : index
    %13 = vector.load %arg11[%c0_12, %c9, %c0_13, %c0_14] : memref<4x10x10x8xf32, #tpu.memory_space<vmem>>, vector<4x1x10x8xf32>
    tpu.vector_store %arg11[%c0_12, %c9, %c0_13, %c0_14], %10 {strides = array<i32>} : memref<4x10x10x8xf32, #tpu.memory_space<vmem>>, vector<4x1x10x8xf32>,
    %c0_15 = arith.constant 0 : index
    %c1 = arith.constant 1 : index
    %c0_16 = arith.constant 0 : index
    %c0_17 = arith.constant 0 : index
    %14 = vector.load %arg11[%c0_15, %c1, %c0_16, %c0_17] : memref<4x10x10x8xf32, #tpu.memory_space<vmem>>, vector<4x8x1x8xf32>
    tpu.vector_store %arg11[%c0_15, %c1, %c0_16, %c0_17], %11 {strides = array<i32>} : memref<4x10x10x8xf32, #tpu.memory_space<vmem>>, vector<4x8x1x8xf32>,
    %c0_18 = arith.constant 0 : index
    %c1_19 = arith.constant 1 : index
    %c9_20 = arith.constant 9 : index
    %c0_21 = arith.constant 0 : index
    %15 = vector.load %arg11[%c0_18, %c1_19, %c9_20, %c0_21] : memref<4x10x10x8xf32, #tpu.memory_space<vmem>>, vector<4x8x1x8xf32>
    tpu.vector_store %arg11[%c0_18, %c1_19, %c9_20, %c0_21], %11 {strides = array<i32>} : memref<4x10x10x8xf32, #tpu.memory_space<vmem>>, vector<4x8x1x8xf32>,
    %c0_22 = arith.constant 0 : index
    %c1_23 = arith.constant 1 : index
    %c1_24 = arith.constant 1 : index
    %c0_25 = arith.constant 0 : index
    %16 = vector.load %arg11[%c0_22, %c1_23, %c1_24, %c0_25] : memref<4x10x10x8xf32, #tpu.memory_space<vmem>>, vector<4x8x8x8xf32>
    tpu.vector_store %arg11[%c0_22, %c1_23, %c1_24, %c0_25], %9 {strides = array<i32>} : memref<4x10x10x8xf32, #tpu.memory_space<vmem>>, vector<4x8x8x8xf32>,
    %c0_26 = arith.constant 0 : index
    %c0_27 = arith.constant 0 : index
    %c0_28 = arith.constant 0 : index
    %c0_29 = arith.constant 0 : index
    %17 = vector.load %arg11[%c0_26, %c0_27, %c0_28, %c0_29] : memref<4x10x10x8xf32, #tpu.memory_space<vmem>>, vector<4x8x8x8xf32>
    %18 = vector.shape_cast %17 : vector<4x8x8x8xf32> to vector<256x8xf32>
    %c0_30 = arith.constant 0 : index
    %c0_31 = arith.constant 0 : index
    %c1_32 = arith.constant 1 : index
    %c0_33 = arith.constant 0 : index
    %19 = vector.load %arg11[%c0_30, %c0_31, %c1_32, %c0_33] : memref<4x10x10x8xf32, #tpu.memory_space<vmem>>, vector<4x8x8x8xf32>
    %20 = vector.shape_cast %19 : vector<4x8x8x8xf32> to vector<256x8xf32>
    %c0_34 = arith.constant 0 : index
    %c0_35 = arith.constant 0 : index
    %c2 = arith.constant 2 : index
    %c0_36 = arith.constant 0 : index
    %21 = vector.load %arg11[%c0_34, %c0_35, %c2, %c0_36] : memref<4x10x10x8xf32, #tpu.memory_space<vmem>>, vector<4x8x8x8xf32>
    %22 = vector.shape_cast %21 : vector<4x8x8x8xf32> to vector<256x8xf32>
    %c0_37 = arith.constant 0 : index
    %c1_38 = arith.constant 1 : index
    %c0_39 = arith.constant 0 : index
    %c0_40 = arith.constant 0 : index
    %23 = vector.load %arg11[%c0_37, %c1_38, %c0_39, %c0_40] : memref<4x10x10x8xf32, #tpu.memory_space<vmem>>, vector<4x8x8x8xf32>
    %24 = vector.shape_cast %23 : vector<4x8x8x8xf32> to vector<256x8xf32>
    %c0_41 = arith.constant 0 : index
    %c1_42 = arith.constant 1 : index
    %c1_43 = arith.constant 1 : index
    %c0_44 = arith.constant 0 : index
    %25 = vector.load %arg11[%c0_41, %c1_42, %c1_43, %c0_44] : memref<4x10x10x8xf32, #tpu.memory_space<vmem>>, vector<4x8x8x8xf32>
    %26 = vector.shape_cast %25 : vector<4x8x8x8xf32> to vector<256x8xf32>
    %c0_45 = arith.constant 0 : index
    %c1_46 = arith.constant 1 : index
    %c2_47 = arith.constant 2 : index
    %c0_48 = arith.constant 0 : index
    %27 = vector.load %arg11[%c0_45, %c1_46, %c2_47, %c0_48] : memref<4x10x10x8xf32, #tpu.memory_space<vmem>>, vector<4x8x8x8xf32>
    %28 = vector.shape_cast %27 : vector<4x8x8x8xf32> to vector<256x8xf32>
    %c0_49 = arith.constant 0 : index
    %c2_50 = arith.constant 2 : index
    %c0_51 = arith.constant 0 : index
    %c0_52 = arith.constant 0 : index
    %29 = vector.load %arg11[%c0_49, %c2_50, %c0_51, %c0_52] : memref<4x10x10x8xf32, #tpu.memory_space<vmem>>, vector<4x8x8x8xf32>
    %30 = vector.shape_cast %29 : vector<4x8x8x8xf32> to vector<256x8xf32>
    %c0_53 = arith.constant 0 : index
    %c2_54 = arith.constant 2 : index
    %c1_55 = arith.constant 1 : index
    %c0_56 = arith.constant 0 : index
    %31 = vector.load %arg11[%c0_53, %c2_54, %c1_55, %c0_56] : memref<4x10x10x8xf32, #tpu.memory_space<vmem>>, vector<4x8x8x8xf32>
    %32 = vector.shape_cast %31 : vector<4x8x8x8xf32> to vector<256x8xf32>
    %c0_57 = arith.constant 0 : index
    %c2_58 = arith.constant 2 : index
    %c2_59 = arith.constant 2 : index
    %c0_60 = arith.constant 0 : index
    %33 = vector.load %arg11[%c0_57, %c2_58, %c2_59, %c0_60] : memref<4x10x10x8xf32, #tpu.memory_space<vmem>>, vector<4x8x8x8xf32>
    %34 = vector.shape_cast %33 : vector<4x8x8x8xf32> to vector<256x8xf32>
    %c0_61 = arith.constant 0 : index
    %c0_62 = arith.constant 0 : index
    %35 = vector.load %arg4[%c0_61, %c0_62] : memref<72x8xf32, #tpu.memory_space<vmem>>, vector<72x8xf32>
    %36 = tpu.concatenate %18, %20, %22, %24, %26, %28, %30, %32, %34 in 1 : vector<256x8xf32>, vector<256x8xf32>, vector<256x8xf32>, vector<256x8xf32>, vector<256x8xf32>, vector<256x8xf32>, vector<256x8xf32>, vector<256x8xf32>, vector<256x8xf32> -> vector<256x72xf32>
    %cst_63 = arith.constant dense<0.000000e+00> : vector<256x8xf32>
    %37 = tpu.matmul %36, %35, %cst_63 {dimension_numbers = #tpu.dot_dimension_numbers<[1], [0], [0], [1], [0, 0, 1, 1], [], []>} : vector<256x72xf32>, vector<72x8xf32>, vector<256x8xf32> -> vector<256x8xf32>
    %c0_64 = arith.constant 0 : index
    %c0_65 = arith.constant 0 : index
    %38 = vector.load %arg5[%c0_64, %c0_65] : memref<1x8xf32, #tpu.memory_space<vmem>>, vector<1x8xf32>
    %39 = vector.broadcast %38 : vector<1x8xf32> to vector<256x8xf32>
    %40 = arith.addf %37, %39 : vector<256x8xf32>
    %cst_66 = arith.constant 2.000000e-01 : f32
    %41 = vector.broadcast %cst_66 : f32 to vector<256x8xf32>
    %42 = arith.mulf %41, %40 : vector<256x8xf32>
    %43 = arith.maximumf %40, %42 : vector<256x8xf32>
    %44 = vector.shape_cast %43 : vector<256x8xf32> to vector<4x8x8x8xf32>
    %cst_67 = arith.constant 0.000000e+00 : f32
    %45 = vector.broadcast %cst_67 : f32 to vector<4x1x10x8xf32>
    %cst_68 = arith.constant 0.000000e+00 : f32
    %46 = vector.broadcast %cst_68 : f32 to vector<4x8x1x8xf32>
    %c0_69 = arith.constant 0 : index
    %c0_70 = arith.constant 0 : index
    %c0_71 = arith.constant 0 : index
    %c0_72 = arith.constant 0 : index
    %47 = vector.load %arg12[%c0_69, %c0_70, %c0_71, %c0_72] : memref<4x10x10x8xf32, #tpu.memory_space<vmem>>, vector<4x1x10x8xf32>
    tpu.vector_store %arg12[%c0_69, %c0_70, %c0_71, %c0_72], %45 {strides = array<i32>} : memref<4x10x10x8xf32, #tpu.memory_space<vmem>>, vector<4x1x10x8xf32>,
    %c0_73 = arith.constant 0 : index
    %c9_74 = arith.constant 9 : index
    %c0_75 = arith.constant 0 : index
    %c0_76 = arith.constant 0 : index
    %48 = vector.load %arg12[%c0_73, %c9_74, %c0_75, %c0_76] : memref<4x10x10x8xf32, #tpu.memory_space<vmem>>, vector<4x1x10x8xf32>
    tpu.vector_store %arg12[%c0_73, %c9_74, %c0_75, %c0_76], %45 {strides = array<i32>} : memref<4x10x10x8xf32, #tpu.memory_space<vmem>>, vector<4x1x10x8xf32>,
    %c0_77 = arith.constant 0 : index
    %c1_78 = arith.constant 1 : index
    %c0_79 = arith.constant 0 : index
    %c0_80 = arith.constant 0 : index
    %49 = vector.load %arg12[%c0_77, %c1_78, %c0_79, %c0_80] : memref<4x10x10x8xf32, #tpu.memory_space<vmem>>, vector<4x8x1x8xf32>
    tpu.vector_store %arg12[%c0_77, %c1_78, %c0_79, %c0_80], %46 {strides = array<i32>} : memref<4x10x10x8xf32, #tpu.memory_space<vmem>>, vector<4x8x1x8xf32>,
    %c0_81 = arith.constant 0 : index
    %c1_82 = arith.constant 1 : index
    %c9_83 = arith.constant 9 : index
    %c0_84 = arith.constant 0 : index
    %50 = vector.load %arg12[%c0_81, %c1_82, %c9_83, %c0_84] : memref<4x10x10x8xf32, #tpu.memory_space<vmem>>, vector<4x8x1x8xf32>
    tpu.vector_store %arg12[%c0_81, %c1_82, %c9_83, %c0_84], %46 {strides = array<i32>} : memref<4x10x10x8xf32, #tpu.memory_space<vmem>>, vector<4x8x1x8xf32>,
    %c0_85 = arith.constant 0 : index
    %c1_86 = arith.constant 1 : index
    %c1_87 = arith.constant 1 : index
    %c0_88 = arith.constant 0 : index
    %51 = vector.load %arg12[%c0_85, %c1_86, %c1_87, %c0_88] : memref<4x10x10x8xf32, #tpu.memory_space<vmem>>, vector<4x8x8x8xf32>
    tpu.vector_store %arg12[%c0_85, %c1_86, %c1_87, %c0_88], %44 {strides = array<i32>} : memref<4x10x10x8xf32, #tpu.memory_space<vmem>>, vector<4x8x8x8xf32>,
    %c0_89 = arith.constant 0 : index
    %c0_90 = arith.constant 0 : index
    %c0_91 = arith.constant 0 : index
    %c0_92 = arith.constant 0 : index
    %52 = tpu.strided_load %arg12[%c0_89, %c0_90, %c0_91, %c0_92] {strides = array<i32: 1, 2, 2, 1>} : memref<4x10x10x8xf32, #tpu.memory_space<vmem>>, vector<4x4x4x8xf32>
    %53 = vector.shape_cast %52 : vector<4x4x4x8xf32> to vector<64x8xf32>
    %c0_93 = arith.constant 0 : index
    %c0_94 = arith.constant 0 : index
    %c1_95 = arith.constant 1 : index
    %c0_96 = arith.constant 0 : index
    %54 = tpu.strided_load %arg12[%c0_93, %c0_94, %c1_95, %c0_96] {strides = array<i32: 1, 2, 2, 1>} : memref<4x10x10x8xf32, #tpu.memory_space<vmem>>, vector<4x4x4x8xf32>
    %55 = vector.shape_cast %54 : vector<4x4x4x8xf32> to vector<64x8xf32>
    %c0_97 = arith.constant 0 : index
    %c0_98 = arith.constant 0 : index
    %c2_99 = arith.constant 2 : index
    %c0_100 = arith.constant 0 : index
    %56 = tpu.strided_load %arg12[%c0_97, %c0_98, %c2_99, %c0_100] {strides = array<i32: 1, 2, 2, 1>} : memref<4x10x10x8xf32, #tpu.memory_space<vmem>>, vector<4x4x4x8xf32>
    %57 = vector.shape_cast %56 : vector<4x4x4x8xf32> to vector<64x8xf32>
    %c0_101 = arith.constant 0 : index
    %c0_102 = arith.constant 0 : index
    %c3 = arith.constant 3 : index
    %c0_103 = arith.constant 0 : index
    %58 = tpu.strided_load %arg12[%c0_101, %c0_102, %c3, %c0_103] {strides = array<i32: 1, 2, 2, 1>} : memref<4x10x10x8xf32, #tpu.memory_space<vmem>>, vector<4x4x4x8xf32>
    %59 = vector.shape_cast %58 : vector<4x4x4x8xf32> to vector<64x8xf32>
    %c0_104 = arith.constant 0 : index
    %c1_105 = arith.constant 1 : index
    %c0_106 = arith.constant 0 : index
    %c0_107 = arith.constant 0 : index
    %60 = tpu.strided_load %arg12[%c0_104, %c1_105, %c0_106, %c0_107] {strides = array<i32: 1, 2, 2, 1>} : memref<4x10x10x8xf32, #tpu.memory_space<vmem>>, vector<4x4x4x8xf32>
    %61 = vector.shape_cast %60 : vector<4x4x4x8xf32> to vector<64x8xf32>
    %c0_108 = arith.constant 0 : index
    %c1_109 = arith.constant 1 : index
    %c1_110 = arith.constant 1 : index
    %c0_111 = arith.constant 0 : index
    %62 = tpu.strided_load %arg12[%c0_108, %c1_109, %c1_110, %c0_111] {strides = array<i32: 1, 2, 2, 1>} : memref<4x10x10x8xf32, #tpu.memory_space<vmem>>, vector<4x4x4x8xf32>
    %63 = vector.shape_cast %62 : vector<4x4x4x8xf32> to vector<64x8xf32>
    %c0_112 = arith.constant 0 : index
    %c1_113 = arith.constant 1 : index
    %c2_114 = arith.constant 2 : index
    %c0_115 = arith.constant 0 : index
    %64 = tpu.strided_load %arg12[%c0_112, %c1_113, %c2_114, %c0_115] {strides = array<i32: 1, 2, 2, 1>} : memref<4x10x10x8xf32, #tpu.memory_space<vmem>>, vector<4x4x4x8xf32>
    %65 = vector.shape_cast %64 : vector<4x4x4x8xf32> to vector<64x8xf32>
    %c0_116 = arith.constant 0 : index
    %c1_117 = arith.constant 1 : index
    %c3_118 = arith.constant 3 : index
    %c0_119 = arith.constant 0 : index
    %66 = tpu.strided_load %arg12[%c0_116, %c1_117, %c3_118, %c0_119] {strides = array<i32: 1, 2, 2, 1>} : memref<4x10x10x8xf32, #tpu.memory_space<vmem>>, vector<4x4x4x8xf32>
    %67 = vector.shape_cast %66 : vector<4x4x4x8xf32> to vector<64x8xf32>
    %c0_120 = arith.constant 0 : index
    %c2_121 = arith.constant 2 : index
    %c0_122 = arith.constant 0 : index
    %c0_123 = arith.constant 0 : index
    %68 = tpu.strided_load %arg12[%c0_120, %c2_121, %c0_122, %c0_123] {strides = array<i32: 1, 2, 2, 1>} : memref<4x10x10x8xf32, #tpu.memory_space<vmem>>, vector<4x4x4x8xf32>
    %69 = vector.shape_cast %68 : vector<4x4x4x8xf32> to vector<64x8xf32>
    %c0_124 = arith.constant 0 : index
    %c2_125 = arith.constant 2 : index
    %c1_126 = arith.constant 1 : index
    %c0_127 = arith.constant 0 : index
    %70 = tpu.strided_load %arg12[%c0_124, %c2_125, %c1_126, %c0_127] {strides = array<i32: 1, 2, 2, 1>} : memref<4x10x10x8xf32, #tpu.memory_space<vmem>>, vector<4x4x4x8xf32>
    %71 = vector.shape_cast %70 : vector<4x4x4x8xf32> to vector<64x8xf32>
    %c0_128 = arith.constant 0 : index
    %c2_129 = arith.constant 2 : index
    %c2_130 = arith.constant 2 : index
    %c0_131 = arith.constant 0 : index
    %72 = tpu.strided_load %arg12[%c0_128, %c2_129, %c2_130, %c0_131] {strides = array<i32: 1, 2, 2, 1>} : memref<4x10x10x8xf32, #tpu.memory_space<vmem>>, vector<4x4x4x8xf32>
    %73 = vector.shape_cast %72 : vector<4x4x4x8xf32> to vector<64x8xf32>
    %c0_132 = arith.constant 0 : index
    %c2_133 = arith.constant 2 : index
    %c3_134 = arith.constant 3 : index
    %c0_135 = arith.constant 0 : index
    %74 = tpu.strided_load %arg12[%c0_132, %c2_133, %c3_134, %c0_135] {strides = array<i32: 1, 2, 2, 1>} : memref<4x10x10x8xf32, #tpu.memory_space<vmem>>, vector<4x4x4x8xf32>
    %75 = vector.shape_cast %74 : vector<4x4x4x8xf32> to vector<64x8xf32>
    %c0_136 = arith.constant 0 : index
    %c3_137 = arith.constant 3 : index
    %c0_138 = arith.constant 0 : index
    %c0_139 = arith.constant 0 : index
    %76 = tpu.strided_load %arg12[%c0_136, %c3_137, %c0_138, %c0_139] {strides = array<i32: 1, 2, 2, 1>} : memref<4x10x10x8xf32, #tpu.memory_space<vmem>>, vector<4x4x4x8xf32>
    %77 = vector.shape_cast %76 : vector<4x4x4x8xf32> to vector<64x8xf32>
    %c0_140 = arith.constant 0 : index
    %c3_141 = arith.constant 3 : index
    %c1_142 = arith.constant 1 : index
    %c0_143 = arith.constant 0 : index
    %78 = tpu.strided_load %arg12[%c0_140, %c3_141, %c1_142, %c0_143] {strides = array<i32: 1, 2, 2, 1>} : memref<4x10x10x8xf32, #tpu.memory_space<vmem>>, vector<4x4x4x8xf32>
    %79 = vector.shape_cast %78 : vector<4x4x4x8xf32> to vector<64x8xf32>
    %c0_144 = arith.constant 0 : index
    %c3_145 = arith.constant 3 : index
    %c2_146 = arith.constant 2 : index
    %c0_147 = arith.constant 0 : index
    %80 = tpu.strided_load %arg12[%c0_144, %c3_145, %c2_146, %c0_147] {strides = array<i32: 1, 2, 2, 1>} : memref<4x10x10x8xf32, #tpu.memory_space<vmem>>, vector<4x4x4x8xf32>
    %81 = vector.shape_cast %80 : vector<4x4x4x8xf32> to vector<64x8xf32>
    %c0_148 = arith.constant 0 : index
    %c3_149 = arith.constant 3 : index
    %c3_150 = arith.constant 3 : index
    %c0_151 = arith.constant 0 : index
    %82 = tpu.strided_load %arg12[%c0_148, %c3_149, %c3_150, %c0_151] {strides = array<i32: 1, 2, 2, 1>} : memref<4x10x10x8xf32, #tpu.memory_space<vmem>>, vector<4x4x4x8xf32>
    %83 = vector.shape_cast %82 : vector<4x4x4x8xf32> to vector<64x8xf32>
    %c0_152 = arith.constant 0 : index
    %c0_153 = arith.constant 0 : index
    %84 = vector.load %arg6[%c0_152, %c0_153] : memref<128x16xf32, #tpu.memory_space<vmem>>, vector<128x16xf32>
    %85 = tpu.concatenate %53, %55, %57, %59, %61, %63, %65, %67, %69, %71, %73, %75, %77, %79, %81, %83 in 1 : vector<64x8xf32>, vector<64x8xf32>, vector<64x8xf32>, vector<64x8xf32>, vector<64x8xf32>, vector<64x8xf32>, vector<64x8xf32>, vector<64x8xf32>, vector<64x8xf32>, vector<64x8xf32>, vector<64x8xf32>, vector<64x8xf32>, vector<64x8xf32>, vector<64x8xf32>, vector<64x8xf32>, vector<64x8xf32> -> vector<64x128xf32>
    %cst_154 = arith.constant dense<0.000000e+00> : vector<64x16xf32>
    %86 = tpu.matmul %85, %84, %cst_154 {dimension_numbers = #tpu.dot_dimension_numbers<[1], [0], [0], [1], [0, 0, 1, 1], [], []>} : vector<64x128xf32>, vector<128x16xf32>, vector<64x16xf32> -> vector<64x16xf32>
    %c0_155 = arith.constant 0 : index
    %c0_156 = arith.constant 0 : index
    %87 = vector.load %arg7[%c0_155, %c0_156] : memref<1x16xf32, #tpu.memory_space<vmem>>, vector<1x16xf32>
    %88 = vector.broadcast %87 : vector<1x16xf32> to vector<64x16xf32>
    %89 = arith.addf %86, %88 : vector<64x16xf32>
    %cst_157 = arith.constant 2.000000e-01 : f32
    %90 = vector.broadcast %cst_157 : f32 to vector<64x16xf32>
    %91 = arith.mulf %90, %89 : vector<64x16xf32>
    %92 = arith.maximumf %89, %91 : vector<64x16xf32>
    %93 = vector.shape_cast %92 : vector<64x16xf32> to vector<4x4x4x16xf32>
    %c0_158 = arith.constant 0 : index
    %c0_159 = arith.constant 0 : index
    %c0_160 = arith.constant 0 : index
    %c0_161 = arith.constant 0 : index
    %94 = vector.load %arg13[%c0_158, %c0_159, %c0_160, %c0_161] : memref<4x4x4x16xf32, #tpu.memory_space<vmem>>, vector<4x4x4x16xf32>
    tpu.vector_store %arg13[%c0_158, %c0_159, %c0_160, %c0_161], %93 {strides = array<i32>} : memref<4x4x4x16xf32, #tpu.memory_space<vmem>>, vector<4x4x4x16xf32>,
    %c0_162 = arith.constant 0 : index
    %c0_163 = arith.constant 0 : index
    %c0_164 = arith.constant 0 : index
    %c0_165 = arith.constant 0 : index
    %95 = vector.load %arg13[%c0_162, %c0_163, %c0_164, %c0_165] : memref<4x4x4x16xf32, #tpu.memory_space<vmem>>, vector<4x1x1x16xf32>
    %96 = vector.shape_cast %95 : vector<4x1x1x16xf32> to vector<4x16xf32>
    %c0_166 = arith.constant 0 : index
    %c0_167 = arith.constant 0 : index
    %c1_168 = arith.constant 1 : index
    %c0_169 = arith.constant 0 : index
    %97 = vector.load %arg13[%c0_166, %c0_167, %c1_168, %c0_169] : memref<4x4x4x16xf32, #tpu.memory_space<vmem>>, vector<4x1x1x16xf32>
    %98 = vector.shape_cast %97 : vector<4x1x1x16xf32> to vector<4x16xf32>
    %c0_170 = arith.constant 0 : index
    %c0_171 = arith.constant 0 : index
    %c2_172 = arith.constant 2 : index
    %c0_173 = arith.constant 0 : index
    %99 = vector.load %arg13[%c0_170, %c0_171, %c2_172, %c0_173] : memref<4x4x4x16xf32, #tpu.memory_space<vmem>>, vector<4x1x1x16xf32>
    %100 = vector.shape_cast %99 : vector<4x1x1x16xf32> to vector<4x16xf32>
    %c0_174 = arith.constant 0 : index
    %c0_175 = arith.constant 0 : index
    %c3_176 = arith.constant 3 : index
    %c0_177 = arith.constant 0 : index
    %101 = vector.load %arg13[%c0_174, %c0_175, %c3_176, %c0_177] : memref<4x4x4x16xf32, #tpu.memory_space<vmem>>, vector<4x1x1x16xf32>
    %102 = vector.shape_cast %101 : vector<4x1x1x16xf32> to vector<4x16xf32>
    %c0_178 = arith.constant 0 : index
    %c1_179 = arith.constant 1 : index
    %c0_180 = arith.constant 0 : index
    %c0_181 = arith.constant 0 : index
    %103 = vector.load %arg13[%c0_178, %c1_179, %c0_180, %c0_181] : memref<4x4x4x16xf32, #tpu.memory_space<vmem>>, vector<4x1x1x16xf32>
    %104 = vector.shape_cast %103 : vector<4x1x1x16xf32> to vector<4x16xf32>
    %c0_182 = arith.constant 0 : index
    %c1_183 = arith.constant 1 : index
    %c1_184 = arith.constant 1 : index
    %c0_185 = arith.constant 0 : index
    %105 = vector.load %arg13[%c0_182, %c1_183, %c1_184, %c0_185] : memref<4x4x4x16xf32, #tpu.memory_space<vmem>>, vector<4x1x1x16xf32>
    %106 = vector.shape_cast %105 : vector<4x1x1x16xf32> to vector<4x16xf32>
    %c0_186 = arith.constant 0 : index
    %c1_187 = arith.constant 1 : index
    %c2_188 = arith.constant 2 : index
    %c0_189 = arith.constant 0 : index
    %107 = vector.load %arg13[%c0_186, %c1_187, %c2_188, %c0_189] : memref<4x4x4x16xf32, #tpu.memory_space<vmem>>, vector<4x1x1x16xf32>
    %108 = vector.shape_cast %107 : vector<4x1x1x16xf32> to vector<4x16xf32>
    %c0_190 = arith.constant 0 : index
    %c1_191 = arith.constant 1 : index
    %c3_192 = arith.constant 3 : index
    %c0_193 = arith.constant 0 : index
    %109 = vector.load %arg13[%c0_190, %c1_191, %c3_192, %c0_193] : memref<4x4x4x16xf32, #tpu.memory_space<vmem>>, vector<4x1x1x16xf32>
    %110 = vector.shape_cast %109 : vector<4x1x1x16xf32> to vector<4x16xf32>
    %c0_194 = arith.constant 0 : index
    %c2_195 = arith.constant 2 : index
    %c0_196 = arith.constant 0 : index
    %c0_197 = arith.constant 0 : index
    %111 = vector.load %arg13[%c0_194, %c2_195, %c0_196, %c0_197] : memref<4x4x4x16xf32, #tpu.memory_space<vmem>>, vector<4x1x1x16xf32>
    %112 = vector.shape_cast %111 : vector<4x1x1x16xf32> to vector<4x16xf32>
    %c0_198 = arith.constant 0 : index
    %c2_199 = arith.constant 2 : index
    %c1_200 = arith.constant 1 : index
    %c0_201 = arith.constant 0 : index
    %113 = vector.load %arg13[%c0_198, %c2_199, %c1_200, %c0_201] : memref<4x4x4x16xf32, #tpu.memory_space<vmem>>, vector<4x1x1x16xf32>
    %114 = vector.shape_cast %113 : vector<4x1x1x16xf32> to vector<4x16xf32>
    %c0_202 = arith.constant 0 : index
    %c2_203 = arith.constant 2 : index
    %c2_204 = arith.constant 2 : index
    %c0_205 = arith.constant 0 : index
    %115 = vector.load %arg13[%c0_202, %c2_203, %c2_204, %c0_205] : memref<4x4x4x16xf32, #tpu.memory_space<vmem>>, vector<4x1x1x16xf32>
    %116 = vector.shape_cast %115 : vector<4x1x1x16xf32> to vector<4x16xf32>
    %c0_206 = arith.constant 0 : index
    %c2_207 = arith.constant 2 : index
    %c3_208 = arith.constant 3 : index
    %c0_209 = arith.constant 0 : index
    %117 = vector.load %arg13[%c0_206, %c2_207, %c3_208, %c0_209] : memref<4x4x4x16xf32, #tpu.memory_space<vmem>>, vector<4x1x1x16xf32>
    %118 = vector.shape_cast %117 : vector<4x1x1x16xf32> to vector<4x16xf32>
    %c0_210 = arith.constant 0 : index
    %c3_211 = arith.constant 3 : index
    %c0_212 = arith.constant 0 : index
    %c0_213 = arith.constant 0 : index
    %119 = vector.load %arg13[%c0_210, %c3_211, %c0_212, %c0_213] : memref<4x4x4x16xf32, #tpu.memory_space<vmem>>, vector<4x1x1x16xf32>
    %120 = vector.shape_cast %119 : vector<4x1x1x16xf32> to vector<4x16xf32>
    %c0_214 = arith.constant 0 : index
    %c3_215 = arith.constant 3 : index
    %c1_216 = arith.constant 1 : index
    %c0_217 = arith.constant 0 : index
    %121 = vector.load %arg13[%c0_214, %c3_215, %c1_216, %c0_217] : memref<4x4x4x16xf32, #tpu.memory_space<vmem>>, vector<4x1x1x16xf32>
    %122 = vector.shape_cast %121 : vector<4x1x1x16xf32> to vector<4x16xf32>
    %c0_218 = arith.constant 0 : index
    %c3_219 = arith.constant 3 : index
    %c2_220 = arith.constant 2 : index
    %c0_221 = arith.constant 0 : index
    %123 = vector.load %arg13[%c0_218, %c3_219, %c2_220, %c0_221] : memref<4x4x4x16xf32, #tpu.memory_space<vmem>>, vector<4x1x1x16xf32>
    %124 = vector.shape_cast %123 : vector<4x1x1x16xf32> to vector<4x16xf32>
    %c0_222 = arith.constant 0 : index
    %c3_223 = arith.constant 3 : index
    %c3_224 = arith.constant 3 : index
    %c0_225 = arith.constant 0 : index
    %125 = vector.load %arg13[%c0_222, %c3_223, %c3_224, %c0_225] : memref<4x4x4x16xf32, #tpu.memory_space<vmem>>, vector<4x1x1x16xf32>
    %126 = vector.shape_cast %125 : vector<4x1x1x16xf32> to vector<4x16xf32>
    %c0_226 = arith.constant 0 : index
    %c0_227 = arith.constant 0 : index
    %127 = vector.load %arg8[%c0_226, %c0_227] : memref<1x256xf32, #tpu.memory_space<vmem>>, vector<1x256xf32>
    %128 = tpu.concatenate %96, %98, %100, %102, %104, %106, %108, %110, %112, %114, %116, %118, %120, %122, %124, %126 in 1 : vector<4x16xf32>, vector<4x16xf32>, vector<4x16xf32>, vector<4x16xf32>, vector<4x16xf32>, vector<4x16xf32>, vector<4x16xf32>, vector<4x16xf32>, vector<4x16xf32>, vector<4x16xf32>, vector<4x16xf32>, vector<4x16xf32>, vector<4x16xf32>, vector<4x16xf32>, vector<4x16xf32>, vector<4x16xf32> -> vector<4x256xf32>
    %129 = vector.broadcast %127 : vector<1x256xf32> to vector<4x256xf32>
    %130 = arith.mulf %128, %129 : vector<4x256xf32>
    %cst_228 = arith.constant dense<0.000000e+00> : vector<4xf32>
    %131 = vector.multi_reduction <add>, %130, %cst_228 [1] : vector<4x256xf32> to vector<4xf32>
    %132 = vector.shape_cast %131 : vector<4xf32> to vector<4x1xf32>
    %c0_229 = arith.constant 0 : index
    %c0_230 = arith.constant 0 : index
    %133 = vector.load %arg9[%c0_229, %c0_230] : memref<1x1xf32, #tpu.memory_space<vmem>>, vector<1x1xf32>
    %134 = vector.broadcast %133 : vector<1x1xf32> to vector<4x1xf32>
    %135 = arith.addf %132, %134 : vector<4x1xf32>
    %136 = vector.shape_cast %135 : vector<4x1xf32> to vector<1x1x4xf32>
    %c0_231 = arith.constant 0 : index
    %c0_232 = arith.constant 0 : index
    %c0_233 = arith.constant 0 : index
    %137 = vector.load %arg10[%c0_231, %c0_232, %c0_233] : memref<1x1x4xf32, #tpu.memory_space<vmem>>, vector<1x1x4xf32>
    tpu.vector_store %arg10[%c0_231, %c0_232, %c0_233], %136 {strides = array<i32>} : memref<1x1x4xf32, #tpu.memory_space<vmem>>, vector<1x1x4xf32>,
    return
  }
  func.func @transform_0(%arg0: i32) -> (i32, i32) {
    %c0_i32 = arith.constant 0 : i32
    %c0_i32_0 = arith.constant 0 : i32
    return %arg0, %c0_i32 : i32, i32
  }
  func.func @transform_1(%arg0: i32) -> (i32, i32) {
    %c0_i32 = arith.constant 0 : i32
    %c0_i32_0 = arith.constant 0 : i32
    %c0_i32_1 = arith.constant 0 : i32
    return %c0_i32, %c0_i32_0 : i32, i32
  }
  func.func @transform_2(%arg0: i32) -> (i32, i32) {
    %c0_i32 = arith.constant 0 : i32
    %c0_i32_0 = arith.constant 0 : i32
    %c0_i32_1 = arith.constant 0 : i32
    return %c0_i32, %c0_i32_0 : i32, i32
  }
  func.func @transform_3(%arg0: i32) -> (i32, i32) {
    %c0_i32 = arith.constant 0 : i32
    %c0_i32_0 = arith.constant 0 : i32
    %c0_i32_1 = arith.constant 0 : i32
    return %c0_i32, %c0_i32_0 : i32, i32
  }
  func.func @transform_4(%arg0: i32) -> (i32, i32) {
    %c0_i32 = arith.constant 0 : i32
    %c0_i32_0 = arith.constant 0 : i32
    %c0_i32_1 = arith.constant 0 : i32
    return %c0_i32, %c0_i32_0 : i32, i32
  }
  func.func @transform_5(%arg0: i32) -> (i32, i32) {
    %c0_i32 = arith.constant 0 : i32
    %c0_i32_0 = arith.constant 0 : i32
    %c0_i32_1 = arith.constant 0 : i32
    return %c0_i32, %c0_i32_0 : i32, i32
  }
  func.func @transform_6(%arg0: i32) -> (i32, i32) {
    %c0_i32 = arith.constant 0 : i32
    %c0_i32_0 = arith.constant 0 : i32
    %c0_i32_1 = arith.constant 0 : i32
    return %c0_i32, %c0_i32_0 : i32, i32
  }
  func.func @transform_7(%arg0: i32) -> (i32, i32) {
    %c0_i32 = arith.constant 0 : i32
    %c0_i32_0 = arith.constant 0 : i32
    %c0_i32_1 = arith.constant 0 : i32
    return %c0_i32, %c0_i32_0 : i32, i32
  }
  func.func @transform_8(%arg0: i32) -> (i32, i32) {
    %c0_i32 = arith.constant 0 : i32
    %c0_i32_0 = arith.constant 0 : i32
    %c0_i32_1 = arith.constant 0 : i32
    return %c0_i32, %c0_i32_0 : i32, i32
  }
  func.func @transform_9(%arg0: i32) -> (i32, i32, i32) {
    %c0_i32 = arith.constant 0 : i32
    %c0_i32_0 = arith.constant 0 : i32
    %c0_i32_1 = arith.constant 0 : i32
    return %arg0, %c0_i32, %c0_i32_0 : i32, i32, i32
  }
}

</mosaic_0001>

<llo_original>
// kernel: tpu_custom_call.1
$region0: #{tpu_custom_call.1}
  #allocation0 [shape = 'u32[]', space=smem, size = 0x4, offset = 0x4, fixed_abs, tag = 'smem constant byte address 0x4 - core index']
  #allocation1 [shape = 'u32[144,128]{1,0:T(1,128)}', space=vmem, size = 0x12000, scoped, tag = 'internal scratch']
  #allocation2 [shape = 'f32[4,10,10,8]{3,2,1,0:T(8,128)}', space=vmem, size = 0x50000, scoped, tag = 'scratch operand']
  #allocation3 [shape = 'f32[4,10,10,8]{3,2,1,0:T(8,128)}', space=vmem, size = 0x50000, scoped, tag = 'scratch operand']
  #allocation4 [shape = 'f32[4,4,4,16]{3,2,1,0:T(4,128)}', space=vmem, size = 0x8000, scoped, tag = 'scratch operand']
  #allocation5 [shape = 'f32[1,1]{1,0:T(1,128)S(1)}', space=vmem, size = 0x200, scoped, tag = 'scoped memory for tpu_custom_call.1']
  %s0 = inlined_call_operand.vmem [shape: f32[512,64], index: 0, kind: input, shape index: {}]
  %s1 = inlined_call_operand.vmem [shape: f32[64,8], index: 1, kind: input, shape index: {}]
  %s2 = inlined_call_operand.vmem [shape: f32[1,8], index: 2, kind: input, shape index: {}]
  %s3 = inlined_call_operand.vmem [shape: f32[72,8], index: 3, kind: input, shape index: {}]
  %s4 = inlined_call_operand.vmem [shape: f32[1,8], index: 4, kind: input, shape index: {}]
  %s5 = inlined_call_operand.vmem [shape: f32[128,16], index: 5, kind: input, shape index: {}]
  %s6 = inlined_call_operand.vmem [shape: f32[1,16], index: 6, kind: input, shape index: {}]
  %s7 = inlined_call_operand.vmem [shape: f32[1,256], index: 7, kind: input, shape index: {}]
  %s8 = inlined_call_operand.<no memory space> [shape: f32[1,1], index: 8, kind: input, shape index: {}]
  %s9 = inlined_call_operand.hbm [shape: f32[2,1,4], index: 9, kind: output, shape index: {}]
  %s10 = sld [smem:[#allocation0]]
  $region69: #{tpu_custom_call.1} parent=0
    _
  %s12 = ssub.s32 1, %s10
  %s13 = scalar_select 0, %s12, %s10
  %v14 = vstv %s8
  %15 = vst [vmem:[#allocation5] sm:$0x1] %v14
  $region1: #{tpu_custom_call.1} parent=0
    #allocation6 [shape = 'u8[1024]{0}', space=vmem, size = 0x400, scoped, tag = 'output window, operand 0']
    #allocation7 [shape = 's32[2]{0}', space=sflag, size = 0x8, scoped, tag = 'scoped memory for tpu_custom_call.1']
    %16 = vsyncpa [#allocation7], 0
    %s17 = scalar_lea.sflag [#allocation7], 1
    %18 = vsyncpa %s17, 0
    loop: start=0, step=1, limit=4
    $region2: #{tpu_custom_call.1} parent=1 // loop_pre_header
      _
    $region3: #{tpu_custom_call.1} parent=1 // loop_header
      %s20 = sphi 0, %s24
      %p21 = scmp.ge.s32.totalorder %s20, 4
      %s30 = sphi 0, %s32
      %s33 = sphi 0, %s30
      %s34 = sphi 0, %s33
      %s50 = sphi 0, %s34
      %s54 = sphi 0, %s54
      %s56 = sphi 0, %s54
      %s57 = sphi 0, %s56
      %s71 = sphi 0, %s57
      %s75 = sphi 0, %s75
      %s77 = sphi 0, %s75
      %s78 = sphi 0, %s77
      %s92 = sphi 0, %s78
      %s96 = sphi 0, %s96
      %s98 = sphi 0, %s96
      %s99 = sphi 0, %s98
      %s113 = sphi 0, %s99
      %s117 = sphi 0, %s117
      %s119 = sphi 0, %s117
      %s120 = sphi 0, %s119
      %s134 = sphi 0, %s120
      %s138 = sphi 0, %s138
      %s140 = sphi 0, %s138
      %s141 = sphi 0, %s140
      %s155 = sphi 0, %s141
      %s159 = sphi 0, %s159
      %s161 = sphi 0, %s159
      %s162 = sphi 0, %s161
      %s176 = sphi 0, %s162
      %s180 = sphi 0, %s180
      %s182 = sphi 0, %s180
      %s183 = sphi 0, %s182
      %s197 = sphi 0, %s183
      %s201 = sphi 0, %s201
      %s203 = sphi 0, %s201
      %s204 = sphi 0, %s203
      %s218 = sphi 0, %s204
      %s224 = sphi 0, %s226
      %s227 = sphi 0, %s224
      %s228 = sphi 0, %s227
      %s244 = sphi 0, %s228
    $region4: #{tpu_custom_call.1} parent=1 // loop_header_branch
      %23 = sbr.rel (%p21) target = $region8
    $region5: #{tpu_custom_call.1} parent=1 // loop_body
      %s25 = ssub.s32 %s20, 1
      %s26 = ssub.s32 %s20, 2
      %s27 = sadd.s32 %s20, 1
      %s28 = ssub.s32 %s20, %s27
      %p29 = scmp.eq.s32.totalorder %s28, 0
      %s31 = sadd.s32 %s30, 1
      %s32 = scalar_select %p29, %s30, %s31
      %p35 = pneg %p29
      %p36 = scmp.eq.s32.totalorder %s20, 1
      %p37 = por %p35, %p36
      %p38 = scmp.ne.s32.totalorder %s30, %s33
      %p39 = scmp.eq.s32.totalorder %s20, 0
      %p40 = por %p38, %p39
      %p41 = scmp.ne.s32.totalorder %s30, %s33
      %p42 = scmp.eq.s32.totalorder %s25, 1
      %p43 = por %p41, %p42
      %p44 = scmp.ne.s32.totalorder %s33, %s34
      %p45 = scmp.eq.s32.totalorder %s25, 0
      %p46 = por %p44, %p45
      %p47 = scmp.ne.s32.totalorder %s33, %s34
      %p48 = scmp.eq.s32.totalorder %s26, 1
      %p49 = por %p47, %p48
      %p51 = scmp.ne.s32.totalorder %s34, %s50
      %p52 = scmp.eq.s32.totalorder %s26, 0
      %p53 = por %p51, %p52
      %s55 = sadd.s32 %s54, 1
      %p58 = scmp.eq.s32.totalorder %s20, 1
      %p59 = scmp.ne.s32.totalorder %s54, %s56
      %p60 = scmp.eq.s32.totalorder %s20, 0
      %p61 = por %p59, %p60
      %p62 = scmp.ne.s32.totalorder %s54, %s56
      %p63 = scmp.eq.s32.totalorder %s25, 1
      %p64 = por %p62, %p63
      %p65 = scmp.ne.s32.totalorder %s56, %s57
      %p66 = scmp.eq.s32.totalorder %s25, 0
      %p67 = por %p65, %p66
      %p68 = scmp.ne.s32.totalorder %s56, %s57
      %p69 = scmp.eq.s32.totalorder %s26, 1
      %p70 = por %p68, %p69
      %p72 = scmp.ne.s32.totalorder %s57, %s71
      %p73 = scmp.eq.s32.totalorder %s26, 0
      %p74 = por %p72, %p73
      %s76 = sadd.s32 %s75, 1
      %p79 = scmp.eq.s32.totalorder %s20, 1
      %p80 = scmp.ne.s32.totalorder %s75, %s77
      %p81 = scmp.eq.s32.totalorder %s20, 0
      %p82 = por %p80, %p81
      %p83 = scmp.ne.s32.totalorder %s75, %s77
      %p84 = scmp.eq.s32.totalorder %s25, 1
      %p85 = por %p83, %p84
      %p86 = scmp.ne.s32.totalorder %s77, %s78
      %p87 = scmp.eq.s32.totalorder %s25, 0
      %p88 = por %p86, %p87
      %p89 = scmp.ne.s32.totalorder %s77, %s78
      %p90 = scmp.eq.s32.totalorder %s26, 1
      %p91 = por %p89, %p90
      %p93 = scmp.ne.s32.totalorder %s78, %s92
      %p94 = scmp.eq.s32.totalorder %s26, 0
      %p95 = por %p93, %p94
      %s97 = sadd.s32 %s96, 1
      %p100 = scmp.eq.s32.totalorder %s20, 1
      %p101 = scmp.ne.s32.totalorder %s96, %s98
      %p102 = scmp.eq.s32.totalorder %s20, 0
      %p103 = por %p101, %p102
      %p104 = scmp.ne.s32.totalorder %s96, %s98
      %p105 = scmp.eq.s32.totalorder %s25, 1
      %p106 = por %p104, %p105
      %p107 = scmp.ne.s32.totalorder %s98, %s99
      %p108 = scmp.eq.s32.totalorder %s25, 0
      %p109 = por %p107, %p108
      %p110 = scmp.ne.s32.totalorder %s98, %s99
      %p111 = scmp.eq.s32.totalorder %s26, 1
      %p112 = por %p110, %p111
      %p114 = scmp.ne.s32.totalorder %s99, %s113
      %p115 = scmp.eq.s32.totalorder %s26, 0
      %p116 = por %p114, %p115
      %s118 = sadd.s32 %s117, 1
      %p121 = scmp.eq.s32.totalorder %s20, 1
      %p122 = scmp.ne.s32.totalorder %s117, %s119
      %p123 = scmp.eq.s32.totalorder %s20, 0
      %p124 = por %p122, %p123
      %p125 = scmp.ne.s32.totalorder %s117, %s119
      %p126 = scmp.eq.s32.totalorder %s25, 1
      %p127 = por %p125, %p126
      %p128 = scmp.ne.s32.totalorder %s119, %s120
      %p129 = scmp.eq.s32.totalorder %s25, 0
      %p130 = por %p128, %p129
      %p131 = scmp.ne.s32.totalorder %s119, %s120
      %p132 = scmp.eq.s32.totalorder %s26, 1
      %p133 = por %p131, %p132
      %p135 = scmp.ne.s32.totalorder %s120, %s134
      %p136 = scmp.eq.s32.totalorder %s26, 0
      %p137 = por %p135, %p136
      %s139 = sadd.s32 %s138, 1
      %p142 = scmp.eq.s32.totalorder %s20, 1
      %p143 = scmp.ne.s32.totalorder %s138, %s140
      %p144 = scmp.eq.s32.totalorder %s20, 0
      %p145 = por %p143, %p144
      %p146 = scmp.ne.s32.totalorder %s138, %s140
      %p147 = scmp.eq.s32.totalorder %s25, 1
      %p148 = por %p146, %p147
      %p149 = scmp.ne.s32.totalorder %s140, %s141
      %p150 = scmp.eq.s32.totalorder %s25, 0
      %p151 = por %p149, %p150
      %p152 = scmp.ne.s32.totalorder %s140, %s141
      %p153 = scmp.eq.s32.totalorder %s26, 1
      %p154 = por %p152, %p153
      %p156 = scmp.ne.s32.totalorder %s141, %s155
      %p157 = scmp.eq.s32.totalorder %s26, 0
      %p158 = por %p156, %p157
      %s160 = sadd.s32 %s159, 1
      %p163 = scmp.eq.s32.totalorder %s20, 1
      %p164 = scmp.ne.s32.totalorder %s159, %s161
      %p165 = scmp.eq.s32.totalorder %s20, 0
      %p166 = por %p164, %p165
      %p167 = scmp.ne.s32.totalorder %s159, %s161
      %p168 = scmp.eq.s32.totalorder %s25, 1
      %p169 = por %p167, %p168
      %p170 = scmp.ne.s32.totalorder %s161, %s162
      %p171 = scmp.eq.s32.totalorder %s25, 0
      %p172 = por %p170, %p171
      %p173 = scmp.ne.s32.totalorder %s161, %s162
      %p174 = scmp.eq.s32.totalorder %s26, 1
      %p175 = por %p173, %p174
      %p177 = scmp.ne.s32.totalorder %s162, %s176
      %p178 = scmp.eq.s32.totalorder %s26, 0
      %p179 = por %p177, %p178
      %s181 = sadd.s32 %s180, 1
      %p184 = scmp.eq.s32.totalorder %s20, 1
      %p185 = scmp.ne.s32.totalorder %s180, %s182
      %p186 = scmp.eq.s32.totalorder %s20, 0
      %p187 = por %p185, %p186
      %p188 = scmp.ne.s32.totalorder %s180, %s182
      %p189 = scmp.eq.s32.totalorder %s25, 1
      %p190 = por %p188, %p189
      %p191 = scmp.ne.s32.totalorder %s182, %s183
      %p192 = scmp.eq.s32.totalorder %s25, 0
      %p193 = por %p191, %p192
      %p194 = scmp.ne.s32.totalorder %s182, %s183
      %p195 = scmp.eq.s32.totalorder %s26, 1
      %p196 = por %p194, %p195
      %p198 = scmp.ne.s32.totalorder %s183, %s197
      %p199 = scmp.eq.s32.totalorder %s26, 0
      %p200 = por %p198, %p199
      %s202 = sadd.s32 %s201, 1
      %p205 = scmp.eq.s32.totalorder %s20, 1
      %p206 = scmp.ne.s32.totalorder %s201, %s203
      %p207 = scmp.eq.s32.totalorder %s20, 0
      %p208 = por %p206, %p207
      %p209 = scmp.ne.s32.totalorder %s201, %s203
      %p210 = scmp.eq.s32.totalorder %s25, 1
      %p211 = por %p209, %p210
      %p212 = scmp.ne.s32.totalorder %s203, %s204
      %p213 = scmp.eq.s32.totalorder %s25, 0
      %p214 = por %p212, %p213
      %p215 = scmp.ne.s32.totalorder %s203, %s204
      %p216 = scmp.eq.s32.totalorder %s26, 1
      %p217 = por %p215, %p216
      %p219 = scmp.ne.s32.totalorder %s204, %s218
      %p220 = scmp.eq.s32.totalorder %s26, 0
      %p221 = por %p219, %p220
      %s222 = ssub.s32 %s20, %s27
      %p223 = scmp.eq.s32.totalorder %s222, 0
      %s225 = sadd.s32 %s224, 1
      %s226 = scalar_select %p223, %s224, %s225
      %p229 = pneg %p223
      %p230 = scmp.eq.s32.totalorder %s20, 1
      %p231 = por %p229, %p230
      %p232 = scmp.ne.s32.totalorder %s224, %s227
      %p233 = scmp.eq.s32.totalorder %s20, 0
      %p234 = por %p232, %p233
      %p235 = scmp.ne.s32.totalorder %s224, %s227
      %p236 = scmp.eq.s32.totalorder %s25, 1
      %p237 = por %p235, %p236
      %p238 = scmp.ne.s32.totalorder %s227, %s228
      %p239 = scmp.eq.s32.totalorder %s25, 0
      %p240 = por %p238, %p239
      %p241 = scmp.ne.s32.totalorder %s227, %s228
      %p242 = scmp.eq.s32.totalorder %s26, 1
      %p243 = por %p241, %p242
      %p245 = scmp.ne.s32.totalorder %s228, %s244
      %p246 = scmp.eq.s32.totalorder %s26, 0
      %p247 = por %p245, %p246
      %p248 = scmp.le.s32.totalorder 1, %s20
      %p249 = scmp.lt.s32.totalorder %s20, 3
      %p250 = pnand %p248, %p249
      %p251 = pneg %p250
      // Predicated region
      $region9: #{tpu_custom_call.1} parent=5 // pred_check
        _
      $region10: #{tpu_custom_call.1} parent=5 // pred_check_branch
        %253 = sbr.rel (%p250) target = $region12
      $region11: #{tpu_custom_call.1} parent=5 // pred_region
        %s254 = ssub.s32 %s20, 1
        // Predicated region
        $region13: #{tpu_custom_call.1} parent=11 // pred_check
          %p255 = pneg %p67
        $region14: #{tpu_custom_call.1} parent=11 // pred_check_branch
          %257 = sbr.rel (%p255) target = $region16
        $region15: #{tpu_custom_call.1} parent=11 // pred_region
          _
        $region16: #{tpu_custom_call.1} parent=11 // pred_fallthru
          _
        // Predicated region
        $region17: #{tpu_custom_call.1} parent=11 // pred_check
          %p258 = pneg %p88
        $region18: #{tpu_custom_call.1} parent=11 // pred_check_branch
          %260 = sbr.rel (%p258) target = $region20
        $region19: #{tpu_custom_call.1} parent=11 // pred_region
          _
        $region20: #{tpu_custom_call.1} parent=11 // pred_fallthru
          _
        // Predicated region
        $region21: #{tpu_custom_call.1} parent=11 // pred_check
          %p261 = pneg %p109
        $region22: #{tpu_custom_call.1} parent=11 // pred_check_branch
          %263 = sbr.rel (%p261) target = $region24
        $region23: #{tpu_custom_call.1} parent=11 // pred_region
          _
        $region24: #{tpu_custom_call.1} parent=11 // pred_fallthru
          _
        // Predicated region
        $region25: #{tpu_custom_call.1} parent=11 // pred_check
          %p264 = pneg %p130
        $region26: #{tpu_custom_call.1} parent=11 // pred_check_branch
          %266 = sbr.rel (%p264) target = $region28
        $region27: #{tpu_custom_call.1} parent=11 // pred_region
          _
        $region28: #{tpu_custom_call.1} parent=11 // pred_fallthru
          _
        // Predicated region
        $region29: #{tpu_custom_call.1} parent=11 // pred_check
          %p267 = pneg %p151
        $region30: #{tpu_custom_call.1} parent=11 // pred_check_branch
          %269 = sbr.rel (%p267) target = $region32
        $region31: #{tpu_custom_call.1} parent=11 // pred_region
          _
        $region32: #{tpu_custom_call.1} parent=11 // pred_fallthru
          _
        // Predicated region
        $region33: #{tpu_custom_call.1} parent=11 // pred_check
          %p270 = pneg %p172
        $region34: #{tpu_custom_call.1} parent=11 // pred_check_branch
          %272 = sbr.rel (%p270) target = $region36
        $region35: #{tpu_custom_call.1} parent=11 // pred_region
          _
        $region36: #{tpu_custom_call.1} parent=11 // pred_fallthru
          _
        // Predicated region
        $region37: #{tpu_custom_call.1} parent=11 // pred_check
          %p273 = pneg %p193
        $region38: #{tpu_custom_call.1} parent=11 // pred_check_branch
          %275 = sbr.rel (%p273) target = $region40
        $region39: #{tpu_custom_call.1} parent=11 // pred_region
          _
        $region40: #{tpu_custom_call.1} parent=11 // pred_fallthru
          _
        // Predicated region
        $region41: #{tpu_custom_call.1} parent=11 // pred_check
          %p276 = pneg %p214
        $region42: #{tpu_custom_call.1} parent=11 // pred_check_branch
          %278 = sbr.rel (%p276) target = $region44
        $region43: #{tpu_custom_call.1} parent=11 // pred_region
          _
        $region44: #{tpu_custom_call.1} parent=11 // pred_fallthru
          _
      $region12: #{tpu_custom_call.1} parent=5 // pred_fallthru
        _
      %p279 = scmp.lt.s32.totalorder %s20, 2
      // Predicated region
      $region45: #{tpu_custom_call.1} parent=5 // pred_check
        %p280 = pneg %p279
      $region46: #{tpu_custom_call.1} parent=5 // pred_check_branch
        %282 = sbr.rel (%p280) target = $region48
      $region47: #{tpu_custom_call.1} parent=5 // pred_region
        // Predicated region
        $region49: #{tpu_custom_call.1} parent=47 // pred_check
          %p283 = pneg %p40
        $region50: #{tpu_custom_call.1} parent=47 // pred_check_branch
          %285 = sbr.rel (%p283) target = $region52
        $region51: #{tpu_custom_call.1} parent=47 // pred_region
          %s286 = smul.u32 32, %s20
          %p287 = scmp.lt.s32.totalorder %s286, 63
          %s288 = scalar_select %p287, %s286, 63
          %s289 = smul.addr %s288, 8
          %s290 = scalar_lea.vmem %s0, %s289
          %s291 = smul.u32 32, %s20
        $region52: #{tpu_custom_call.1} parent=47 // pred_fallthru
          _
      $region48: #{tpu_custom_call.1} parent=5 // pred_fallthru
        _
      %p292 = scmp.le.s32.totalorder 1, %s20
      %p293 = scmp.lt.s32.totalorder %s20, 3
      %p294 = pnand %p292, %p293
      %p295 = pneg %p294
      // Predicated region
      $region53: #{tpu_custom_call.1} parent=5 // pred_check
        _
      $region54: #{tpu_custom_call.1} parent=5 // pred_check_branch
        %297 = sbr.rel (%p294) target = $region56
      $region55: #{tpu_custom_call.1} parent=5 // pred_region
        %s298 = ssub.s32 %s20, 1
        %s299 = smul.u32 32, %s25
        %p300 = scmp.lt.s32.totalorder %s299, 63
        %s301 = scalar_select %p300, %s299, 63
        %s302 = smul.addr %s301, 8
        %s303 = scalar_lea.vmem %s0, %s302
        %p304 = pneg %p46
        %p305 = pneg %p43
        %p306 = pneg %p67
        %p307 = pneg %p64
        %p308 = pneg %p88
        %p309 = pneg %p85
        %p310 = pneg %p109
        %p311 = pneg %p106
        %p312 = pneg %p130
        %p313 = pneg %p127
        %p314 = pneg %p151
        %p315 = pneg %p148
        %p316 = pneg %p172
        %p317 = pneg %p169
        %p318 = pneg %p193
        %p319 = pneg %p190
        %p320 = pneg %p214
        %p321 = pneg %p211
        %p322 = pneg %p240
        %p323 = pneg %p237
        %s324 = sand.u32 %s227, 1
        %s325 = scalar_lea.sflag [#allocation7], %s324
        %s326 = sand.u32 %s227, 1
        %s327 = scalar_lea.vmem [#allocation6], %s326
        %s328 = smul.u32 32, %s25
        %p329 = scmp.lt.s32.totalorder %s328, 63
        %s330 = scalar_select %p329, %s328, 63
        %s331 = smul.addr %s330, 8
        %s332 = scalar_lea.vmem %s0, %s331
        %s333 = smul.u32 32, %s25
        %v334 = vld [vmem:[%s332] sm:$0xff]
        %v335 = vld [vmem:[%s332 + $0x8] sm:$0xff]
        %v336 = vld [vmem:[%s332 + $0x10] sm:$0xff]
        %v337 = vld [vmem:[%s332 + $0x18] sm:$0xff]
        %v338 = vld [vmem:[%s332 + $0x20] sm:$0xff]
        %v339 = vld [vmem:[%s332 + $0x28] sm:$0xff]
        %v340 = vld [vmem:[%s332 + $0x30] sm:$0xff]
        %v341 = vld [vmem:[%s332 + $0x38] sm:$0xff]
        %v342 = vld [vmem:[%s332 + $0x40] sm:$0xff]
        %v343 = vld [vmem:[%s332 + $0x48] sm:$0xff]
        %v344 = vld [vmem:[%s332 + $0x50] sm:$0xff]
        %v345 = vld [vmem:[%s332 + $0x58] sm:$0xff]
        %v346 = vld [vmem:[%s332 + $0x60] sm:$0xff]
        %v347 = vld [vmem:[%s332 + $0x68] sm:$0xff]
        %v348 = vld [vmem:[%s332 + $0x70] sm:$0xff]
        %v349 = vld [vmem:[%s332 + $0x78] sm:$0xff]
        %v350 = vld [vmem:[%s332 + $0x80] sm:$0xff]
        %v351 = vld [vmem:[%s332 + $0x88] sm:$0xff]
        %v352 = vld [vmem:[%s332 + $0x90] sm:$0xff]
        %v353 = vld [vmem:[%s332 + $0x98] sm:$0xff]
        %v354 = vld [vmem:[%s332 + $0xa0] sm:$0xff]
        %v355 = vld [vmem:[%s332 + $0xa8] sm:$0xff]
        %v356 = vld [vmem:[%s332 + $0xb0] sm:$0xff]
        %v357 = vld [vmem:[%s332 + $0xb8] sm:$0xff]
        %v358 = vld [vmem:[%s332 + $0xc0] sm:$0xff]
        %v359 = vld [vmem:[%s332 + $0xc8] sm:$0xff]
        %v360 = vld [vmem:[%s332 + $0xd0] sm:$0xff]
        %v361 = vld [vmem:[%s332 + $0xd8] sm:$0xff]
        %v362 = vld [vmem:[%s332 + $0xe0] sm:$0xff]
        %v363 = vld [vmem:[%s332 + $0xe8] sm:$0xff]
        %v364 = vld [vmem:[%s332 + $0xf0] sm:$0xff]
        %v365 = vld [vmem:[%s332 + $0xf8] sm:$0xff]
        %v366 = vld [vmem:[%s1] sm:$0xff]
        %v367 = vld [vmem:[%s1 + $0x8] sm:$0xff]
        %v368 = vld [vmem:[%s1 + $0x10] sm:$0xff]
        %v369 = vld [vmem:[%s1 + $0x18] sm:$0xff]
        %v370 = vld [vmem:[%s1 + $0x20] sm:$0xff]
        %v371 = vld [vmem:[%s1 + $0x28] sm:$0xff]
        %v372 = vld [vmem:[%s1 + $0x30] sm:$0xff]
        %v373 = vld [vmem:[%s1 + $0x38] sm:$0xff]
        %v374 = vld [vmem:[%s2] sm:$0x1]
        %v376 = vlaneseq
        %v377 = vshrl.u32 %v376, 7
        %v378 = vsub.s32 0, %v377
        %v379 = vrot.slane %v374, %v378
        %vm381 = vcmask 523264
        %v383 = vsel %vm381, %v334, 0
        %v386 = vsel %vm381, %v335, 0
        %v389 = vsel %vm381, %v336, 0
        %v392 = vsel %vm381, %v337, 0
        %v395 = vsel %vm381, %v338, 0
        %v398 = vsel %vm381, %v339, 0
        %v401 = vsel %vm381, %v340, 0
        %v404 = vsel %vm381, %v341, 0
        %v407 = vsel %vm381, %v342, 0
        %v410 = vsel %vm381, %v343, 0
        %v413 = vsel %vm381, %v344, 0
        %v416 = vsel %vm381, %v345, 0
        %v419 = vsel %vm381, %v346, 0
        %v422 = vsel %vm381, %v347, 0
        %v425 = vsel %vm381, %v348, 0
        %v428 = vsel %vm381, %v349, 0
        %v431 = vsel %vm381, %v350, 0
        %v434 = vsel %vm381, %v351, 0
        %v437 = vsel %vm381, %v352, 0
        %v440 = vsel %vm381, %v353, 0
        %v443 = vsel %vm381, %v354, 0
        %v446 = vsel %vm381, %v355, 0
        %v449 = vsel %vm381, %v356, 0
        %v452 = vsel %vm381, %v357, 0
        %v455 = vsel %vm381, %v358, 0
        %v458 = vsel %vm381, %v359, 0
        %v461 = vsel %vm381, %v360, 0
        %v464 = vsel %vm381, %v361, 0
        %v467 = vsel %vm381, %v362, 0
        %v470 = vsel %vm381, %v363, 0
        %v473 = vsel %vm381, %v364, 0
        %v476 = vsel %vm381, %v365, 0
        %478 = vmatprep.subr.mxu0 0.0
        %479 = vmatpush1.msra.mxu0 %v366
        %480 = vmatprep.subr.mxu0 0.0
        %481 = vmatpush1.msra.mxu0 %v367
        %482 = vmatprep.subr.mxu0 0.0
        %483 = vmatpush1.msra.mxu0 %v368
        %484 = vmatprep.subr.mxu0 0.0
        %485 = vmatpush1.msra.mxu0 %v369
        %486 = vmatprep.subr.mxu0 0.0
        %487 = vmatpush1.msra.mxu0 %v370
        %488 = vmatprep.subr.mxu0 0.0
        %489 = vmatpush1.msra.mxu0 %v371
        %490 = vmatprep.subr.mxu0 0.0
        %491 = vmatpush1.msra.mxu0 %v372
        %492 = vmatprep.subr.mxu0 0.0
        %493 = vmatpush1.msra.mxu0 %v373
        %494 = vmatprep.subr.mxu0 0.0
        %495 = vmatpush1.msra.mxu0 0.0
        %496 = vmatprep.subr.mxu0 0.0
        %497 = vmatpush1.msra.mxu0 0.0
        %498 = vmatprep.subr.mxu0 0.0
        %499 = vmatpush1.msra.mxu0 0.0
        %500 = vmatprep.subr.mxu0 0.0
        %501 = vmatpush1.msra.mxu0 0.0
        %502 = vmatprep.subr.mxu0 0.0
        %503 = vmatpush1.msra.mxu0 0.0
        %504 = vmatprep.subr.mxu0 0.0
        %505 = vmatpush1.msra.mxu0 0.0
        %506 = vmatprep.subr.mxu0 0.0
        %507 = vmatpush1.msra.mxu0 0.0
        %508 = vmatprep.subr.mxu0 0.0
        %509 = vmatpush1.msra.mxu0 0.0
        %510 = vmatprep.subr.mxu0 0.0
        %511 = vmatpush1.msra.mxu0 0.0
        %512 = vmatprep.subr.mxu0 0.0
        %513 = vmatpush1.msra.mxu0 0.0
        %514 = vmatprep.subr.mxu0 0.0
        %515 = vmatpush1.msra.mxu0 0.0
        %516 = vmatprep.subr.mxu0 0.0
        %517 = vmatpush1.msra.mxu0 0.0
        %518 = vmatprep.subr.mxu0 0.0
        %519 = vmatpush1.msra.mxu0 0.0
        %520 = vmatprep.subr.mxu0 0.0
        %521 = vmatpush1.msra.mxu0 0.0
        %522 = vmatprep.subr.mxu0 0.0
        %523 = vmatpush1.msra.mxu0 0.0
        %524 = vmatprep.subr.mxu0 0.0
        %525 = vmatpush1.msra.mxu0 0.0
        %526 = vmatprep.subr.mxu0 0.0
        %527 = vmatpush1.msra.mxu0 0.0
        %528 = vmatprep.subr.mxu0 0.0
        %529 = vmatpush1.msra.mxu0 0.0
        %530 = vmatprep.subr.mxu0 0.0
        %531 = vmatpush1.msra.mxu0 0.0
        %532 = vmatprep.subr.mxu0 0.0
        %533 = vmatpush1.msra.mxu0 0.0
        %534 = vmatprep.subr.mxu0 0.0
        %535 = vmatpush1.msra.mxu0 0.0
        %536 = vmatprep.subr.mxu0 0.0
        %537 = vmatpush1.msra.mxu0 0.0
        %538 = vmatprep.subr.mxu0 0.0
        %539 = vmatpush1.msra.mxu0 0.0
        %540 = vmatprep.subr.mxu0 0.0
        %541 = vmatpush1.msra.mxu0 0.0
        %542 = vmatprep.mubr.f32.mxu0 0.0
        %543 = vmatmul.mubr.f32.gmra.mrb[0].mxu0 %v383
        %v544 = vpop.f32.mrb[0].mxu0
        %v545 = vadd.f32 %v379, %v544
        %v546 = vpop.f32.mrb[0].mxu0
        %547 = vmatprep.mubr.f32.mxu0 0.0
        %548 = vmatmul.mubr.f32.gmra.mrb[0].mxu0 %v386
        %v549 = vpop.f32.mrb[0].mxu0
        %v550 = vadd.f32 %v379, %v549
        %v551 = vpop.f32.mrb[0].mxu0
        %552 = vmatprep.mubr.f32.mxu0 0.0
        %553 = vmatmul.mubr.f32.gmra.mrb[0].mxu0 %v389
        %v554 = vpop.f32.mrb[0].mxu0
        %v555 = vadd.f32 %v379, %v554
        %v556 = vpop.f32.mrb[0].mxu0
        %557 = vmatprep.mubr.f32.mxu0 0.0
        %558 = vmatmul.mubr.f32.gmra.mrb[0].mxu0 %v392
        %v559 = vpop.f32.mrb[0].mxu0
        %v560 = vadd.f32 %v379, %v559
        %v561 = vpop.f32.mrb[0].mxu0
        %562 = vmatprep.mubr.f32.mxu0 0.0
        %563 = vmatmul.mubr.f32.gmra.mrb[0].mxu0 %v395
        %v564 = vpop.f32.mrb[0].mxu0
        %v565 = vadd.f32 %v379, %v564
        %v566 = vpop.f32.mrb[0].mxu0
        %567 = vmatprep.mubr.f32.mxu0 0.0
        %568 = vmatmul.mubr.f32.gmra.mrb[0].mxu0 %v398
        %v569 = vpop.f32.mrb[0].mxu0
        %v570 = vadd.f32 %v379, %v569
        %v571 = vpop.f32.mrb[0].mxu0
        %572 = vmatprep.mubr.f32.mxu0 0.0
        %573 = vmatmul.mubr.f32.gmra.mrb[0].mxu0 %v401
        %v574 = vpop.f32.mrb[0].mxu0
        %v575 = vadd.f32 %v379, %v574
        %v576 = vpop.f32.mrb[0].mxu0
        %577 = vmatprep.mubr.f32.mxu0 0.0
        %578 = vmatmul.mubr.f32.gmra.mrb[0].mxu0 %v404
        %v579 = vpop.f32.mrb[0].mxu0
        %v580 = vadd.f32 %v379, %v579
        %v581 = vpop.f32.mrb[0].mxu0
        %582 = vmatprep.mubr.f32.mxu0 0.0
        %583 = vmatmul.mubr.f32.gmra.mrb[0].mxu0 %v407
        %v584 = vpop.f32.mrb[0].mxu0
        %v585 = vadd.f32 %v379, %v584
        %v586 = vpop.f32.mrb[0].mxu0
        %587 = vmatprep.mubr.f32.mxu0 0.0
        %588 = vmatmul.mubr.f32.gmra.mrb[0].mxu0 %v410
        %v589 = vpop.f32.mrb[0].mxu0
        %v590 = vadd.f32 %v379, %v589
        %v591 = vpop.f32.mrb[0].mxu0
        %592 = vmatprep.mubr.f32.mxu0 0.0
        %593 = vmatmul.mubr.f32.gmra.mrb[0].mxu0 %v413
        %v594 = vpop.f32.mrb[0].mxu0
        %v595 = vadd.f32 %v379, %v594
        %v596 = vpop.f32.mrb[0].mxu0
        %597 = vmatprep.mubr.f32.mxu0 0.0
        %598 = vmatmul.mubr.f32.gmra.mrb[0].mxu0 %v416
        %v599 = vpop.f32.mrb[0].mxu0
        %v600 = vadd.f32 %v379, %v599
        %v601 = vpop.f32.mrb[0].mxu0
        %602 = vmatprep.mubr.f32.mxu0 0.0
        %603 = vmatmul.mubr.f32.gmra.mrb[0].mxu0 %v419
        %v604 = vpop.f32.mrb[0].mxu0
        %v605 = vadd.f32 %v379, %v604
        %v606 = vpop.f32.mrb[0].mxu0
        %607 = vmatprep.mubr.f32.mxu0 0.0
        %608 = vmatmul.mubr.f32.gmra.mrb[0].mxu0 %v422
        %v609 = vpop.f32.mrb[0].mxu0
        %v610 = vadd.f32 %v379, %v609
        %v611 = vpop.f32.mrb[0].mxu0
        %612 = vmatprep.mubr.f32.mxu0 0.0
        %613 = vmatmul.mubr.f32.gmra.mrb[0].mxu0 %v425
        %v614 = vpop.f32.mrb[0].mxu0
        %v615 = vadd.f32 %v379, %v614
        %v616 = vpop.f32.mrb[0].mxu0
        %617 = vmatprep.mubr.f32.mxu0 0.0
        %618 = vmatmul.mubr.f32.gmra.mrb[0].mxu0 %v428
        %v619 = vpop.f32.mrb[0].mxu0
        %v620 = vadd.f32 %v379, %v619
        %v621 = vpop.f32.mrb[0].mxu0
        %622 = vmatprep.mubr.f32.mxu0 0.0
        %623 = vmatmul.mubr.f32.gmra.mrb[0].mxu0 %v431
        %v624 = vpop.f32.mrb[0].mxu0
        %v625 = vadd.f32 %v379, %v624
        %v626 = vpop.f32.mrb[0].mxu0
        %627 = vmatprep.mubr.f32.mxu0 0.0
        %628 = vmatmul.mubr.f32.gmra.mrb[0].mxu0 %v434
        %v629 = vpop.f32.mrb[0].mxu0
        %v630 = vadd.f32 %v379, %v629
        %v631 = vpop.f32.mrb[0].mxu0
        %632 = vmatprep.mubr.f32.mxu0 0.0
        %633 = vmatmul.mubr.f32.gmra.mrb[0].mxu0 %v437
        %v634 = vpop.f32.mrb[0].mxu0
        %v635 = vadd.f32 %v379, %v634
        %v636 = vpop.f32.mrb[0].mxu0
        %637 = vmatprep.mubr.f32.mxu0 0.0
        %638 = vmatmul.mubr.f32.gmra.mrb[0].mxu0 %v440
        %v639 = vpop.f32.mrb[0].mxu0
        %v640 = vadd.f32 %v379, %v639
        %v641 = vpop.f32.mrb[0].mxu0
        %642 = vmatprep.mubr.f32.mxu0 0.0
        %643 = vmatmul.mubr.f32.gmra.mrb[0].mxu0 %v443
        %v644 = vpop.f32.mrb[0].mxu0
        %v645 = vadd.f32 %v379, %v644
        %v646 = vpop.f32.mrb[0].mxu0
        %647 = vmatprep.mubr.f32.mxu0 0.0
        %648 = vmatmul.mubr.f32.gmra.mrb[0].mxu0 %v446
        %v649 = vpop.f32.mrb[0].mxu0
        %v650 = vadd.f32 %v379, %v649
        %v651 = vpop.f32.mrb[0].mxu0
        %652 = vmatprep.mubr.f32.mxu0 0.0
        %653 = vmatmul.mubr.f32.gmra.mrb[0].mxu0 %v449
        %v654 = vpop.f32.mrb[0].mxu0
        %v655 = vadd.f32 %v379, %v654
        %v656 = vpop.f32.mrb[0].mxu0
        %657 = vmatprep.mubr.f32.mxu0 0.0
        %658 = vmatmul.mubr.f32.gmra.mrb[0].mxu0 %v452
        %v659 = vpop.f32.mrb[0].mxu0
        %v660 = vadd.f32 %v379, %v659
        %v661 = vpop.f32.mrb[0].mxu0
        %662 = vmatprep.mubr.f32.mxu0 0.0
        %663 = vmatmul.mubr.f32.gmra.mrb[0].mxu0 %v455
        %v664 = vpop.f32.mrb[0].mxu0
        %v665 = vadd.f32 %v379, %v664
        %v666 = vpop.f32.mrb[0].mxu0
        %667 = vmatprep.mubr.f32.mxu0 0.0
        %668 = vmatmul.mubr.f32.gmra.mrb[0].mxu0 %v458
        %v669 = vpop.f32.mrb[0].mxu0
        %v670 = vadd.f32 %v379, %v669
        %v671 = vpop.f32.mrb[0].mxu0
        %672 = vmatprep.mubr.f32.mxu0 0.0
        %673 = vmatmul.mubr.f32.gmra.mrb[0].mxu0 %v461
        %v674 = vpop.f32.mrb[0].mxu0
        %v675 = vadd.f32 %v379, %v674
        %v676 = vpop.f32.mrb[0].mxu0
        %677 = vmatprep.mubr.f32.mxu0 0.0
        %678 = vmatmul.mubr.f32.gmra.mrb[0].mxu0 %v464
        %v679 = vpop.f32.mrb[0].mxu0
        %v680 = vadd.f32 %v379, %v679
        %v681 = vpop.f32.mrb[0].mxu0
        %682 = vmatprep.mubr.f32.mxu0 0.0
        %683 = vmatmul.mubr.f32.gmra.mrb[0].mxu0 %v467
        %v684 = vpop.f32.mrb[0].mxu0
        %v685 = vadd.f32 %v379, %v684
        %v686 = vpop.f32.mrb[0].mxu0
        %687 = vmatprep.mubr.f32.mxu0 0.0
        %688 = vmatmul.mubr.f32.gmra.mrb[0].mxu0 %v470
        %v689 = vpop.f32.mrb[0].mxu0
        %v690 = vadd.f32 %v379, %v689
        %v691 = vpop.f32.mrb[0].mxu0
        %692 = vmatprep.mubr.f32.mxu0 0.0
        %693 = vmatmul.mubr.f32.gmra.mrb[0].mxu0 %v473
        %v694 = vpop.f32.mrb[0].mxu0
        %v695 = vadd.f32 %v379, %v694
        %v696 = vpop.f32.mrb[0].mxu0
        %697 = vmatprep.mubr.f32.mxu0 0.0
        %698 = vmatmul.mubr.f32.gmra.mrb[0].mxu0 %v476
        %v699 = vpop.f32.mrb[0].mxu0
        %v700 = vadd.f32 %v379, %v699
        %v701 = vpop.f32.mrb[0].mxu0
        %702 = vdwg.mxu0
        %v703 = vmul.f32 %v545, 0.2
        %v704 = vmul.f32 %v550, 0.2
        %v705 = vmul.f32 %v555, 0.2
        %v706 = vmul.f32 %v560, 0.2
        %v707 = vmul.f32 %v565, 0.2
        %v708 = vmul.f32 %v570, 0.2
        %v709 = vmul.f32 %v575, 0.2
        %v710 = vmul.f32 %v580, 0.2
        %v711 = vmul.f32 %v585, 0.2
        %v712 = vmul.f32 %v590, 0.2
        %v713 = vmul.f32 %v595, 0.2
        %v714 = vmul.f32 %v600, 0.2
        %v715 = vmul.f32 %v605, 0.2
        %v716 = vmul.f32 %v610, 0.2
        %v717 = vmul.f32 %v615, 0.2
        %v718 = vmul.f32 %v620, 0.2
        %v719 = vmul.f32 %v625, 0.2
        %v720 = vmul.f32 %v630, 0.2
        %v721 = vmul.f32 %v635, 0.2
        %v722 = vmul.f32 %v640, 0.2
        %v723 = vmul.f32 %v645, 0.2
        %v724 = vmul.f32 %v650, 0.2
        %v725 = vmul.f32 %v655, 0.2
        %v726 = vmul.f32 %v660, 0.2
        %v727 = vmul.f32 %v665, 0.2
        %v728 = vmul.f32 %v670, 0.2
        %v729 = vmul.f32 %v675, 0.2
        %v730 = vmul.f32 %v680, 0.2
        %v731 = vmul.f32 %v685, 0.2
        %v732 = vmul.f32 %v690, 0.2
        %v733 = vmul.f32 %v695, 0.2
        %v734 = vmul.f32 %v700, 0.2
        %v735 = vmax.f32 %v545, %v703
        %v736 = vmax.f32 %v550, %v704
        %v737 = vmax.f32 %v555, %v705
        %v738 = vmax.f32 %v560, %v706
        %v739 = vmax.f32 %v565, %v707
        %v740 = vmax.f32 %v570, %v708
        %v741 = vmax.f32 %v575, %v709
        %v742 = vmax.f32 %v580, %v710
        %v743 = vmax.f32 %v585, %v711
        %v744 = vmax.f32 %v590, %v712
        %v745 = vmax.f32 %v595, %v713
        %v746 = vmax.f32 %v600, %v714
        %v747 = vmax.f32 %v605, %v715
        %v748 = vmax.f32 %v610, %v716
        %v749 = vmax.f32 %v615, %v717
        %v750 = vmax.f32 %v620, %v718
        %v751 = vmax.f32 %v625, %v719
        %v752 = vmax.f32 %v630, %v720
        %v753 = vmax.f32 %v635, %v721
        %v754 = vmax.f32 %v640, %v722
        %v755 = vmax.f32 %v645, %v723
        %v756 = vmax.f32 %v650, %v724
        %v757 = vmax.f32 %v655, %v725
        %v758 = vmax.f32 %v660, %v726
        %v759 = vmax.f32 %v665, %v727
        %v760 = vmax.f32 %v670, %v728
        %v761 = vmax.f32 %v675, %v729
        %v762 = vmax.f32 %v680, %v730
        %v763 = vmax.f32 %v685, %v731
        %v764 = vmax.f32 %v690, %v732
        %v765 = vmax.f32 %v695, %v733
        %v766 = vmax.f32 %v700, %v734
        %vm767 = vcmask 64512
        %768 = vst.msk [vmem:[#allocation2] sm:$0xff] %vm767, 0.0
        %vm769 = vcmask 58368
        %770 = vst.msk [vmem:[#allocation2 + $0x8] sm:$0x3] %vm769, 0.0
        %771 = vst.msk [vmem:[#allocation2 + $0xa0] sm:$0xff] %vm767, 0.0
        %772 = vst.msk [vmem:[#allocation2 + $0xa8] sm:$0x3] %vm769, 0.0
        %773 = vst.msk [vmem:[#allocation2 + $0x140] sm:$0xff] %vm767, 0.0
        %774 = vst.msk [vmem:[#allocation2 + $0x148] sm:$0x3] %vm769, 0.0
        %775 = vst.msk [vmem:[#allocation2 + $0x1e0] sm:$0xff] %vm767, 0.0
        %776 = vst.msk [vmem:[#allocation2 + $0x1e8] sm:$0x3] %vm769, 0.0
        %s777 = scalar_lea.vmem [#allocation2], 144
        %778 = vst.msk [vmem:[%s777] sm:$0xff] %vm767, 0.0
        %779 = vst.msk [vmem:[%s777 + $0x8] sm:$0x3] %vm769, 0.0
        %780 = vst.msk [vmem:[%s777 + $0xa0] sm:$0xff] %vm767, 0.0
        %781 = vst.msk [vmem:[%s777 + $0xa8] sm:$0x3] %vm769, 0.0
        %782 = vst.msk [vmem:[%s777 + $0x140] sm:$0xff] %vm767, 0.0
        %783 = vst.msk [vmem:[%s777 + $0x148] sm:$0x3] %vm769, 0.0
        %784 = vst.msk [vmem:[%s777 + $0x1e0] sm:$0xff] %vm767, 0.0
        %785 = vst.msk [vmem:[%s777 + $0x1e8] sm:$0x3] %vm769, 0.0
        %s786 = scalar_lea.vmem [#allocation2], 16
        %vm787 = vcmask 57344
        %788 = vst.msk [vmem:[%s786] sm:$0x1] %vm787, 0.0
        %789 = vst.msk [vmem:[%s786 + $0x10] sm:$0x1] %vm787, 0.0
        %790 = vst.msk [vmem:[%s786 + $0x20] sm:$0x1] %vm787, 0.0
        %791 = vst.msk [vmem:[%s786 + $0x30] sm:$0x1] %vm787, 0.0
        %792 = vst.msk [vmem:[%s786 + $0x40] sm:$0x1] %vm787, 0.0
        %793 = vst.msk [vmem:[%s786 + $0x50] sm:$0x1] %vm787, 0.0
        %794 = vst.msk [vmem:[%s786 + $0x60] sm:$0x1] %vm787, 0.0
        %795 = vst.msk [vmem:[%s786 + $0x70] sm:$0x1] %vm787, 0.0
        %796 = vst.msk [vmem:[%s786 + $0xa0] sm:$0x1] %vm787, 0.0
        %797 = vst.msk [vmem:[%s786 + $0xb0] sm:$0x1] %vm787, 0.0
        %798 = vst.msk [vmem:[%s786 + $0xc0] sm:$0x1] %vm787, 0.0
        %799 = vst.msk [vmem:[%s786 + $0xd0] sm:$0x1] %vm787, 0.0
        %800 = vst.msk [vmem:[%s786 + $0xe0] sm:$0x1] %vm787, 0.0
        %801 = vst.msk [vmem:[%s786 + $0xf0] sm:$0x1] %vm787, 0.0
        %802 = vst.msk [vmem:[%s786 + $0x100] sm:$0x1] %vm787, 0.0
        %803 = vst.msk [vmem:[%s786 + $0x110] sm:$0x1] %vm787, 0.0
        %804 = vst.msk [vmem:[%s786 + $0x140] sm:$0x1] %vm787, 0.0
        %805 = vst.msk [vmem:[%s786 + $0x150] sm:$0x1] %vm787, 0.0
        %806 = vst.msk [vmem:[%s786 + $0x160] sm:$0x1] %vm787, 0.0
        %807 = vst.msk [vmem:[%s786 + $0x170] sm:$0x1] %vm787, 0.0
        %808 = vst.msk [vmem:[%s786 + $0x180] sm:$0x1] %vm787, 0.0
        %809 = vst.msk [vmem:[%s786 + $0x190] sm:$0x1] %vm787, 0.0
        %810 = vst.msk [vmem:[%s786 + $0x1a0] sm:$0x1] %vm787, 0.0
        %811 = vst.msk [vmem:[%s786 + $0x1b0] sm:$0x1] %vm787, 0.0
        %812 = vst.msk [vmem:[%s786 + $0x1e0] sm:$0x1] %vm787, 0.0
        %813 = vst.msk [vmem:[%s786 + $0x1f0] sm:$0x1] %vm787, 0.0
        %814 = vst.msk [vmem:[%s786 + $0x200] sm:$0x1] %vm787, 0.0
        %815 = vst.msk [vmem:[%s786 + $0x210] sm:$0x1] %vm787, 0.0
        %816 = vst.msk [vmem:[%s786 + $0x220] sm:$0x1] %vm787, 0.0
        %817 = vst.msk [vmem:[%s786 + $0x230] sm:$0x1] %vm787, 0.0
        %818 = vst.msk [vmem:[%s786 + $0x240] sm:$0x1] %vm787, 0.0
        %819 = vst.msk [vmem:[%s786 + $0x250] sm:$0x1] %vm787, 0.0
        %820 = vst.msk [vmem:[%s786 + $0x9] sm:$0x1] %vm787, 0.0
        %821 = vst.msk [vmem:[%s786 + $0x19] sm:$0x1] %vm787, 0.0
        %822 = vst.msk [vmem:[%s786 + $0x29] sm:$0x1] %vm787, 0.0
        %823 = vst.msk [vmem:[%s786 + $0x39] sm:$0x1] %vm787, 0.0
        %824 = vst.msk [vmem:[%s786 + $0x49] sm:$0x1] %vm787, 0.0
        %825 = vst.msk [vmem:[%s786 + $0x59] sm:$0x1] %vm787, 0.0
        %826 = vst.msk [vmem:[%s786 + $0x69] sm:$0x1] %vm787, 0.0
        %827 = vst.msk [vmem:[%s786 + $0x79] sm:$0x1] %vm787, 0.0
        %828 = vst.msk [vmem:[%s786 + $0xa9] sm:$0x1] %vm787, 0.0
        %829 = vst.msk [vmem:[%s786 + $0xb9] sm:$0x1] %vm787, 0.0
        %830 = vst.msk [vmem:[%s786 + $0xc9] sm:$0x1] %vm787, 0.0
        %831 = vst.msk [vmem:[%s786 + $0xd9] sm:$0x1] %vm787, 0.0
        %832 = vst.msk [vmem:[%s786 + $0xe9] sm:$0x1] %vm787, 0.0
        %833 = vst.msk [vmem:[%s786 + $0xf9] sm:$0x1] %vm787, 0.0
        %834 = vst.msk [vmem:[%s786 + $0x109] sm:$0x1] %vm787, 0.0
        %835 = vst.msk [vmem:[%s786 + $0x119] sm:$0x1] %vm787, 0.0
        %836 = vst.msk [vmem:[%s786 + $0x149] sm:$0x1] %vm787, 0.0
        %837 = vst.msk [vmem:[%s786 + $0x159] sm:$0x1] %vm787, 0.0
        %838 = vst.msk [vmem:[%s786 + $0x169] sm:$0x1] %vm787, 0.0
        %839 = vst.msk [vmem:[%s786 + $0x179] sm:$0x1] %vm787, 0.0
        %840 = vst.msk [vmem:[%s786 + $0x189] sm:$0x1] %vm787, 0.0
        %841 = vst.msk [vmem:[%s786 + $0x199] sm:$0x1] %vm787, 0.0
        %842 = vst.msk [vmem:[%s786 + $0x1a9] sm:$0x1] %vm787, 0.0
        %843 = vst.msk [vmem:[%s786 + $0x1b9] sm:$0x1] %vm787, 0.0
        %844 = vst.msk [vmem:[%s786 + $0x1e9] sm:$0x1] %vm787, 0.0
        %845 = vst.msk [vmem:[%s786 + $0x1f9] sm:$0x1] %vm787, 0.0
        %846 = vst.msk [vmem:[%s786 + $0x209] sm:$0x1] %vm787, 0.0
        %847 = vst.msk [vmem:[%s786 + $0x219] sm:$0x1] %vm787, 0.0
        %848 = vst.msk [vmem:[%s786 + $0x229] sm:$0x1] %vm787, 0.0
        %849 = vst.msk [vmem:[%s786 + $0x239] sm:$0x1] %vm787, 0.0
        %850 = vst.msk [vmem:[%s786 + $0x249] sm:$0x1] %vm787, 0.0
        %851 = vst.msk [vmem:[%s786 + $0x259] sm:$0x1] %vm787, 0.0
        %852 = vst.msk [vmem:[%s786 + $0x1] sm:$0xff] %vm767, %v735
        %853 = vst.msk [vmem:[%s786 + $0x11] sm:$0xff] %vm767, %v736
        %854 = vst.msk [vmem:[%s786 + $0x21] sm:$0xff] %vm767, %v737
        %855 = vst.msk [vmem:[%s786 + $0x31] sm:$0xff] %vm767, %v738
        %856 = vst.msk [vmem:[%s786 + $0x41] sm:$0xff] %vm767, %v739
        %857 = vst.msk [vmem:[%s786 + $0x51] sm:$0xff] %vm767, %v740
        %858 = vst.msk [vmem:[%s786 + $0x61] sm:$0xff] %vm767, %v741
        %859 = vst.msk [vmem:[%s786 + $0x71] sm:$0xff] %vm767, %v742
        %860 = vst.msk [vmem:[%s786 + $0xa1] sm:$0xff] %vm767, %v743
        %861 = vst.msk [vmem:[%s786 + $0xb1] sm:$0xff] %vm767, %v744
        %862 = vst.msk [vmem:[%s786 + $0xc1] sm:$0xff] %vm767, %v745
        %863 = vst.msk [vmem:[%s786 + $0xd1] sm:$0xff] %vm767, %v746
        %864 = vst.msk [vmem:[%s786 + $0xe1] sm:$0xff] %vm767, %v747
        %865 = vst.msk [vmem:[%s786 + $0xf1] sm:$0xff] %vm767, %v748
        %866 = vst.msk [vmem:[%s786 + $0x101] sm:$0xff] %vm767, %v749
        %867 = vst.msk [vmem:[%s786 + $0x111] sm:$0xff] %vm767, %v750
        %868 = vst.msk [vmem:[%s786 + $0x141] sm:$0xff] %vm767, %v751
        %869 = vst.msk [vmem:[%s786 + $0x151] sm:$0xff] %vm767, %v752
        %870 = vst.msk [vmem:[%s786 + $0x161] sm:$0xff] %vm767, %v753
        %871 = vst.msk [vmem:[%s786 + $0x171] sm:$0xff] %vm767, %v754
        %872 = vst.msk [vmem:[%s786 + $0x181] sm:$0xff] %vm767, %v755
        %873 = vst.msk [vmem:[%s786 + $0x191] sm:$0xff] %vm767, %v756
        %874 = vst.msk [vmem:[%s786 + $0x1a1] sm:$0xff] %vm767, %v757
        %875 = vst.msk [vmem:[%s786 + $0x1b1] sm:$0xff] %vm767, %v758
        %876 = vst.msk [vmem:[%s786 + $0x1e1] sm:$0xff] %vm767, %v759
        %877 = vst.msk [vmem:[%s786 + $0x1f1] sm:$0xff] %vm767, %v760
        %878 = vst.msk [vmem:[%s786 + $0x201] sm:$0xff] %vm767, %v761
        %879 = vst.msk [vmem:[%s786 + $0x211] sm:$0xff] %vm767, %v762
        %880 = vst.msk [vmem:[%s786 + $0x221] sm:$0xff] %vm767, %v763
        %881 = vst.msk [vmem:[%s786 + $0x231] sm:$0xff] %vm767, %v764
        %882 = vst.msk [vmem:[%s786 + $0x241] sm:$0xff] %vm767, %v765
        %883 = vst.msk [vmem:[%s786 + $0x251] sm:$0xff] %vm767, %v766
        %v884 = vld [vmem:[#allocation2] sm:$0xff]
        %v885 = vld [vmem:[#allocation2 + $0x10] sm:$0xff]
        %v886 = vld [vmem:[#allocation2 + $0x20] sm:$0xff]
        %v887 = vld [vmem:[#allocation2 + $0x30] sm:$0xff]
        %v888 = vld [vmem:[#allocation2 + $0x40] sm:$0xff]
        %v889 = vld [vmem:[#allocation2 + $0x50] sm:$0xff]
        %v890 = vld [vmem:[#allocation2 + $0x60] sm:$0xff]
        %v891 = vld [vmem:[#allocation2 + $0x70] sm:$0xff]
        %v892 = vld [vmem:[#allocation2 + $0xa0] sm:$0xff]
        %v893 = vld [vmem:[#allocation2 + $0xb0] sm:$0xff]
        %v894 = vld [vmem:[#allocation2 + $0xc0] sm:$0xff]
        %v895 = vld [vmem:[#allocation2 + $0xd0] sm:$0xff]
        %v896 = vld [vmem:[#allocation2 + $0xe0] sm:$0xff]
        %v897 = vld [vmem:[#allocation2 + $0xf0] sm:$0xff]
        %v898 = vld [vmem:[#allocation2 + $0x100] sm:$0xff]
        %v899 = vld [vmem:[#allocation2 + $0x110] sm:$0xff]
        %v900 = vld [vmem:[#allocation2 + $0x140] sm:$0xff]
        %v901 = vld [vmem:[#allocation2 + $0x150] sm:$0xff]
        %v902 = vld [vmem:[#allocation2 + $0x160] sm:$0xff]
        %v903 = vld [vmem:[#allocation2 + $0x170] sm:$0xff]
        %v904 = vld [vmem:[#allocation2 + $0x180] sm:$0xff]
        %v905 = vld [vmem:[#allocation2 + $0x190] sm:$0xff]
        %v906 = vld [vmem:[#allocation2 + $0x1a0] sm:$0xff]
        %v907 = vld [vmem:[#allocation2 + $0x1b0] sm:$0xff]
        %v908 = vld [vmem:[#allocation2 + $0x1e0] sm:$0xff]
        %v909 = vld [vmem:[#allocation2 + $0x1f0] sm:$0xff]
        %v910 = vld [vmem:[#allocation2 + $0x200] sm:$0xff]
        %v911 = vld [vmem:[#allocation2 + $0x210] sm:$0xff]
        %v912 = vld [vmem:[#allocation2 + $0x220] sm:$0xff]
        %v913 = vld [vmem:[#allocation2 + $0x230] sm:$0xff]
        %v914 = vld [vmem:[#allocation2 + $0x240] sm:$0xff]
        %v915 = vld [vmem:[#allocation2 + $0x250] sm:$0xff]
        %v916 = vld [vmem:[#allocation2 + $0x1] sm:$0xff]
        %v917 = vld [vmem:[#allocation2 + $0x11] sm:$0xff]
        %v918 = vld [vmem:[#allocation2 + $0x21] sm:$0xff]
        %v919 = vld [vmem:[#allocation2 + $0x31] sm:$0xff]
        %v920 = vld [vmem:[#allocation2 + $0x41] sm:$0xff]
        %v921 = vld [vmem:[#allocation2 + $0x51] sm:$0xff]
        %v922 = vld [vmem:[#allocation2 + $0x61] sm:$0xff]
        %v923 = vld [vmem:[#allocation2 + $0x71] sm:$0xff]
        %v924 = vld [vmem:[#allocation2 + $0xa1] sm:$0xff]
        %v925 = vld [vmem:[#allocation2 + $0xb1] sm:$0xff]
        %v926 = vld [vmem:[#allocation2 + $0xc1] sm:$0xff]
        %v927 = vld [vmem:[#allocation2 + $0xd1] sm:$0xff]
        %v928 = vld [vmem:[#allocation2 + $0xe1] sm:$0xff]
        %v929 = vld [vmem:[#allocation2 + $0xf1] sm:$0xff]
        %v930 = vld [vmem:[#allocation2 + $0x101] sm:$0xff]
        %v931 = vld [vmem:[#allocation2 + $0x111] sm:$0xff]
        %v932 = vld [vmem:[#allocation2 + $0x141] sm:$0xff]
        %v933 = vld [vmem:[#allocation2 + $0x151] sm:$0xff]
        %v934 = vld [vmem:[#allocation2 + $0x161] sm:$0xff]
        %v935 = vld [vmem:[#allocation2 + $0x171] sm:$0xff]
        %v936 = vld [vmem:[#allocation2 + $0x181] sm:$0xff]
        %v937 = vld [vmem:[#allocation2 + $0x191] sm:$0xff]
        %v938 = vld [vmem:[#allocation2 + $0x1a1] sm:$0xff]
        %v939 = vld [vmem:[#allocation2 + $0x1b1] sm:$0xff]
        %v940 = vld [vmem:[#allocation2 + $0x1e1] sm:$0xff]
        %v941 = vld [vmem:[#allocation2 + $0x1f1] sm:$0xff]
        %v942 = vld [vmem:[#allocation2 + $0x201] sm:$0xff]
        %v943 = vld [vmem:[#allocation2 + $0x211] sm:$0xff]
        %v944 = vld [vmem:[#allocation2 + $0x221] sm:$0xff]
        %v945 = vld [vmem:[#allocation2 + $0x231] sm:$0xff]
        %v946 = vld [vmem:[#allocation2 + $0x241] sm:$0xff]
        %v947 = vld [vmem:[#allocation2 + $0x251] sm:$0xff]
        %v948 = vld [vmem:[#allocation2 + $0x2] sm:$0xff]
        %v949 = vld [vmem:[#allocation2 + $0x12] sm:$0xff]
        %v950 = vld [vmem:[#allocation2 + $0x22] sm:$0xff]
        %v951 = vld [vmem:[#allocation2 + $0x32] sm:$0xff]
        %v952 = vld [vmem:[#allocation2 + $0x42] sm:$0xff]
        %v953 = vld [vmem:[#allocation2 + $0x52] sm:$0xff]
        %v954 = vld [vmem:[#allocation2 + $0x62] sm:$0xff]
        %v955 = vld [vmem:[#allocation2 + $0x72] sm:$0xff]
        %v956 = vld [vmem:[#allocation2 + $0xa2] sm:$0xff]
        %v957 = vld [vmem:[#allocation2 + $0xb2] sm:$0xff]
        %v958 = vld [vmem:[#allocation2 + $0xc2] sm:$0xff]
        %v959 = vld [vmem:[#allocation2 + $0xd2] sm:$0xff]
        %v960 = vld [vmem:[#allocation2 + $0xe2] sm:$0xff]
        %v961 = vld [vmem:[#allocation2 + $0xf2] sm:$0xff]
        %v962 = vld [vmem:[#allocation2 + $0x102] sm:$0xff]
        %v963 = vld [vmem:[#allocation2 + $0x112] sm:$0xff]
        %v964 = vld [vmem:[#allocation2 + $0x142] sm:$0xff]
        %v965 = vld [vmem:[#allocation2 + $0x152] sm:$0xff]
        %v966 = vld [vmem:[#allocation2 + $0x162] sm:$0xff]
        %v967 = vld [vmem:[#allocation2 + $0x172] sm:$0xff]
        %v968 = vld [vmem:[#allocation2 + $0x182] sm:$0xff]
        %v969 = vld [vmem:[#allocation2 + $0x192] sm:$0xff]
        %v970 = vld [vmem:[#allocation2 + $0x1a2] sm:$0xff]
        %v971 = vld [vmem:[#allocation2 + $0x1b2] sm:$0xff]
        %v972 = vld [vmem:[#allocation2 + $0x1e2] sm:$0xff]
        %v973 = vld [vmem:[#allocation2 + $0x1f2] sm:$0xff]
        %v974 = vld [vmem:[#allocation2 + $0x202] sm:$0xff]
        %v975 = vld [vmem:[#allocation2 + $0x212] sm:$0xff]
        %v976 = vld [vmem:[#allocation2 + $0x222] sm:$0xff]
        %v977 = vld [vmem:[#allocation2 + $0x232] sm:$0xff]
        %v978 = vld [vmem:[#allocation2 + $0x242] sm:$0xff]
        %v979 = vld [vmem:[#allocation2 + $0x252] sm:$0xff]
        %v980 = vld [vmem:[%s786] sm:$0xff]
        %v981 = vld [vmem:[%s786 + $0x10] sm:$0xff]
        %v982 = vld [vmem:[%s786 + $0x20] sm:$0xff]
        %v983 = vld [vmem:[%s786 + $0x30] sm:$0xff]
        %v984 = vld [vmem:[%s786 + $0x40] sm:$0xff]
        %v985 = vld [vmem:[%s786 + $0x50] sm:$0xff]
        %v986 = vld [vmem:[%s786 + $0x60] sm:$0xff]
        %v987 = vld [vmem:[%s786 + $0x70] sm:$0xff]
        %v988 = vld [vmem:[%s786 + $0xa0] sm:$0xff]
        %v989 = vld [vmem:[%s786 + $0xb0] sm:$0xff]
        %v990 = vld [vmem:[%s786 + $0xc0] sm:$0xff]
        %v991 = vld [vmem:[%s786 + $0xd0] sm:$0xff]
        %v992 = vld [vmem:[%s786 + $0xe0] sm:$0xff]
        %v993 = vld [vmem:[%s786 + $0xf0] sm:$0xff]
        %v994 = vld [vmem:[%s786 + $0x100] sm:$0xff]
        %v995 = vld [vmem:[%s786 + $0x110] sm:$0xff]
        %v996 = vld [vmem:[%s786 + $0x140] sm:$0xff]
        %v997 = vld [vmem:[%s786 + $0x150] sm:$0xff]
        %v998 = vld [vmem:[%s786 + $0x160] sm:$0xff]
        %v999 = vld [vmem:[%s786 + $0x170] sm:$0xff]
        %v1000 = vld [vmem:[%s786 + $0x180] sm:$0xff]
        %v1001 = vld [vmem:[%s786 + $0x190] sm:$0xff]
        %v1002 = vld [vmem:[%s786 + $0x1a0] sm:$0xff]
        %v1003 = vld [vmem:[%s786 + $0x1b0] sm:$0xff]
        %v1004 = vld [vmem:[%s786 + $0x1e0] sm:$0xff]
        %v1005 = vld [vmem:[%s786 + $0x1f0] sm:$0xff]
        %v1006 = vld [vmem:[%s786 + $0x200] sm:$0xff]
        %v1007 = vld [vmem:[%s786 + $0x210] sm:$0xff]
        %v1008 = vld [vmem:[%s786 + $0x220] sm:$0xff]
        %v1009 = vld [vmem:[%s786 + $0x230] sm:$0xff]
        %v1010 = vld [vmem:[%s786 + $0x240] sm:$0xff]
        %v1011 = vld [vmem:[%s786 + $0x250] sm:$0xff]
        %v1012 = vld [vmem:[%s786 + $0x1] sm:$0xff]
        %v1013 = vld [vmem:[%s786 + $0x11] sm:$0xff]
        %v1014 = vld [vmem:[%s786 + $0x21] sm:$0xff]
        %v1015 = vld [vmem:[%s786 + $0x31] sm:$0xff]
        %v1016 = vld [vmem:[%s786 + $0x41] sm:$0xff]
        %v1017 = vld [vmem:[%s786 + $0x51] sm:$0xff]
        %v1018 = vld [vmem:[%s786 + $0x61] sm:$0xff]
        %v1019 = vld [vmem:[%s786 + $0x71] sm:$0xff]
        %v1020 = vld [vmem:[%s786 + $0xa1] sm:$0xff]
        %v1021 = vld [vmem:[%s786 + $0xb1] sm:$0xff]
        %v1022 = vld [vmem:[%s786 + $0xc1] sm:$0xff]
        %v1023 = vld [vmem:[%s786 + $0xd1] sm:$0xff]
        %v1024 = vld [vmem:[%s786 + $0xe1] sm:$0xff]
        %v1025 = vld [vmem:[%s786 + $0xf1] sm:$0xff]
        %v1026 = vld [vmem:[%s786 + $0x101] sm:$0xff]
        %v1027 = vld [vmem:[%s786 + $0x111] sm:$0xff]
        %v1028 = vld [vmem:[%s786 + $0x141] sm:$0xff]
        %v1029 = vld [vmem:[%s786 + $0x151] sm:$0xff]
        %v1030 = vld [vmem:[%s786 + $0x161] sm:$0xff]
        %v1031 = vld [vmem:[%s786 + $0x171] sm:$0xff]
        %v1032 = vld [vmem:[%s786 + $0x181] sm:$0xff]
        %v1033 = vld [vmem:[%s786 + $0x191] sm:$0xff]
        %v1034 = vld [vmem:[%s786 + $0x1a1] sm:$0xff]
        %v1035 = vld [vmem:[%s786 + $0x1b1] sm:$0xff]
        %v1036 = vld [vmem:[%s786 + $0x1e1] sm:$0xff]
        %v1037 = vld [vmem:[%s786 + $0x1f1] sm:$0xff]
        %v1038 = vld [vmem:[%s786 + $0x201] sm:$0xff]
        %v1039 = vld [vmem:[%s786 + $0x211] sm:$0xff]
        %v1040 = vld [vmem:[%s786 + $0x221] sm:$0xff]
        %v1041 = vld [vmem:[%s786 + $0x231] sm:$0xff]
        %v1042 = vld [vmem:[%s786 + $0x241] sm:$0xff]
        %v1043 = vld [vmem:[%s786 + $0x251] sm:$0xff]
        %v1044 = vld [vmem:[%s786 + $0x2] sm:$0xff]
        %v1045 = vld [vmem:[%s786 + $0x12] sm:$0xff]
        %v1046 = vld [vmem:[%s786 + $0x22] sm:$0xff]
        %v1047 = vld [vmem:[%s786 + $0x32] sm:$0xff]
        %v1048 = vld [vmem:[%s786 + $0x42] sm:$0xff]
        %v1049 = vld [vmem:[%s786 + $0x52] sm:$0xff]
        %v1050 = vld [vmem:[%s786 + $0x62] sm:$0xff]
        %v1051 = vld [vmem:[%s786 + $0x72] sm:$0xff]
        %v1052 = vld [vmem:[%s786 + $0xa2] sm:$0xff]
        %v1053 = vld [vmem:[%s786 + $0xb2] sm:$0xff]
        %v1054 = vld [vmem:[%s786 + $0xc2] sm:$0xff]
        %v1055 = vld [vmem:[%s786 + $0xd2] sm:$0xff]
        %v1056 = vld [vmem:[%s786 + $0xe2] sm:$0xff]
        %v1057 = vld [vmem:[%s786 + $0xf2] sm:$0xff]
        %v1058 = vld [vmem:[%s786 + $0x102] sm:$0xff]
        %v1059 = vld [vmem:[%s786 + $0x112] sm:$0xff]
        %v1060 = vld [vmem:[%s786 + $0x142] sm:$0xff]
        %v1061 = vld [vmem:[%s786 + $0x152] sm:$0xff]
        %v1062 = vld [vmem:[%s786 + $0x162] sm:$0xff]
        %v1063 = vld [vmem:[%s786 + $0x172] sm:$0xff]
        %v1064 = vld [vmem:[%s786 + $0x182] sm:$0xff]
        %v1065 = vld [vmem:[%s786 + $0x192] sm:$0xff]
        %v1066 = vld [vmem:[%s786 + $0x1a2] sm:$0xff]
        %v1067 = vld [vmem:[%s786 + $0x1b2] sm:$0xff]
        %v1068 = vld [vmem:[%s786 + $0x1e2] sm:$0xff]
        %v1069 = vld [vmem:[%s786 + $0x1f2] sm:$0xff]
        %v1070 = vld [vmem:[%s786 + $0x202] sm:$0xff]
        %v1071 = vld [vmem:[%s786 + $0x212] sm:$0xff]
        %v1072 = vld [vmem:[%s786 + $0x222] sm:$0xff]
        %v1073 = vld [vmem:[%s786 + $0x232] sm:$0xff]
        %v1074 = vld [vmem:[%s786 + $0x242] sm:$0xff]
        %v1075 = vld [vmem:[%s786 + $0x252] sm:$0xff]
        %s1076 = scalar_lea.vmem [#allocation2], 32
        %v1077 = vld [vmem:[%s1076] sm:$0xff]
        %v1078 = vld [vmem:[%s1076 + $0x10] sm:$0xff]
        %v1079 = vld [vmem:[%s1076 + $0x20] sm:$0xff]
        %v1080 = vld [vmem:[%s1076 + $0x30] sm:$0xff]
        %v1081 = vld [vmem:[%s1076 + $0x40] sm:$0xff]
        %v1082 = vld [vmem:[%s1076 + $0x50] sm:$0xff]
        %v1083 = vld [vmem:[%s1076 + $0x60] sm:$0xff]
        %v1084 = vld [vmem:[%s1076 + $0x70] sm:$0xff]
        %v1085 = vld [vmem:[%s1076 + $0xa0] sm:$0xff]
        %v1086 = vld [vmem:[%s1076 + $0xb0] sm:$0xff]
        %v1087 = vld [vmem:[%s1076 + $0xc0] sm:$0xff]
        %v1088 = vld [vmem:[%s1076 + $0xd0] sm:$0xff]
        %v1089 = vld [vmem:[%s1076 + $0xe0] sm:$0xff]
        %v1090 = vld [vmem:[%s1076 + $0xf0] sm:$0xff]
        %v1091 = vld [vmem:[%s1076 + $0x100] sm:$0xff]
        %v1092 = vld [vmem:[%s1076 + $0x110] sm:$0xff]
        %v1093 = vld [vmem:[%s1076 + $0x140] sm:$0xff]
        %v1094 = vld [vmem:[%s1076 + $0x150] sm:$0xff]
        %v1095 = vld [vmem:[%s1076 + $0x160] sm:$0xff]
        %v1096 = vld [vmem:[%s1076 + $0x170] sm:$0xff]
        %v1097 = vld [vmem:[%s1076 + $0x180] sm:$0xff]
        %v1098 = vld [vmem:[%s1076 + $0x190] sm:$0xff]
        %v1099 = vld [vmem:[%s1076 + $0x1a0] sm:$0xff]
        %v1100 = vld [vmem:[%s1076 + $0x1b0] sm:$0xff]
        %v1101 = vld [vmem:[%s1076 + $0x1e0] sm:$0xff]
        %v1102 = vld [vmem:[%s1076 + $0x1f0] sm:$0xff]
        %v1103 = vld [vmem:[%s1076 + $0x200] sm:$0xff]
        %v1104 = vld [vmem:[%s1076 + $0x210] sm:$0xff]
        %v1105 = vld [vmem:[%s1076 + $0x220] sm:$0xff]
        %v1106 = vld [vmem:[%s1076 + $0x230] sm:$0xff]
        %v1107 = vld [vmem:[%s1076 + $0x240] sm:$0xff]
        %v1108 = vld [vmem:[%s1076 + $0x250] sm:$0xff]
        %v1109 = vld [vmem:[%s1076 + $0x1] sm:$0xff]
        %v1110 = vld [vmem:[%s1076 + $0x11] sm:$0xff]
        %v1111 = vld [vmem:[%s1076 + $0x21] sm:$0xff]
        %v1112 = vld [vmem:[%s1076 + $0x31] sm:$0xff]
        %v1113 = vld [vmem:[%s1076 + $0x41] sm:$0xff]
        %v1114 = vld [vmem:[%s1076 + $0x51] sm:$0xff]
        %v1115 = vld [vmem:[%s1076 + $0x61] sm:$0xff]
        %v1116 = vld [vmem:[%s1076 + $0x71] sm:$0xff]
        %v1117 = vld [vmem:[%s1076 + $0xa1] sm:$0xff]
        %v1118 = vld [vmem:[%s1076 + $0xb1] sm:$0xff]
        %v1119 = vld [vmem:[%s1076 + $0xc1] sm:$0xff]
        %v1120 = vld [vmem:[%s1076 + $0xd1] sm:$0xff]
        %v1121 = vld [vmem:[%s1076 + $0xe1] sm:$0xff]
        %v1122 = vld [vmem:[%s1076 + $0xf1] sm:$0xff]
        %v1123 = vld [vmem:[%s1076 + $0x101] sm:$0xff]
        %v1124 = vld [vmem:[%s1076 + $0x111] sm:$0xff]
        %v1125 = vld [vmem:[%s1076 + $0x141] sm:$0xff]
        %v1126 = vld [vmem:[%s1076 + $0x151] sm:$0xff]
        %v1127 = vld [vmem:[%s1076 + $0x161] sm:$0xff]
        %v1128 = vld [vmem:[%s1076 + $0x171] sm:$0xff]
        %v1129 = vld [vmem:[%s1076 + $0x181] sm:$0xff]
        %v1130 = vld [vmem:[%s1076 + $0x191] sm:$0xff]
        %v1131 = vld [vmem:[%s1076 + $0x1a1] sm:$0xff]
        %v1132 = vld [vmem:[%s1076 + $0x1b1] sm:$0xff]
        %v1133 = vld [vmem:[%s1076 + $0x1e1] sm:$0xff]
        %v1134 = vld [vmem:[%s1076 + $0x1f1] sm:$0xff]
        %v1135 = vld [vmem:[%s1076 + $0x201] sm:$0xff]
        %v1136 = vld [vmem:[%s1076 + $0x211] sm:$0xff]
        %v1137 = vld [vmem:[%s1076 + $0x221] sm:$0xff]
        %v1138 = vld [vmem:[%s1076 + $0x231] sm:$0xff]
        %v1139 = vld [vmem:[%s1076 + $0x241] sm:$0xff]
        %v1140 = vld [vmem:[%s1076 + $0x251] sm:$0xff]
        %v1141 = vld [vmem:[%s1076 + $0x2] sm:$0xff]
        %v1142 = vld [vmem:[%s1076 + $0x12] sm:$0xff]
        %v1143 = vld [vmem:[%s1076 + $0x22] sm:$0xff]
        %v1144 = vld [vmem:[%s1076 + $0x32] sm:$0xff]
        %v1145 = vld [vmem:[%s1076 + $0x42] sm:$0xff]
        %v1146 = vld [vmem:[%s1076 + $0x52] sm:$0xff]
        %v1147 = vld [vmem:[%s1076 + $0x62] sm:$0xff]
        %v1148 = vld [vmem:[%s1076 + $0x72] sm:$0xff]
        %v1149 = vld [vmem:[%s1076 + $0xa2] sm:$0xff]
        %v1150 = vld [vmem:[%s1076 + $0xb2] sm:$0xff]
        %v1151 = vld [vmem:[%s1076 + $0xc2] sm:$0xff]
        %v1152 = vld [vmem:[%s1076 + $0xd2] sm:$0xff]
        %v1153 = vld [vmem:[%s1076 + $0xe2] sm:$0xff]
        %v1154 = vld [vmem:[%s1076 + $0xf2] sm:$0xff]
        %v1155 = vld [vmem:[%s1076 + $0x102] sm:$0xff]
        %v1156 = vld [vmem:[%s1076 + $0x112] sm:$0xff]
        %v1157 = vld [vmem:[%s1076 + $0x142] sm:$0xff]
        %v1158 = vld [vmem:[%s1076 + $0x152] sm:$0xff]
        %v1159 = vld [vmem:[%s1076 + $0x162] sm:$0xff]
        %v1160 = vld [vmem:[%s1076 + $0x172] sm:$0xff]
        %v1161 = vld [vmem:[%s1076 + $0x182] sm:$0xff]
        %v1162 = vld [vmem:[%s1076 + $0x192] sm:$0xff]
        %v1163 = vld [vmem:[%s1076 + $0x1a2] sm:$0xff]
        %v1164 = vld [vmem:[%s1076 + $0x1b2] sm:$0xff]
        %v1165 = vld [vmem:[%s1076 + $0x1e2] sm:$0xff]
        %v1166 = vld [vmem:[%s1076 + $0x1f2] sm:$0xff]
        %v1167 = vld [vmem:[%s1076 + $0x202] sm:$0xff]
        %v1168 = vld [vmem:[%s1076 + $0x212] sm:$0xff]
        %v1169 = vld [vmem:[%s1076 + $0x222] sm:$0xff]
        %v1170 = vld [vmem:[%s1076 + $0x232] sm:$0xff]
        %v1171 = vld [vmem:[%s1076 + $0x242] sm:$0xff]
        %v1172 = vld [vmem:[%s1076 + $0x252] sm:$0xff]
        %v1173 = vld [vmem:[%s3] sm:$0xff]
        %v1174 = vld [vmem:[%s3 + $0x8] sm:$0xff]
        %v1175 = vld [vmem:[%s3 + $0x10] sm:$0xff]
        %v1176 = vld [vmem:[%s3 + $0x18] sm:$0xff]
        %v1177 = vld [vmem:[%s3 + $0x20] sm:$0xff]
        %v1178 = vld [vmem:[%s3 + $0x28] sm:$0xff]
        %v1179 = vld [vmem:[%s3 + $0x30] sm:$0xff]
        %v1180 = vld [vmem:[%s3 + $0x38] sm:$0xff]
        %v1181 = vld [vmem:[%s3 + $0x40] sm:$0xff]
        %1214 = vrot.lane.b32.xlu0 %v916, 8
        %v1215 = vpop.permute.xlu0 %1214
        %1216 = vrot.lane.b32.xlu0 %v917, 8
        %v1217 = vpop.permute.xlu0 %1216
        %1218 = vrot.lane.b32.xlu0 %v918, 8
        %v1219 = vpop.permute.xlu0 %1218
        %1220 = vrot.lane.b32.xlu0 %v919, 8
        %v1221 = vpop.permute.xlu0 %1220
        %1222 = vrot.lane.b32.xlu0 %v920, 8
        %v1223 = vpop.permute.xlu0 %1222
        %1224 = vrot.lane.b32.xlu0 %v921, 8
        %v1225 = vpop.permute.xlu0 %1224
        %1226 = vrot.lane.b32.xlu0 %v922, 8
        %v1227 = vpop.permute.xlu0 %1226
        %1228 = vrot.lane.b32.xlu0 %v923, 8
        %v1229 = vpop.permute.xlu0 %1228
        %1230 = vrot.lane.b32.xlu0 %v924, 8
        %v1231 = vpop.permute.xlu0 %1230
        %1232 = vrot.lane.b32.xlu0 %v925, 8
        %v1233 = vpop.permute.xlu0 %1232
        %1234 = vrot.lane.b32.xlu0 %v926, 8
        %v1235 = vpop.permute.xlu0 %1234
        %1236 = vrot.lane.b32.xlu0 %v927, 8
        %v1237 = vpop.permute.xlu0 %1236
        %1238 = vrot.lane.b32.xlu0 %v928, 8
        %v1239 = vpop.permute.xlu0 %1238
        %1240 = vrot.lane.b32.xlu0 %v929, 8
        %v1241 = vpop.permute.xlu0 %1240
        %1242 = vrot.lane.b32.xlu0 %v930, 8
        %v1243 = vpop.permute.xlu0 %1242
        %1244 = vrot.lane.b32.xlu0 %v931, 8
        %v1245 = vpop.permute.xlu0 %1244
        %1246 = vrot.lane.b32.xlu0 %v932, 8
        %v1247 = vpop.permute.xlu0 %1246
        %1248 = vrot.lane.b32.xlu0 %v933, 8
        %v1249 = vpop.permute.xlu0 %1248
        %1250 = vrot.lane.b32.xlu0 %v934, 8
        %v1251 = vpop.permute.xlu0 %1250
        %1252 = vrot.lane.b32.xlu0 %v935, 8
        %v1253 = vpop.permute.xlu0 %1252
        %1254 = vrot.lane.b32.xlu0 %v936, 8
        %v1255 = vpop.permute.xlu0 %1254
        %1256 = vrot.lane.b32.xlu0 %v937, 8
        %v1257 = vpop.permute.xlu0 %1256
        %1258 = vrot.lane.b32.xlu0 %v938, 8
        %v1259 = vpop.permute.xlu0 %1258
        %1260 = vrot.lane.b32.xlu0 %v939, 8
        %v1261 = vpop.permute.xlu0 %1260
        %1262 = vrot.lane.b32.xlu0 %v940, 8
        %v1263 = vpop.permute.xlu0 %1262
        %1264 = vrot.lane.b32.xlu0 %v941, 8
        %v1265 = vpop.permute.xlu0 %1264
        %1266 = vrot.lane.b32.xlu0 %v942, 8
        %v1267 = vpop.permute.xlu0 %1266
        %1268 = vrot.lane.b32.xlu0 %v943, 8
        %v1269 = vpop.permute.xlu0 %1268
        %1270 = vrot.lane.b32.xlu0 %v944, 8
        %v1271 = vpop.permute.xlu0 %1270
        %1272 = vrot.lane.b32.xlu0 %v945, 8
        %v1273 = vpop.permute.xlu0 %1272
        %1274 = vrot.lane.b32.xlu0 %v946, 8
        %v1275 = vpop.permute.xlu0 %1274
        %1276 = vrot.lane.b32.xlu0 %v947, 8
        %v1277 = vpop.permute.xlu0 %1276
        %1342 = vrot.lane.b32.xlu0 %v948, 16
        %v1343 = vpop.permute.xlu0 %1342
        %1344 = vrot.lane.b32.xlu0 %v949, 16
        %v1345 = vpop.permute.xlu0 %1344
        %1346 = vrot.lane.b32.xlu0 %v950, 16
        %v1347 = vpop.permute.xlu0 %1346
        %1348 = vrot.lane.b32.xlu0 %v951, 16
        %v1349 = vpop.permute.xlu0 %1348
        %1350 = vrot.lane.b32.xlu0 %v952, 16
        %v1351 = vpop.permute.xlu0 %1350
        %1352 = vrot.lane.b32.xlu0 %v953, 16
        %v1353 = vpop.permute.xlu0 %1352
        %1354 = vrot.lane.b32.xlu0 %v954, 16
        %v1355 = vpop.permute.xlu0 %1354
        %1356 = vrot.lane.b32.xlu0 %v955, 16
        %v1357 = vpop.permute.xlu0 %1356
        %1358 = vrot.lane.b32.xlu0 %v956, 16
        %v1359 = vpop.permute.xlu0 %1358
        %1360 = vrot.lane.b32.xlu0 %v957, 16
        %v1361 = vpop.permute.xlu0 %1360
        %1362 = vrot.lane.b32.xlu0 %v958, 16
        %v1363 = vpop.permute.xlu0 %1362
        %1364 = vrot.lane.b32.xlu0 %v959, 16
        %v1365 = vpop.permute.xlu0 %1364
        %1366 = vrot.lane.b32.xlu0 %v960, 16
        %v1367 = vpop.permute.xlu0 %1366
        %1368 = vrot.lane.b32.xlu0 %v961, 16
        %v1369 = vpop.permute.xlu0 %1368
        %1370 = vrot.lane.b32.xlu0 %v962, 16
        %v1371 = vpop.permute.xlu0 %1370
        %1372 = vrot.lane.b32.xlu0 %v963, 16
        %v1373 = vpop.permute.xlu0 %1372
        %1374 = vrot.lane.b32.xlu0 %v964, 16
        %v1375 = vpop.permute.xlu0 %1374
        %1376 = vrot.lane.b32.xlu0 %v965, 16
        %v1377 = vpop.permute.xlu0 %1376
        %1378 = vrot.lane.b32.xlu0 %v966, 16
        %v1379 = vpop.permute.xlu0 %1378
        %1380 = vrot.lane.b32.xlu0 %v967, 16
        %v1381 = vpop.permute.xlu0 %1380
        %1382 = vrot.lane.b32.xlu0 %v968, 16
        %v1383 = vpop.permute.xlu0 %1382
        %1384 = vrot.lane.b32.xlu0 %v969, 16
        %v1385 = vpop.permute.xlu0 %1384
        %1386 = vrot.lane.b32.xlu0 %v970, 16
        %v1387 = vpop.permute.xlu0 %1386
        %1388 = vrot.lane.b32.xlu0 %v971, 16
        %v1389 = vpop.permute.xlu0 %1388
        %1390 = vrot.lane.b32.xlu0 %v972, 16
        %v1391 = vpop.permute.xlu0 %1390
        %1392 = vrot.lane.b32.xlu0 %v973, 16
        %v1393 = vpop.permute.xlu0 %1392
        %1394 = vrot.lane.b32.xlu0 %v974, 16
        %v1395 = vpop.permute.xlu0 %1394
        %1396 = vrot.lane.b32.xlu0 %v975, 16
        %v1397 = vpop.permute.xlu0 %1396
        %1398 = vrot.lane.b32.xlu0 %v976, 16
        %v1399 = vpop.permute.xlu0 %1398
        %1400 = vrot.lane.b32.xlu0 %v977, 16
        %v1401 = vpop.permute.xlu0 %1400
        %1402 = vrot.lane.b32.xlu0 %v978, 16
        %v1403 = vpop.permute.xlu0 %1402
        %1404 = vrot.lane.b32.xlu0 %v979, 16
        %v1405 = vpop.permute.xlu0 %1404
        %1470 = vrot.lane.b32.xlu0 %v980, 24
        %v1471 = vpop.permute.xlu0 %1470
        %1472 = vrot.lane.b32.xlu0 %v981, 24
        %v1473 = vpop.permute.xlu0 %1472
        %1474 = vrot.lane.b32.xlu0 %v982, 24
        %v1475 = vpop.permute.xlu0 %1474
        %1476 = vrot.lane.b32.xlu0 %v983, 24
        %v1477 = vpop.permute.xlu0 %1476
        %1478 = vrot.lane.b32.xlu0 %v984, 24
        %v1479 = vpop.permute.xlu0 %1478
        %1480 = vrot.lane.b32.xlu0 %v985, 24
        %v1481 = vpop.permute.xlu0 %1480
        %1482 = vrot.lane.b32.xlu0 %v986, 24
        %v1483 = vpop.permute.xlu0 %1482
        %1484 = vrot.lane.b32.xlu0 %v987, 24
        %v1485 = vpop.permute.xlu0 %1484
        %1486 = vrot.lane.b32.xlu0 %v988, 24
        %v1487 = vpop.permute.xlu0 %1486
        %1488 = vrot.lane.b32.xlu0 %v989, 24
        %v1489 = vpop.permute.xlu0 %1488
        %1490 = vrot.lane.b32.xlu0 %v990, 24
        %v1491 = vpop.permute.xlu0 %1490
        %1492 = vrot.lane.b32.xlu0 %v991, 24
        %v1493 = vpop.permute.xlu0 %1492
        %1494 = vrot.lane.b32.xlu0 %v992, 24
        %v1495 = vpop.permute.xlu0 %1494
        %1496 = vrot.lane.b32.xlu0 %v993, 24
        %v1497 = vpop.permute.xlu0 %1496
        %1498 = vrot.lane.b32.xlu0 %v994, 24
        %v1499 = vpop.permute.xlu0 %1498
        %1500 = vrot.lane.b32.xlu0 %v995, 24
        %v1501 = vpop.permute.xlu0 %1500
        %1502 = vrot.lane.b32.xlu0 %v996, 24
        %v1503 = vpop.permute.xlu0 %1502
        %1504 = vrot.lane.b32.xlu0 %v997, 24
        %v1505 = vpop.permute.xlu0 %1504
        %1506 = vrot.lane.b32.xlu0 %v998, 24
        %v1507 = vpop.permute.xlu0 %1506
        %1508 = vrot.lane.b32.xlu0 %v999, 24
        %v1509 = vpop.permute.xlu0 %1508
        %1510 = vrot.lane.b32.xlu0 %v1000, 24
        %v1511 = vpop.permute.xlu0 %1510
        %1512 = vrot.lane.b32.xlu0 %v1001, 24
        %v1513 = vpop.permute.xlu0 %1512
        %1514 = vrot.lane.b32.xlu0 %v1002, 24
        %v1515 = vpop.permute.xlu0 %1514
        %1516 = vrot.lane.b32.xlu0 %v1003, 24
        %v1517 = vpop.permute.xlu0 %1516
        %1518 = vrot.lane.b32.xlu0 %v1004, 24
        %v1519 = vpop.permute.xlu0 %1518
        %1520 = vrot.lane.b32.xlu0 %v1005, 24
        %v1521 = vpop.permute.xlu0 %1520
        %1522 = vrot.lane.b32.xlu0 %v1006, 24
        %v1523 = vpop.permute.xlu0 %1522
        %1524 = vrot.lane.b32.xlu0 %v1007, 24
        %v1525 = vpop.permute.xlu0 %1524
        %1526 = vrot.lane.b32.xlu0 %v1008, 24
        %v1527 = vpop.permute.xlu0 %1526
        %1528 = vrot.lane.b32.xlu0 %v1009, 24
        %v1529 = vpop.permute.xlu0 %1528
        %1530 = vrot.lane.b32.xlu0 %v1010, 24
        %v1531 = vpop.permute.xlu0 %1530
        %1532 = vrot.lane.b32.xlu0 %v1011, 24
        %v1533 = vpop.permute.xlu0 %1532
        %1598 = vrot.lane.b32.xlu0 %v1012, 32
        %v1599 = vpop.permute.xlu0 %1598
        %1600 = vrot.lane.b32.xlu0 %v1013, 32
        %v1601 = vpop.permute.xlu0 %1600
        %1602 = vrot.lane.b32.xlu0 %v1014, 32
        %v1603 = vpop.permute.xlu0 %1602
        %1604 = vrot.lane.b32.xlu0 %v1015, 32
        %v1605 = vpop.permute.xlu0 %1604
        %1606 = vrot.lane.b32.xlu0 %v1016, 32
        %v1607 = vpop.permute.xlu0 %1606
        %1608 = vrot.lane.b32.xlu0 %v1017, 32
        %v1609 = vpop.permute.xlu0 %1608
        %1610 = vrot.lane.b32.xlu0 %v1018, 32
        %v1611 = vpop.permute.xlu0 %1610
        %1612 = vrot.lane.b32.xlu0 %v1019, 32
        %v1613 = vpop.permute.xlu0 %1612
        %1614 = vrot.lane.b32.xlu0 %v1020, 32
        %v1615 = vpop.permute.xlu0 %1614
        %1616 = vrot.lane.b32.xlu0 %v1021, 32
        %v1617 = vpop.permute.xlu0 %1616
        %1618 = vrot.lane.b32.xlu0 %v1022, 32
        %v1619 = vpop.permute.xlu0 %1618
        %1620 = vrot.lane.b32.xlu0 %v1023, 32
        %v1621 = vpop.permute.xlu0 %1620
        %1622 = vrot.lane.b32.xlu0 %v1024, 32
        %v1623 = vpop.permute.xlu0 %1622
        %1624 = vrot.lane.b32.xlu0 %v1025, 32
        %v1625 = vpop.permute.xlu0 %1624
        %1626 = vrot.lane.b32.xlu0 %v1026, 32
        %v1627 = vpop.permute.xlu0 %1626
        %1628 = vrot.lane.b32.xlu0 %v1027, 32
        %v1629 = vpop.permute.xlu0 %1628
        %1630 = vrot.lane.b32.xlu0 %v1028, 32
        %v1631 = vpop.permute.xlu0 %1630
        %1632 = vrot.lane.b32.xlu0 %v1029, 32
        %v1633 = vpop.permute.xlu0 %1632
        %1634 = vrot.lane.b32.xlu0 %v1030, 32
        %v1635 = vpop.permute.xlu0 %1634
        %1636 = vrot.lane.b32.xlu0 %v1031, 32
        %v1637 = vpop.permute.xlu0 %1636
        %1638 = vrot.lane.b32.xlu0 %v1032, 32
        %v1639 = vpop.permute.xlu0 %1638
        %1640 = vrot.lane.b32.xlu0 %v1033, 32
        %v1641 = vpop.permute.xlu0 %1640
        %1642 = vrot.lane.b32.xlu0 %v1034, 32
        %v1643 = vpop.permute.xlu0 %1642
        %1644 = vrot.lane.b32.xlu0 %v1035, 32
        %v1645 = vpop.permute.xlu0 %1644
        %1646 = vrot.lane.b32.xlu0 %v1036, 32
        %v1647 = vpop.permute.xlu0 %1646
        %1648 = vrot.lane.b32.xlu0 %v1037, 32
        %v1649 = vpop.permute.xlu0 %1648
        %1650 = vrot.lane.b32.xlu0 %v1038, 32
        %v1651 = vpop.permute.xlu0 %1650
        %1652 = vrot.lane.b32.xlu0 %v1039, 32
        %v1653 = vpop.permute.xlu0 %1652
        %1654 = vrot.lane.b32.xlu0 %v1040, 32
        %v1655 = vpop.permute.xlu0 %1654
        %1656 = vrot.lane.b32.xlu0 %v1041, 32
        %v1657 = vpop.permute.xlu0 %1656
        %1658 = vrot.lane.b32.xlu0 %v1042, 32
        %v1659 = vpop.permute.xlu0 %1658
        %1660 = vrot.lane.b32.xlu0 %v1043, 32
        %v1661 = vpop.permute.xlu0 %1660
        %1726 = vrot.lane.b32.xlu0 %v1044, 40
        %v1727 = vpop.permute.xlu0 %1726
        %1728 = vrot.lane.b32.xlu0 %v1045, 40
        %v1729 = vpop.permute.xlu0 %1728
        %1730 = vrot.lane.b32.xlu0 %v1046, 40
        %v1731 = vpop.permute.xlu0 %1730
        %1732 = vrot.lane.b32.xlu0 %v1047, 40
        %v1733 = vpop.permute.xlu0 %1732
        %1734 = vrot.lane.b32.xlu0 %v1048, 40
        %v1735 = vpop.permute.xlu0 %1734
        %1736 = vrot.lane.b32.xlu0 %v1049, 40
        %v1737 = vpop.permute.xlu0 %1736
        %1738 = vrot.lane.b32.xlu0 %v1050, 40
        %v1739 = vpop.permute.xlu0 %1738
        %1740 = vrot.lane.b32.xlu0 %v1051, 40
        %v1741 = vpop.permute.xlu0 %1740
        %1742 = vrot.lane.b32.xlu0 %v1052, 40
        %v1743 = vpop.permute.xlu0 %1742
        %1744 = vrot.lane.b32.xlu0 %v1053, 40
        %v1745 = vpop.permute.xlu0 %1744
        %1746 = vrot.lane.b32.xlu0 %v1054, 40
        %v1747 = vpop.permute.xlu0 %1746
        %1748 = vrot.lane.b32.xlu0 %v1055, 40
        %v1749 = vpop.permute.xlu0 %1748
        %1750 = vrot.lane.b32.xlu0 %v1056, 40
        %v1751 = vpop.permute.xlu0 %1750
        %1752 = vrot.lane.b32.xlu0 %v1057, 40
        %v1753 = vpop.permute.xlu0 %1752
        %1754 = vrot.lane.b32.xlu0 %v1058, 40
        %v1755 = vpop.permute.xlu0 %1754
        %1756 = vrot.lane.b32.xlu0 %v1059, 40
        %v1757 = vpop.permute.xlu0 %1756
        %1758 = vrot.lane.b32.xlu0 %v1060, 40
        %v1759 = vpop.permute.xlu0 %1758
        %1760 = vrot.lane.b32.xlu0 %v1061, 40
        %v1761 = vpop.permute.xlu0 %1760
        %1762 = vrot.lane.b32.xlu0 %v1062, 40
        %v1763 = vpop.permute.xlu0 %1762
        %1764 = vrot.lane.b32.xlu0 %v1063, 40
        %v1765 = vpop.permute.xlu0 %1764
        %1766 = vrot.lane.b32.xlu0 %v1064, 40
        %v1767 = vpop.permute.xlu0 %1766
        %1768 = vrot.lane.b32.xlu0 %v1065, 40
        %v1769 = vpop.permute.xlu0 %1768
        %1770 = vrot.lane.b32.xlu0 %v1066, 40
        %v1771 = vpop.permute.xlu0 %1770
        %1772 = vrot.lane.b32.xlu0 %v1067, 40
        %v1773 = vpop.permute.xlu0 %1772
        %1774 = vrot.lane.b32.xlu0 %v1068, 40
        %v1775 = vpop.permute.xlu0 %1774
        %1776 = vrot.lane.b32.xlu0 %v1069, 40
        %v1777 = vpop.permute.xlu0 %1776
        %1778 = vrot.lane.b32.xlu0 %v1070, 40
        %v1779 = vpop.permute.xlu0 %1778
        %1780 = vrot.lane.b32.xlu0 %v1071, 40
        %v1781 = vpop.permute.xlu0 %1780
        %1782 = vrot.lane.b32.xlu0 %v1072, 40
        %v1783 = vpop.permute.xlu0 %1782
        %1784 = vrot.lane.b32.xlu0 %v1073, 40
        %v1785 = vpop.permute.xlu0 %1784
        %1786 = vrot.lane.b32.xlu0 %v1074, 40
        %v1787 = vpop.permute.xlu0 %1786
        %1788 = vrot.lane.b32.xlu0 %v1075, 40
        %v1789 = vpop.permute.xlu0 %1788
        %1854 = vrot.lane.b32.xlu0 %v1077, 48
        %v1855 = vpop.permute.xlu0 %1854
        %1856 = vrot.lane.b32.xlu0 %v1078, 48
        %v1857 = vpop.permute.xlu0 %1856
        %1858 = vrot.lane.b32.xlu0 %v1079, 48
        %v1859 = vpop.permute.xlu0 %1858
        %1860 = vrot.lane.b32.xlu0 %v1080, 48
        %v1861 = vpop.permute.xlu0 %1860
        %1862 = vrot.lane.b32.xlu0 %v1081, 48
        %v1863 = vpop.permute.xlu0 %1862
        %1864 = vrot.lane.b32.xlu0 %v1082, 48
        %v1865 = vpop.permute.xlu0 %1864
        %1866 = vrot.lane.b32.xlu0 %v1083, 48
        %v1867 = vpop.permute.xlu0 %1866
        %1868 = vrot.lane.b32.xlu0 %v1084, 48
        %v1869 = vpop.permute.xlu0 %1868
        %1870 = vrot.lane.b32.xlu0 %v1085, 48
        %v1871 = vpop.permute.xlu0 %1870
        %1872 = vrot.lane.b32.xlu0 %v1086, 48
        %v1873 = vpop.permute.xlu0 %1872
        %1874 = vrot.lane.b32.xlu0 %v1087, 48
        %v1875 = vpop.permute.xlu0 %1874
        %1876 = vrot.lane.b32.xlu0 %v1088, 48
        %v1877 = vpop.permute.xlu0 %1876
        %1878 = vrot.lane.b32.xlu0 %v1089, 48
        %v1879 = vpop.permute.xlu0 %1878
        %1880 = vrot.lane.b32.xlu0 %v1090, 48
        %v1881 = vpop.permute.xlu0 %1880
        %1882 = vrot.lane.b32.xlu0 %v1091, 48
        %v1883 = vpop.permute.xlu0 %1882
        %1884 = vrot.lane.b32.xlu0 %v1092, 48
        %v1885 = vpop.permute.xlu0 %1884
        %1886 = vrot.lane.b32.xlu0 %v1093, 48
        %v1887 = vpop.permute.xlu0 %1886
        %1888 = vrot.lane.b32.xlu0 %v1094, 48
        %v1889 = vpop.permute.xlu0 %1888
        %1890 = vrot.lane.b32.xlu0 %v1095, 48
        %v1891 = vpop.permute.xlu0 %1890
        %1892 = vrot.lane.b32.xlu0 %v1096, 48
        %v1893 = vpop.permute.xlu0 %1892
        %1894 = vrot.lane.b32.xlu0 %v1097, 48
        %v1895 = vpop.permute.xlu0 %1894
        %1896 = vrot.lane.b32.xlu0 %v1098, 48
        %v1897 = vpop.permute.xlu0 %1896
        %1898 = vrot.lane.b32.xlu0 %v1099, 48
        %v1899 = vpop.permute.xlu0 %1898
        %1900 = vrot.lane.b32.xlu0 %v1100, 48
        %v1901 = vpop.permute.xlu0 %1900
        %1902 = vrot.lane.b32.xlu0 %v1101, 48
        %v1903 = vpop.permute.xlu0 %1902
        %1904 = vrot.lane.b32.xlu0 %v1102, 48
        %v1905 = vpop.permute.xlu0 %1904
        %1906 = vrot.lane.b32.xlu0 %v1103, 48
        %v1907 = vpop.permute.xlu0 %1906
        %1908 = vrot.lane.b32.xlu0 %v1104, 48
        %v1909 = vpop.permute.xlu0 %1908
        %1910 = vrot.lane.b32.xlu0 %v1105, 48
        %v1911 = vpop.permute.xlu0 %1910
        %1912 = vrot.lane.b32.xlu0 %v1106, 48
        %v1913 = vpop.permute.xlu0 %1912
        %1914 = vrot.lane.b32.xlu0 %v1107, 48
        %v1915 = vpop.permute.xlu0 %1914
        %1916 = vrot.lane.b32.xlu0 %v1108, 48
        %v1917 = vpop.permute.xlu0 %1916
        %1982 = vrot.lane.b32.xlu0 %v1109, 56
        %v1983 = vpop.permute.xlu0 %1982
        %1984 = vrot.lane.b32.xlu0 %v1110, 56
        %v1985 = vpop.permute.xlu0 %1984
        %1986 = vrot.lane.b32.xlu0 %v1111, 56
        %v1987 = vpop.permute.xlu0 %1986
        %1988 = vrot.lane.b32.xlu0 %v1112, 56
        %v1989 = vpop.permute.xlu0 %1988
        %1990 = vrot.lane.b32.xlu0 %v1113, 56
        %v1991 = vpop.permute.xlu0 %1990
        %1992 = vrot.lane.b32.xlu0 %v1114, 56
        %v1993 = vpop.permute.xlu0 %1992
        %1994 = vrot.lane.b32.xlu0 %v1115, 56
        %v1995 = vpop.permute.xlu0 %1994
        %1996 = vrot.lane.b32.xlu0 %v1116, 56
        %v1997 = vpop.permute.xlu0 %1996
        %1998 = vrot.lane.b32.xlu0 %v1117, 56
        %v1999 = vpop.permute.xlu0 %1998
        %2000 = vrot.lane.b32.xlu0 %v1118, 56
        %v2001 = vpop.permute.xlu0 %2000
        %2002 = vrot.lane.b32.xlu0 %v1119, 56
        %v2003 = vpop.permute.xlu0 %2002
        %2004 = vrot.lane.b32.xlu0 %v1120, 56
        %v2005 = vpop.permute.xlu0 %2004
        %2006 = vrot.lane.b32.xlu0 %v1121, 56
        %v2007 = vpop.permute.xlu0 %2006
        %2008 = vrot.lane.b32.xlu0 %v1122, 56
        %v2009 = vpop.permute.xlu0 %2008
        %2010 = vrot.lane.b32.xlu0 %v1123, 56
        %v2011 = vpop.permute.xlu0 %2010
        %2012 = vrot.lane.b32.xlu0 %v1124, 56
        %v2013 = vpop.permute.xlu0 %2012
        %2014 = vrot.lane.b32.xlu0 %v1125, 56
        %v2015 = vpop.permute.xlu0 %2014
        %2016 = vrot.lane.b32.xlu0 %v1126, 56
        %v2017 = vpop.permute.xlu0 %2016
        %2018 = vrot.lane.b32.xlu0 %v1127, 56
        %v2019 = vpop.permute.xlu0 %2018
        %2020 = vrot.lane.b32.xlu0 %v1128, 56
        %v2021 = vpop.permute.xlu0 %2020
        %2022 = vrot.lane.b32.xlu0 %v1129, 56
        %v2023 = vpop.permute.xlu0 %2022
        %2024 = vrot.lane.b32.xlu0 %v1130, 56
        %v2025 = vpop.permute.xlu0 %2024
        %2026 = vrot.lane.b32.xlu0 %v1131, 56
        %v2027 = vpop.permute.xlu0 %2026
        %2028 = vrot.lane.b32.xlu0 %v1132, 56
        %v2029 = vpop.permute.xlu0 %2028
        %2030 = vrot.lane.b32.xlu0 %v1133, 56
        %v2031 = vpop.permute.xlu0 %2030
        %2032 = vrot.lane.b32.xlu0 %v1134, 56
        %v2033 = vpop.permute.xlu0 %2032
        %2034 = vrot.lane.b32.xlu0 %v1135, 56
        %v2035 = vpop.permute.xlu0 %2034
        %2036 = vrot.lane.b32.xlu0 %v1136, 56
        %v2037 = vpop.permute.xlu0 %2036
        %2038 = vrot.lane.b32.xlu0 %v1137, 56
        %v2039 = vpop.permute.xlu0 %2038
        %2040 = vrot.lane.b32.xlu0 %v1138, 56
        %v2041 = vpop.permute.xlu0 %2040
        %2042 = vrot.lane.b32.xlu0 %v1139, 56
        %v2043 = vpop.permute.xlu0 %2042
        %2044 = vrot.lane.b32.xlu0 %v1140, 56
        %v2045 = vpop.permute.xlu0 %2044
        %2110 = vrot.lane.b32.xlu0 %v1141, 64
        %v2111 = vpop.permute.xlu0 %2110
        %2112 = vrot.lane.b32.xlu0 %v1142, 64
        %v2113 = vpop.permute.xlu0 %2112
        %2114 = vrot.lane.b32.xlu0 %v1143, 64
        %v2115 = vpop.permute.xlu0 %2114
        %2116 = vrot.lane.b32.xlu0 %v1144, 64
        %v2117 = vpop.permute.xlu0 %2116
        %2118 = vrot.lane.b32.xlu0 %v1145, 64
        %v2119 = vpop.permute.xlu0 %2118
        %2120 = vrot.lane.b32.xlu0 %v1146, 64
        %v2121 = vpop.permute.xlu0 %2120
        %2122 = vrot.lane.b32.xlu0 %v1147, 64
        %v2123 = vpop.permute.xlu0 %2122
        %2124 = vrot.lane.b32.xlu0 %v1148, 64
        %v2125 = vpop.permute.xlu0 %2124
        %2126 = vrot.lane.b32.xlu0 %v1149, 64
        %v2127 = vpop.permute.xlu0 %2126
        %2128 = vrot.lane.b32.xlu0 %v1150, 64
        %v2129 = vpop.permute.xlu0 %2128
        %2130 = vrot.lane.b32.xlu0 %v1151, 64
        %v2131 = vpop.permute.xlu0 %2130
        %2132 = vrot.lane.b32.xlu0 %v1152, 64
        %v2133 = vpop.permute.xlu0 %2132
        %2134 = vrot.lane.b32.xlu0 %v1153, 64
        %v2135 = vpop.permute.xlu0 %2134
        %2136 = vrot.lane.b32.xlu0 %v1154, 64
        %v2137 = vpop.permute.xlu0 %2136
        %2138 = vrot.lane.b32.xlu0 %v1155, 64
        %v2139 = vpop.permute.xlu0 %2138
        %2140 = vrot.lane.b32.xlu0 %v1156, 64
        %v2141 = vpop.permute.xlu0 %2140
        %2142 = vrot.lane.b32.xlu0 %v1157, 64
        %v2143 = vpop.permute.xlu0 %2142
        %2144 = vrot.lane.b32.xlu0 %v1158, 64
        %v2145 = vpop.permute.xlu0 %2144
        %2146 = vrot.lane.b32.xlu0 %v1159, 64
        %v2147 = vpop.permute.xlu0 %2146
        %2148 = vrot.lane.b32.xlu0 %v1160, 64
        %v2149 = vpop.permute.xlu0 %2148
        %2150 = vrot.lane.b32.xlu0 %v1161, 64
        %v2151 = vpop.permute.xlu0 %2150
        %2152 = vrot.lane.b32.xlu0 %v1162, 64
        %v2153 = vpop.permute.xlu0 %2152
        %2154 = vrot.lane.b32.xlu0 %v1163, 64
        %v2155 = vpop.permute.xlu0 %2154
        %2156 = vrot.lane.b32.xlu0 %v1164, 64
        %v2157 = vpop.permute.xlu0 %2156
        %2158 = vrot.lane.b32.xlu0 %v1165, 64
        %v2159 = vpop.permute.xlu0 %2158
        %2160 = vrot.lane.b32.xlu0 %v1166, 64
        %v2161 = vpop.permute.xlu0 %2160
        %2162 = vrot.lane.b32.xlu0 %v1167, 64
        %v2163 = vpop.permute.xlu0 %2162
        %2164 = vrot.lane.b32.xlu0 %v1168, 64
        %v2165 = vpop.permute.xlu0 %2164
        %2166 = vrot.lane.b32.xlu0 %v1169, 64
        %v2167 = vpop.permute.xlu0 %2166
        %2168 = vrot.lane.b32.xlu0 %v1170, 64
        %v2169 = vpop.permute.xlu0 %2168
        %2170 = vrot.lane.b32.xlu0 %v1171, 64
        %v2171 = vpop.permute.xlu0 %2170
        %2172 = vrot.lane.b32.xlu0 %v1172, 64
        %v2173 = vpop.permute.xlu0 %2172
        %v2206 = vsel %vm767, %v884, %v1215
        %v2207 = vsel %vm767, %v885, %v1217
        %v2208 = vsel %vm767, %v886, %v1219
        %v2209 = vsel %vm767, %v887, %v1221
        %v2210 = vsel %vm767, %v888, %v1223
        %v2211 = vsel %vm767, %v889, %v1225
        %v2212 = vsel %vm767, %v890, %v1227
        %v2213 = vsel %vm767, %v891, %v1229
        %v2214 = vsel %vm767, %v892, %v1231
        %v2215 = vsel %vm767, %v893, %v1233
        %v2216 = vsel %vm767, %v894, %v1235
        %v2217 = vsel %vm767, %v895, %v1237
        %v2218 = vsel %vm767, %v896, %v1239
        %v2219 = vsel %vm767, %v897, %v1241
        %v2220 = vsel %vm767, %v898, %v1243
        %v2221 = vsel %vm767, %v899, %v1245
        %v2222 = vsel %vm767, %v900, %v1247
        %v2223 = vsel %vm767, %v901, %v1249
        %v2224 = vsel %vm767, %v902, %v1251
        %v2225 = vsel %vm767, %v903, %v1253
        %v2226 = vsel %vm767, %v904, %v1255
        %v2227 = vsel %vm767, %v905, %v1257
        %v2228 = vsel %vm767, %v906, %v1259
        %v2229 = vsel %vm767, %v907, %v1261
        %v2230 = vsel %vm767, %v908, %v1263
        %v2231 = vsel %vm767, %v909, %v1265
        %v2232 = vsel %vm767, %v910, %v1267
        %v2233 = vsel %vm767, %v911, %v1269
        %v2234 = vsel %vm767, %v912, %v1271
        %v2235 = vsel %vm767, %v913, %v1273
        %v2236 = vsel %vm767, %v914, %v1275
        %v2237 = vsel %vm767, %v915, %v1277
        %vm2238 = vcmask 130048
        %v2239 = vsel %vm2238, %v2206, %v1343
        %v2240 = vsel %vm2238, %v2207, %v1345
        %v2241 = vsel %vm2238, %v2208, %v1347
        %v2242 = vsel %vm2238, %v2209, %v1349
        %v2243 = vsel %vm2238, %v2210, %v1351
        %v2244 = vsel %vm2238, %v2211, %v1353
        %v2245 = vsel %vm2238, %v2212, %v1355
        %v2246 = vsel %vm2238, %v2213, %v1357
        %v2247 = vsel %vm2238, %v2214, %v1359
        %v2248 = vsel %vm2238, %v2215, %v1361
        %v2249 = vsel %vm2238, %v2216, %v1363
        %v2250 = vsel %vm2238, %v2217, %v1365
        %v2251 = vsel %vm2238, %v2218, %v1367
        %v2252 = vsel %vm2238, %v2219, %v1369
        %v2253 = vsel %vm2238, %v2220, %v1371
        %v2254 = vsel %vm2238, %v2221, %v1373
        %v2255 = vsel %vm2238, %v2222, %v1375
        %v2256 = vsel %vm2238, %v2223, %v1377
        %v2257 = vsel %vm2238, %v2224, %v1379
        %v2258 = vsel %vm2238, %v2225, %v1381
        %v2259 = vsel %vm2238, %v2226, %v1383
        %v2260 = vsel %vm2238, %v2227, %v1385
        %v2261 = vsel %vm2238, %v2228, %v1387
        %v2262 = vsel %vm2238, %v2229, %v1389
        %v2263 = vsel %vm2238, %v2230, %v1391
        %v2264 = vsel %vm2238, %v2231, %v1393
        %v2265 = vsel %vm2238, %v2232, %v1395
        %v2266 = vsel %vm2238, %v2233, %v1397
        %v2267 = vsel %vm2238, %v2234, %v1399
        %v2268 = vsel %vm2238, %v2235, %v1401
        %v2269 = vsel %vm2238, %v2236, %v1403
        %v2270 = vsel %vm2238, %v2237, %v1405
        %vm2271 = vcmask 195584
        %v2272 = vsel %vm2271, %v2239, %v1471
        %v2273 = vsel %vm2271, %v2240, %v1473
        %v2274 = vsel %vm2271, %v2241, %v1475
        %v2275 = vsel %vm2271, %v2242, %v1477
        %v2276 = vsel %vm2271, %v2243, %v1479
        %v2277 = vsel %vm2271, %v2244, %v1481
        %v2278 = vsel %vm2271, %v2245, %v1483
        %v2279 = vsel %vm2271, %v2246, %v1485
        %v2280 = vsel %vm2271, %v2247, %v1487
        %v2281 = vsel %vm2271, %v2248, %v1489
        %v2282 = vsel %vm2271, %v2249, %v1491
        %v2283 = vsel %vm2271, %v2250, %v1493
        %v2284 = vsel %vm2271, %v2251, %v1495
        %v2285 = vsel %vm2271, %v2252, %v1497
        %v2286 = vsel %vm2271, %v2253, %v1499
        %v2287 = vsel %vm2271, %v2254, %v1501
        %v2288 = vsel %vm2271, %v2255, %v1503
        %v2289 = vsel %vm2271, %v2256, %v1505
        %v2290 = vsel %vm2271, %v2257, %v1507
        %v2291 = vsel %vm2271, %v2258, %v1509
        %v2292 = vsel %vm2271, %v2259, %v1511
        %v2293 = vsel %vm2271, %v2260, %v1513
        %v2294 = vsel %vm2271, %v2261, %v1515
        %v2295 = vsel %vm2271, %v2262, %v1517
        %v2296 = vsel %vm2271, %v2263, %v1519
        %v2297 = vsel %vm2271, %v2264, %v1521
        %v2298 = vsel %vm2271, %v2265, %v1523
        %v2299 = vsel %vm2271, %v2266, %v1525
        %v2300 = vsel %vm2271, %v2267, %v1527
        %v2301 = vsel %vm2271, %v2268, %v1529
        %v2302 = vsel %vm2271, %v2269, %v1531
        %v2303 = vsel %vm2271, %v2270, %v1533
        %vm2304 = vcmask 261120
        %v2305 = vsel %vm2304, %v2272, %v1599
        %v2306 = vsel %vm2304, %v2273, %v1601
        %v2307 = vsel %vm2304, %v2274, %v1603
        %v2308 = vsel %vm2304, %v2275, %v1605
        %v2309 = vsel %vm2304, %v2276, %v1607
        %v2310 = vsel %vm2304, %v2277, %v1609
        %v2311 = vsel %vm2304, %v2278, %v1611
        %v2312 = vsel %vm2304, %v2279, %v1613
        %v2313 = vsel %vm2304, %v2280, %v1615
        %v2314 = vsel %vm2304, %v2281, %v1617
        %v2315 = vsel %vm2304, %v2282, %v1619
        %v2316 = vsel %vm2304, %v2283, %v1621
        %v2317 = vsel %vm2304, %v2284, %v1623
        %v2318 = vsel %vm2304, %v2285, %v1625
        %v2319 = vsel %vm2304, %v2286, %v1627
        %v2320 = vsel %vm2304, %v2287, %v1629
        %v2321 = vsel %vm2304, %v2288, %v1631
        %v2322 = vsel %vm2304, %v2289, %v1633
        %v2323 = vsel %vm2304, %v2290, %v1635
        %v2324 = vsel %vm2304, %v2291, %v1637
        %v2325 = vsel %vm2304, %v2292, %v1639
        %v2326 = vsel %vm2304, %v2293, %v1641
        %v2327 = vsel %vm2304, %v2294, %v1643
        %v2328 = vsel %vm2304, %v2295, %v1645
        %v2329 = vsel %vm2304, %v2296, %v1647
        %v2330 = vsel %vm2304, %v2297, %v1649
        %v2331 = vsel %vm2304, %v2298, %v1651
        %v2332 = vsel %vm2304, %v2299, %v1653
        %v2333 = vsel %vm2304, %v2300, %v1655
        %v2334 = vsel %vm2304, %v2301, %v1657
        %v2335 = vsel %vm2304, %v2302, %v1659
        %v2336 = vsel %vm2304, %v2303, %v1661
        %vm2337 = vcmask 326656
        %v2338 = vsel %vm2337, %v2305, %v1727
        %v2339 = vsel %vm2337, %v2306, %v1729
        %v2340 = vsel %vm2337, %v2307, %v1731
        %v2341 = vsel %vm2337, %v2308, %v1733
        %v2342 = vsel %vm2337, %v2309, %v1735
        %v2343 = vsel %vm2337, %v2310, %v1737
        %v2344 = vsel %vm2337, %v2311, %v1739
        %v2345 = vsel %vm2337, %v2312, %v1741
        %v2346 = vsel %vm2337, %v2313, %v1743
        %v2347 = vsel %vm2337, %v2314, %v1745
        %v2348 = vsel %vm2337, %v2315, %v1747
        %v2349 = vsel %vm2337, %v2316, %v1749
        %v2350 = vsel %vm2337, %v2317, %v1751
        %v2351 = vsel %vm2337, %v2318, %v1753
        %v2352 = vsel %vm2337, %v2319, %v1755
        %v2353 = vsel %vm2337, %v2320, %v1757
        %v2354 = vsel %vm2337, %v2321, %v1759
        %v2355 = vsel %vm2337, %v2322, %v1761
        %v2356 = vsel %vm2337, %v2323, %v1763
        %v2357 = vsel %vm2337, %v2324, %v1765
        %v2358 = vsel %vm2337, %v2325, %v1767
        %v2359 = vsel %vm2337, %v2326, %v1769
        %v2360 = vsel %vm2337, %v2327, %v1771
        %v2361 = vsel %vm2337, %v2328, %v1773
        %v2362 = vsel %vm2337, %v2329, %v1775
        %v2363 = vsel %vm2337, %v2330, %v1777
        %v2364 = vsel %vm2337, %v2331, %v1779
        %v2365 = vsel %vm2337, %v2332, %v1781
        %v2366 = vsel %vm2337, %v2333, %v1783
        %v2367 = vsel %vm2337, %v2334, %v1785
        %v2368 = vsel %vm2337, %v2335, %v1787
        %v2369 = vsel %vm2337, %v2336, %v1789
        %vm2370 = vcmask 392192
        %v2371 = vsel %vm2370, %v2338, %v1855
        %v2372 = vsel %vm2370, %v2339, %v1857
        %v2373 = vsel %vm2370, %v2340, %v1859
        %v2374 = vsel %vm2370, %v2341, %v1861
        %v2375 = vsel %vm2370, %v2342, %v1863
        %v2376 = vsel %vm2370, %v2343, %v1865
        %v2377 = vsel %vm2370, %v2344, %v1867
        %v2378 = vsel %vm2370, %v2345, %v1869
        %v2379 = vsel %vm2370, %v2346, %v1871
        %v2380 = vsel %vm2370, %v2347, %v1873
        %v2381 = vsel %vm2370, %v2348, %v1875
        %v2382 = vsel %vm2370, %v2349, %v1877
        %v2383 = vsel %vm2370, %v2350, %v1879
        %v2384 = vsel %vm2370, %v2351, %v1881
        %v2385 = vsel %vm2370, %v2352, %v1883
        %v2386 = vsel %vm2370, %v2353, %v1885
        %v2387 = vsel %vm2370, %v2354, %v1887
        %v2388 = vsel %vm2370, %v2355, %v1889
        %v2389 = vsel %vm2370, %v2356, %v1891
        %v2390 = vsel %vm2370, %v2357, %v1893
        %v2391 = vsel %vm2370, %v2358, %v1895
        %v2392 = vsel %vm2370, %v2359, %v1897
        %v2393 = vsel %vm2370, %v2360, %v1899
        %v2394 = vsel %vm2370, %v2361, %v1901
        %v2395 = vsel %vm2370, %v2362, %v1903
        %v2396 = vsel %vm2370, %v2363, %v1905
        %v2397 = vsel %vm2370, %v2364, %v1907
        %v2398 = vsel %vm2370, %v2365, %v1909
        %v2399 = vsel %vm2370, %v2366, %v1911
        %v2400 = vsel %vm2370, %v2367, %v1913
        %v2401 = vsel %vm2370, %v2368, %v1915
        %v2402 = vsel %vm2370, %v2369, %v1917
        %vm2403 = vcmask 457728
        %v2404 = vsel %vm2403, %v2371, %v1983
        %v2405 = vsel %vm2403, %v2372, %v1985
        %v2406 = vsel %vm2403, %v2373, %v1987
        %v2407 = vsel %vm2403, %v2374, %v1989
        %v2408 = vsel %vm2403, %v2375, %v1991
        %v2409 = vsel %vm2403, %v2376, %v1993
        %v2410 = vsel %vm2403, %v2377, %v1995
        %v2411 = vsel %vm2403, %v2378, %v1997
        %v2412 = vsel %vm2403, %v2379, %v1999
        %v2413 = vsel %vm2403, %v2380, %v2001
        %v2414 = vsel %vm2403, %v2381, %v2003
        %v2415 = vsel %vm2403, %v2382, %v2005
        %v2416 = vsel %vm2403, %v2383, %v2007
        %v2417 = vsel %vm2403, %v2384, %v2009
        %v2418 = vsel %vm2403, %v2385, %v2011
        %v2419 = vsel %vm2403, %v2386, %v2013
        %v2420 = vsel %vm2403, %v2387, %v2015
        %v2421 = vsel %vm2403, %v2388, %v2017
        %v2422 = vsel %vm2403, %v2389, %v2019
        %v2423 = vsel %vm2403, %v2390, %v2021
        %v2424 = vsel %vm2403, %v2391, %v2023
        %v2425 = vsel %vm2403, %v2392, %v2025
        %v2426 = vsel %vm2403, %v2393, %v2027
        %v2427 = vsel %vm2403, %v2394, %v2029
        %v2428 = vsel %vm2403, %v2395, %v2031
        %v2429 = vsel %vm2403, %v2396, %v2033
        %v2430 = vsel %vm2403, %v2397, %v2035
        %v2431 = vsel %vm2403, %v2398, %v2037
        %v2432 = vsel %vm2403, %v2399, %v2039
        %v2433 = vsel %vm2403, %v2400, %v2041
        %v2434 = vsel %vm2403, %v2401, %v2043
        %v2435 = vsel %vm2403, %v2402, %v2045
        %v2436 = vsel %vm381, %v2404, %v2111
        %v2437 = vsel %vm381, %v2405, %v2113
        %v2438 = vsel %vm381, %v2406, %v2115
        %v2439 = vsel %vm381, %v2407, %v2117
        %v2440 = vsel %vm381, %v2408, %v2119
        %v2441 = vsel %vm381, %v2409, %v2121
        %v2442 = vsel %vm381, %v2410, %v2123
        %v2443 = vsel %vm381, %v2411, %v2125
        %v2444 = vsel %vm381, %v2412, %v2127
        %v2445 = vsel %vm381, %v2413, %v2129
        %v2446 = vsel %vm381, %v2414, %v2131
        %v2447 = vsel %vm381, %v2415, %v2133
        %v2448 = vsel %vm381, %v2416, %v2135
        %v2449 = vsel %vm381, %v2417, %v2137
        %v2450 = vsel %vm381, %v2418, %v2139
        %v2451 = vsel %vm381, %v2419, %v2141
        %v2452 = vsel %vm381, %v2420, %v2143
        %v2453 = vsel %vm381, %v2421, %v2145
        %v2454 = vsel %vm381, %v2422, %v2147
        %v2455 = vsel %vm381, %v2423, %v2149
        %v2456 = vsel %vm381, %v2424, %v2151
        %v2457 = vsel %vm381, %v2425, %v2153
        %v2458 = vsel %vm381, %v2426, %v2155
        %v2459 = vsel %vm381, %v2427, %v2157
        %v2460 = vsel %vm381, %v2428, %v2159
        %v2461 = vsel %vm381, %v2429, %v2161
        %v2462 = vsel %vm381, %v2430, %v2163
        %v2463 = vsel %vm381, %v2431, %v2165
        %v2464 = vsel %vm381, %v2432, %v2167
        %v2465 = vsel %vm381, %v2433, %v2169
        %v2466 = vsel %vm381, %v2434, %v2171
        %v2467 = vsel %vm381, %v2435, %v2173
        %v2468 = vld [vmem:[%s4] sm:$0x1]
        %v2470 = vlaneseq
        %v2471 = vshrl.u32 %v2470, 7
        %v2472 = vsub.s32 0, %v2471
        %v2473 = vrot.slane %v2468, %v2472
        %vm2475 = vcmask 588800
        %v2477 = vsel %vm2475, %v2436, 0
        %v2480 = vsel %vm2475, %v2437, 0
        %v2483 = vsel %vm2475, %v2438, 0
        %v2486 = vsel %vm2475, %v2439, 0
        %v2489 = vsel %vm2475, %v2440, 0
        %v2492 = vsel %vm2475, %v2441, 0
        %v2495 = vsel %vm2475, %v2442, 0
        %v2498 = vsel %vm2475, %v2443, 0
        %v2501 = vsel %vm2475, %v2444, 0
        %v2504 = vsel %vm2475, %v2445, 0
        %v2507 = vsel %vm2475, %v2446, 0
        %v2510 = vsel %vm2475, %v2447, 0
        %v2513 = vsel %vm2475, %v2448, 0
        %v2516 = vsel %vm2475, %v2449, 0
        %v2519 = vsel %vm2475, %v2450, 0
        %v2522 = vsel %vm2475, %v2451, 0
        %v2525 = vsel %vm2475, %v2452, 0
        %v2528 = vsel %vm2475, %v2453, 0
        %v2531 = vsel %vm2475, %v2454, 0
        %v2534 = vsel %vm2475, %v2455, 0
        %v2537 = vsel %vm2475, %v2456, 0
        %v2540 = vsel %vm2475, %v2457, 0
        %v2543 = vsel %vm2475, %v2458, 0
        %v2546 = vsel %vm2475, %v2459, 0
        %v2549 = vsel %vm2475, %v2460, 0
        %v2552 = vsel %vm2475, %v2461, 0
        %v2555 = vsel %vm2475, %v2462, 0
        %v2558 = vsel %vm2475, %v2463, 0
        %v2561 = vsel %vm2475, %v2464, 0
        %v2564 = vsel %vm2475, %v2465, 0
        %v2567 = vsel %vm2475, %v2466, 0
        %v2570 = vsel %vm2475, %v2467, 0
        %2572 = vmatprep.subr.mxu0 0.0
        %2573 = vmatpush1.msra.mxu0 %v1173
        %2574 = vmatprep.subr.mxu0 0.0
        %2575 = vmatpush1.msra.mxu0 %v1174
        %2576 = vmatprep.subr.mxu0 0.0
        %2577 = vmatpush1.msra.mxu0 %v1175
        %2578 = vmatprep.subr.mxu0 0.0
        %2579 = vmatpush1.msra.mxu0 %v1176
        %2580 = vmatprep.subr.mxu0 0.0
        %2581 = vmatpush1.msra.mxu0 %v1177
        %2582 = vmatprep.subr.mxu0 0.0
        %2583 = vmatpush1.msra.mxu0 %v1178
        %2584 = vmatprep.subr.mxu0 0.0
        %2585 = vmatpush1.msra.mxu0 %v1179
        %2586 = vmatprep.subr.mxu0 0.0
        %2587 = vmatpush1.msra.mxu0 %v1180
        %2588 = vmatprep.subr.mxu0 0.0
        %2589 = vmatpush1.msra.mxu0 %v1181
        %2590 = vmatprep.subr.mxu0 0.0
        %2591 = vmatpush1.msra.mxu0 0.0
        %2592 = vmatprep.subr.mxu0 0.0
        %2593 = vmatpush1.msra.mxu0 0.0
        %2594 = vmatprep.subr.mxu0 0.0
        %2595 = vmatpush1.msra.mxu0 0.0
        %2596 = vmatprep.subr.mxu0 0.0
        %2597 = vmatpush1.msra.mxu0 0.0
        %2598 = vmatprep.subr.mxu0 0.0
        %2599 = vmatpush1.msra.mxu0 0.0
        %2600 = vmatprep.subr.mxu0 0.0
        %2601 = vmatpush1.msra.mxu0 0.0
        %2602 = vmatprep.subr.mxu0 0.0
        %2603 = vmatpush1.msra.mxu0 0.0
        %2604 = vmatprep.subr.mxu0 0.0
        %2605 = vmatpush1.msra.mxu0 0.0
        %2606 = vmatprep.subr.mxu0 0.0
        %2607 = vmatpush1.msra.mxu0 0.0
        %2608 = vmatprep.subr.mxu0 0.0
        %2609 = vmatpush1.msra.mxu0 0.0
        %2610 = vmatprep.subr.mxu0 0.0
        %2611 = vmatpush1.msra.mxu0 0.0
        %2612 = vmatprep.subr.mxu0 0.0
        %2613 = vmatpush1.msra.mxu0 0.0
        %2614 = vmatprep.subr.mxu0 0.0
        %2615 = vmatpush1.msra.mxu0 0.0
        %2616 = vmatprep.subr.mxu0 0.0
        %2617 = vmatpush1.msra.mxu0 0.0
        %2618 = vmatprep.subr.mxu0 0.0
        %2619 = vmatpush1.msra.mxu0 0.0
        %2620 = vmatprep.subr.mxu0 0.0
        %2621 = vmatpush1.msra.mxu0 0.0
        %2622 = vmatprep.subr.mxu0 0.0
        %2623 = vmatpush1.msra.mxu0 0.0
        %2624 = vmatprep.subr.mxu0 0.0
        %2625 = vmatpush1.msra.mxu0 0.0
        %2626 = vmatprep.subr.mxu0 0.0
        %2627 = vmatpush1.msra.mxu0 0.0
        %2628 = vmatprep.subr.mxu0 0.0
        %2629 = vmatpush1.msra.mxu0 0.0
        %2630 = vmatprep.subr.mxu0 0.0
        %2631 = vmatpush1.msra.mxu0 0.0
        %2632 = vmatprep.subr.mxu0 0.0
        %2633 = vmatpush1.msra.mxu0 0.0
        %2634 = vmatprep.subr.mxu0 0.0
        %2635 = vmatpush1.msra.mxu0 0.0
        %2636 = vmatprep.mubr.f32.mxu0 0.0
        %2637 = vmatmul.mubr.f32.gmra.mrb[0].mxu0 %v2477
        %v2638 = vpop.f32.mrb[0].mxu0
        %v2639 = vadd.f32 %v2473, %v2638
        %v2640 = vpop.f32.mrb[0].mxu0
        %2641 = vmatprep.mubr.f32.mxu0 0.0
        %2642 = vmatmul.mubr.f32.gmra.mrb[0].mxu0 %v2480
        %v2643 = vpop.f32.mrb[0].mxu0
        %v2644 = vadd.f32 %v2473, %v2643
        %v2645 = vpop.f32.mrb[0].mxu0
        %2646 = vmatprep.mubr.f32.mxu0 0.0
        %2647 = vmatmul.mubr.f32.gmra.mrb[0].mxu0 %v2483
        %v2648 = vpop.f32.mrb[0].mxu0
        %v2649 = vadd.f32 %v2473, %v2648
        %v2650 = vpop.f32.mrb[0].mxu0
        %2651 = vmatprep.mubr.f32.mxu0 0.0
        %2652 = vmatmul.mubr.f32.gmra.mrb[0].mxu0 %v2486
        %v2653 = vpop.f32.mrb[0].mxu0
        %v2654 = vadd.f32 %v2473, %v2653
        %v2655 = vpop.f32.mrb[0].mxu0
        %2656 = vmatprep.mubr.f32.mxu0 0.0
        %2657 = vmatmul.mubr.f32.gmra.mrb[0].mxu0 %v2489
        %v2658 = vpop.f32.mrb[0].mxu0
        %v2659 = vadd.f32 %v2473, %v2658
        %v2660 = vpop.f32.mrb[0].mxu0
        %2661 = vmatprep.mubr.f32.mxu0 0.0
        %2662 = vmatmul.mubr.f32.gmra.mrb[0].mxu0 %v2492
        %v2663 = vpop.f32.mrb[0].mxu0
        %v2664 = vadd.f32 %v2473, %v2663
        %v2665 = vpop.f32.mrb[0].mxu0
        %2666 = vmatprep.mubr.f32.mxu0 0.0
        %2667 = vmatmul.mubr.f32.gmra.mrb[0].mxu0 %v2495
        %v2668 = vpop.f32.mrb[0].mxu0
        %v2669 = vadd.f32 %v2473, %v2668
        %v2670 = vpop.f32.mrb[0].mxu0
        %2671 = vmatprep.mubr.f32.mxu0 0.0
        %2672 = vmatmul.mubr.f32.gmra.mrb[0].mxu0 %v2498
        %v2673 = vpop.f32.mrb[0].mxu0
        %v2674 = vadd.f32 %v2473, %v2673
        %v2675 = vpop.f32.mrb[0].mxu0
        %2676 = vmatprep.mubr.f32.mxu0 0.0
        %2677 = vmatmul.mubr.f32.gmra.mrb[0].mxu0 %v2501
        %v2678 = vpop.f32.mrb[0].mxu0
        %v2679 = vadd.f32 %v2473, %v2678
        %v2680 = vpop.f32.mrb[0].mxu0
        %2681 = vmatprep.mubr.f32.mxu0 0.0
        %2682 = vmatmul.mubr.f32.gmra.mrb[0].mxu0 %v2504
        %v2683 = vpop.f32.mrb[0].mxu0
        %v2684 = vadd.f32 %v2473, %v2683
        %v2685 = vpop.f32.mrb[0].mxu0
        %2686 = vmatprep.mubr.f32.mxu0 0.0
        %2687 = vmatmul.mubr.f32.gmra.mrb[0].mxu0 %v2507
        %v2688 = vpop.f32.mrb[0].mxu0
        %v2689 = vadd.f32 %v2473, %v2688
        %v2690 = vpop.f32.mrb[0].mxu0
        %2691 = vmatprep.mubr.f32.mxu0 0.0
        %2692 = vmatmul.mubr.f32.gmra.mrb[0].mxu0 %v2510
        %v2693 = vpop.f32.mrb[0].mxu0
        %v2694 = vadd.f32 %v2473, %v2693
        %v2695 = vpop.f32.mrb[0].mxu0
        %2696 = vmatprep.mubr.f32.mxu0 0.0
        %2697 = vmatmul.mubr.f32.gmra.mrb[0].mxu0 %v2513
        %v2698 = vpop.f32.mrb[0].mxu0
        %v2699 = vadd.f32 %v2473, %v2698
        %v2700 = vpop.f32.mrb[0].mxu0
        %2701 = vmatprep.mubr.f32.mxu0 0.0
        %2702 = vmatmul.mubr.f32.gmra.mrb[0].mxu0 %v2516
        %v2703 = vpop.f32.mrb[0].mxu0
        %v2704 = vadd.f32 %v2473, %v2703
        %v2705 = vpop.f32.mrb[0].mxu0
        %2706 = vmatprep.mubr.f32.mxu0 0.0
        %2707 = vmatmul.mubr.f32.gmra.mrb[0].mxu0 %v2519
        %v2708 = vpop.f32.mrb[0].mxu0
        %v2709 = vadd.f32 %v2473, %v2708
        %v2710 = vpop.f32.mrb[0].mxu0
        %2711 = vmatprep.mubr.f32.mxu0 0.0
        %2712 = vmatmul.mubr.f32.gmra.mrb[0].mxu0 %v2522
        %v2713 = vpop.f32.mrb[0].mxu0
        %v2714 = vadd.f32 %v2473, %v2713
        %v2715 = vpop.f32.mrb[0].mxu0
        %2716 = vmatprep.mubr.f32.mxu0 0.0
        %2717 = vmatmul.mubr.f32.gmra.mrb[0].mxu0 %v2525
        %v2718 = vpop.f32.mrb[0].mxu0
        %v2719 = vadd.f32 %v2473, %v2718
        %v2720 = vpop.f32.mrb[0].mxu0
        %2721 = vmatprep.mubr.f32.mxu0 0.0
        %2722 = vmatmul.mubr.f32.gmra.mrb[0].mxu0 %v2528
        %v2723 = vpop.f32.mrb[0].mxu0
        %v2724 = vadd.f32 %v2473, %v2723
        %v2725 = vpop.f32.mrb[0].mxu0
        %2726 = vmatprep.mubr.f32.mxu0 0.0
        %2727 = vmatmul.mubr.f32.gmra.mrb[0].mxu0 %v2531
        %v2728 = vpop.f32.mrb[0].mxu0
        %v2729 = vadd.f32 %v2473, %v2728
        %v2730 = vpop.f32.mrb[0].mxu0
        %2731 = vmatprep.mubr.f32.mxu0 0.0
        %2732 = vmatmul.mubr.f32.gmra.mrb[0].mxu0 %v2534
        %v2733 = vpop.f32.mrb[0].mxu0
        %v2734 = vadd.f32 %v2473, %v2733
        %v2735 = vpop.f32.mrb[0].mxu0
        %2736 = vmatprep.mubr.f32.mxu0 0.0
        %2737 = vmatmul.mubr.f32.gmra.mrb[0].mxu0 %v2537
        %v2738 = vpop.f32.mrb[0].mxu0
        %v2739 = vadd.f32 %v2473, %v2738
        %v2740 = vpop.f32.mrb[0].mxu0
        %2741 = vmatprep.mubr.f32.mxu0 0.0
        %2742 = vmatmul.mubr.f32.gmra.mrb[0].mxu0 %v2540
        %v2743 = vpop.f32.mrb[0].mxu0
        %v2744 = vadd.f32 %v2473, %v2743
        %v2745 = vpop.f32.mrb[0].mxu0
        %2746 = vmatprep.mubr.f32.mxu0 0.0
        %2747 = vmatmul.mubr.f32.gmra.mrb[0].mxu0 %v2543
        %v2748 = vpop.f32.mrb[0].mxu0
        %v2749 = vadd.f32 %v2473, %v2748
        %v2750 = vpop.f32.mrb[0].mxu0
        %2751 = vmatprep.mubr.f32.mxu0 0.0
        %2752 = vmatmul.mubr.f32.gmra.mrb[0].mxu0 %v2546
        %v2753 = vpop.f32.mrb[0].mxu0
        %v2754 = vadd.f32 %v2473, %v2753
        %v2755 = vpop.f32.mrb[0].mxu0
        %2756 = vmatprep.mubr.f32.mxu0 0.0
        %2757 = vmatmul.mubr.f32.gmra.mrb[0].mxu0 %v2549
        %v2758 = vpop.f32.mrb[0].mxu0
        %v2759 = vadd.f32 %v2473, %v2758
        %v2760 = vpop.f32.mrb[0].mxu0
        %2761 = vmatprep.mubr.f32.mxu0 0.0
        %2762 = vmatmul.mubr.f32.gmra.mrb[0].mxu0 %v2552
        %v2763 = vpop.f32.mrb[0].mxu0
        %v2764 = vadd.f32 %v2473, %v2763
        %v2765 = vpop.f32.mrb[0].mxu0
        %2766 = vmatprep.mubr.f32.mxu0 0.0
        %2767 = vmatmul.mubr.f32.gmra.mrb[0].mxu0 %v2555
        %v2768 = vpop.f32.mrb[0].mxu0
        %v2769 = vadd.f32 %v2473, %v2768
        %v2770 = vpop.f32.mrb[0].mxu0
        %2771 = vmatprep.mubr.f32.mxu0 0.0
        %2772 = vmatmul.mubr.f32.gmra.mrb[0].mxu0 %v2558
        %v2773 = vpop.f32.mrb[0].mxu0
        %v2774 = vadd.f32 %v2473, %v2773
        %v2775 = vpop.f32.mrb[0].mxu0
        %2776 = vmatprep.mubr.f32.mxu0 0.0
        %2777 = vmatmul.mubr.f32.gmra.mrb[0].mxu0 %v2561
        %v2778 = vpop.f32.mrb[0].mxu0
        %v2779 = vadd.f32 %v2473, %v2778
        %v2780 = vpop.f32.mrb[0].mxu0
        %2781 = vmatprep.mubr.f32.mxu0 0.0
        %2782 = vmatmul.mubr.f32.gmra.mrb[0].mxu0 %v2564
        %v2783 = vpop.f32.mrb[0].mxu0
        %v2784 = vadd.f32 %v2473, %v2783
        %v2785 = vpop.f32.mrb[0].mxu0
        %2786 = vmatprep.mubr.f32.mxu0 0.0
        %2787 = vmatmul.mubr.f32.gmra.mrb[0].mxu0 %v2567
        %v2788 = vpop.f32.mrb[0].mxu0
        %v2789 = vadd.f32 %v2473, %v2788
        %v2790 = vpop.f32.mrb[0].mxu0
        %2791 = vmatprep.mubr.f32.mxu0 0.0
        %2792 = vmatmul.mubr.f32.gmra.mrb[0].mxu0 %v2570
        %v2793 = vpop.f32.mrb[0].mxu0
        %v2794 = vadd.f32 %v2473, %v2793
        %v2795 = vpop.f32.mrb[0].mxu0
        %2796 = vdwg.mxu0
        %v2797 = vmul.f32 %v2639, 0.2
        %v2798 = vmul.f32 %v2644, 0.2
        %v2799 = vmul.f32 %v2649, 0.2
        %v2800 = vmul.f32 %v2654, 0.2
        %v2801 = vmul.f32 %v2659, 0.2
        %v2802 = vmul.f32 %v2664, 0.2
        %v2803 = vmul.f32 %v2669, 0.2
        %v2804 = vmul.f32 %v2674, 0.2
        %v2805 = vmul.f32 %v2679, 0.2
        %v2806 = vmul.f32 %v2684, 0.2
        %v2807 = vmul.f32 %v2689, 0.2
        %v2808 = vmul.f32 %v2694, 0.2
        %v2809 = vmul.f32 %v2699, 0.2
        %v2810 = vmul.f32 %v2704, 0.2
        %v2811 = vmul.f32 %v2709, 0.2
        %v2812 = vmul.f32 %v2714, 0.2
        %v2813 = vmul.f32 %v2719, 0.2
        %v2814 = vmul.f32 %v2724, 0.2
        %v2815 = vmul.f32 %v2729, 0.2
        %v2816 = vmul.f32 %v2734, 0.2
        %v2817 = vmul.f32 %v2739, 0.2
        %v2818 = vmul.f32 %v2744, 0.2
        %v2819 = vmul.f32 %v2749, 0.2
        %v2820 = vmul.f32 %v2754, 0.2
        %v2821 = vmul.f32 %v2759, 0.2
        %v2822 = vmul.f32 %v2764, 0.2
        %v2823 = vmul.f32 %v2769, 0.2
        %v2824 = vmul.f32 %v2774, 0.2
        %v2825 = vmul.f32 %v2779, 0.2
        %v2826 = vmul.f32 %v2784, 0.2
        %v2827 = vmul.f32 %v2789, 0.2
        %v2828 = vmul.f32 %v2794, 0.2
        %v2829 = vmax.f32 %v2639, %v2797
        %v2830 = vmax.f32 %v2644, %v2798
        %v2831 = vmax.f32 %v2649, %v2799
        %v2832 = vmax.f32 %v2654, %v2800
        %v2833 = vmax.f32 %v2659, %v2801
        %v2834 = vmax.f32 %v2664, %v2802
        %v2835 = vmax.f32 %v2669, %v2803
        %v2836 = vmax.f32 %v2674, %v2804
        %v2837 = vmax.f32 %v2679, %v2805
        %v2838 = vmax.f32 %v2684, %v2806
        %v2839 = vmax.f32 %v2689, %v2807
        %v2840 = vmax.f32 %v2694, %v2808
        %v2841 = vmax.f32 %v2699, %v2809
        %v2842 = vmax.f32 %v2704, %v2810
        %v2843 = vmax.f32 %v2709, %v2811
        %v2844 = vmax.f32 %v2714, %v2812
        %v2845 = vmax.f32 %v2719, %v2813
        %v2846 = vmax.f32 %v2724, %v2814
        %v2847 = vmax.f32 %v2729, %v2815
        %v2848 = vmax.f32 %v2734, %v2816
        %v2849 = vmax.f32 %v2739, %v2817
        %v2850 = vmax.f32 %v2744, %v2818
        %v2851 = vmax.f32 %v2749, %v2819
        %v2852 = vmax.f32 %v2754, %v2820
        %v2853 = vmax.f32 %v2759, %v2821
        %v2854 = vmax.f32 %v2764, %v2822
        %v2855 = vmax.f32 %v2769, %v2823
        %v2856 = vmax.f32 %v2774, %v2824
        %v2857 = vmax.f32 %v2779, %v2825
        %v2858 = vmax.f32 %v2784, %v2826
        %v2859 = vmax.f32 %v2789, %v2827
        %v2860 = vmax.f32 %v2794, %v2828
        %2861 = vst.msk [vmem:[#allocation3] sm:$0xff] %vm767, 0.0
        %2862 = vst.msk [vmem:[#allocation3 + $0x8] sm:$0x3] %vm769, 0.0
        %2863 = vst.msk [vmem:[#allocation3 + $0xa0] sm:$0xff] %vm767, 0.0
        %2864 = vst.msk [vmem:[#allocation3 + $0xa8] sm:$0x3] %vm769, 0.0
        %2865 = vst.msk [vmem:[#allocation3 + $0x140] sm:$0xff] %vm767, 0.0
        %2866 = vst.msk [vmem:[#allocation3 + $0x148] sm:$0x3] %vm769, 0.0
        %2867 = vst.msk [vmem:[#allocation3 + $0x1e0] sm:$0xff] %vm767, 0.0
        %2868 = vst.msk [vmem:[#allocation3 + $0x1e8] sm:$0x3] %vm769, 0.0
        %s2869 = scalar_lea.vmem [#allocation3], 144
        %2870 = vst.msk [vmem:[%s2869] sm:$0xff] %vm767, 0.0
        %2871 = vst.msk [vmem:[%s2869 + $0x8] sm:$0x3] %vm769, 0.0
        %2872 = vst.msk [vmem:[%s2869 + $0xa0] sm:$0xff] %vm767, 0.0
        %2873 = vst.msk [vmem:[%s2869 + $0xa8] sm:$0x3] %vm769, 0.0
        %2874 = vst.msk [vmem:[%s2869 + $0x140] sm:$0xff] %vm767, 0.0
        %2875 = vst.msk [vmem:[%s2869 + $0x148] sm:$0x3] %vm769, 0.0
        %2876 = vst.msk [vmem:[%s2869 + $0x1e0] sm:$0xff] %vm767, 0.0
        %2877 = vst.msk [vmem:[%s2869 + $0x1e8] sm:$0x3] %vm769, 0.0
        %s2878 = scalar_lea.vmem [#allocation3], 16
        %2879 = vst.msk [vmem:[%s2878] sm:$0x1] %vm787, 0.0
        %2880 = vst.msk [vmem:[%s2878 + $0x10] sm:$0x1] %vm787, 0.0
        %2881 = vst.msk [vmem:[%s2878 + $0x20] sm:$0x1] %vm787, 0.0
        %2882 = vst.msk [vmem:[%s2878 + $0x30] sm:$0x1] %vm787, 0.0
        %2883 = vst.msk [vmem:[%s2878 + $0x40] sm:$0x1] %vm787, 0.0
        %2884 = vst.msk [vmem:[%s2878 + $0x50] sm:$0x1] %vm787, 0.0
        %2885 = vst.msk [vmem:[%s2878 + $0x60] sm:$0x1] %vm787, 0.0
        %2886 = vst.msk [vmem:[%s2878 + $0x70] sm:$0x1] %vm787, 0.0
        %2887 = vst.msk [vmem:[%s2878 + $0xa0] sm:$0x1] %vm787, 0.0
        %2888 = vst.msk [vmem:[%s2878 + $0xb0] sm:$0x1] %vm787, 0.0
        %2889 = vst.msk [vmem:[%s2878 + $0xc0] sm:$0x1] %vm787, 0.0
        %2890 = vst.msk [vmem:[%s2878 + $0xd0] sm:$0x1] %vm787, 0.0
        %2891 = vst.msk [vmem:[%s2878 + $0xe0] sm:$0x1] %vm787, 0.0
        %2892 = vst.msk [vmem:[%s2878 + $0xf0] sm:$0x1] %vm787, 0.0
        %2893 = vst.msk [vmem:[%s2878 + $0x100] sm:$0x1] %vm787, 0.0
        %2894 = vst.msk [vmem:[%s2878 + $0x110] sm:$0x1] %vm787, 0.0
        %2895 = vst.msk [vmem:[%s2878 + $0x140] sm:$0x1] %vm787, 0.0
        %2896 = vst.msk [vmem:[%s2878 + $0x150] sm:$0x1] %vm787, 0.0
        %2897 = vst.msk [vmem:[%s2878 + $0x160] sm:$0x1] %vm787, 0.0
        %2898 = vst.msk [vmem:[%s2878 + $0x170] sm:$0x1] %vm787, 0.0
        %2899 = vst.msk [vmem:[%s2878 + $0x180] sm:$0x1] %vm787, 0.0
        %2900 = vst.msk [vmem:[%s2878 + $0x190] sm:$0x1] %vm787, 0.0
        %2901 = vst.msk [vmem:[%s2878 + $0x1a0] sm:$0x1] %vm787, 0.0
        %2902 = vst.msk [vmem:[%s2878 + $0x1b0] sm:$0x1] %vm787, 0.0
        %2903 = vst.msk [vmem:[%s2878 + $0x1e0] sm:$0x1] %vm787, 0.0
        %2904 = vst.msk [vmem:[%s2878 + $0x1f0] sm:$0x1] %vm787, 0.0
        %2905 = vst.msk [vmem:[%s2878 + $0x200] sm:$0x1] %vm787, 0.0
        %2906 = vst.msk [vmem:[%s2878 + $0x210] sm:$0x1] %vm787, 0.0
        %2907 = vst.msk [vmem:[%s2878 + $0x220] sm:$0x1] %vm787, 0.0
        %2908 = vst.msk [vmem:[%s2878 + $0x230] sm:$0x1] %vm787, 0.0
        %2909 = vst.msk [vmem:[%s2878 + $0x240] sm:$0x1] %vm787, 0.0
        %2910 = vst.msk [vmem:[%s2878 + $0x250] sm:$0x1] %vm787, 0.0
        %2911 = vst.msk [vmem:[%s2878 + $0x9] sm:$0x1] %vm787, 0.0
        %2912 = vst.msk [vmem:[%s2878 + $0x19] sm:$0x1] %vm787, 0.0
        %2913 = vst.msk [vmem:[%s2878 + $0x29] sm:$0x1] %vm787, 0.0
        %2914 = vst.msk [vmem:[%s2878 + $0x39] sm:$0x1] %vm787, 0.0
        %2915 = vst.msk [vmem:[%s2878 + $0x49] sm:$0x1] %vm787, 0.0
        %2916 = vst.msk [vmem:[%s2878 + $0x59] sm:$0x1] %vm787, 0.0
        %2917 = vst.msk [vmem:[%s2878 + $0x69] sm:$0x1] %vm787, 0.0
        %2918 = vst.msk [vmem:[%s2878 + $0x79] sm:$0x1] %vm787, 0.0
        %2919 = vst.msk [vmem:[%s2878 + $0xa9] sm:$0x1] %vm787, 0.0
        %2920 = vst.msk [vmem:[%s2878 + $0xb9] sm:$0x1] %vm787, 0.0
        %2921 = vst.msk [vmem:[%s2878 + $0xc9] sm:$0x1] %vm787, 0.0
        %2922 = vst.msk [vmem:[%s2878 + $0xd9] sm:$0x1] %vm787, 0.0
        %2923 = vst.msk [vmem:[%s2878 + $0xe9] sm:$0x1] %vm787, 0.0
        %2924 = vst.msk [vmem:[%s2878 + $0xf9] sm:$0x1] %vm787, 0.0
        %2925 = vst.msk [vmem:[%s2878 + $0x109] sm:$0x1] %vm787, 0.0
        %2926 = vst.msk [vmem:[%s2878 + $0x119] sm:$0x1] %vm787, 0.0
        %2927 = vst.msk [vmem:[%s2878 + $0x149] sm:$0x1] %vm787, 0.0
        %2928 = vst.msk [vmem:[%s2878 + $0x159] sm:$0x1] %vm787, 0.0
        %2929 = vst.msk [vmem:[%s2878 + $0x169] sm:$0x1] %vm787, 0.0
        %2930 = vst.msk [vmem:[%s2878 + $0x179] sm:$0x1] %vm787, 0.0
        %2931 = vst.msk [vmem:[%s2878 + $0x189] sm:$0x1] %vm787, 0.0
        %2932 = vst.msk [vmem:[%s2878 + $0x199] sm:$0x1] %vm787, 0.0
        %2933 = vst.msk [vmem:[%s2878 + $0x1a9] sm:$0x1] %vm787, 0.0
        %2934 = vst.msk [vmem:[%s2878 + $0x1b9] sm:$0x1] %vm787, 0.0
        %2935 = vst.msk [vmem:[%s2878 + $0x1e9] sm:$0x1] %vm787, 0.0
        %2936 = vst.msk [vmem:[%s2878 + $0x1f9] sm:$0x1] %vm787, 0.0
        %2937 = vst.msk [vmem:[%s2878 + $0x209] sm:$0x1] %vm787, 0.0
        %2938 = vst.msk [vmem:[%s2878 + $0x219] sm:$0x1] %vm787, 0.0
        %2939 = vst.msk [vmem:[%s2878 + $0x229] sm:$0x1] %vm787, 0.0
        %2940 = vst.msk [vmem:[%s2878 + $0x239] sm:$0x1] %vm787, 0.0
        %2941 = vst.msk [vmem:[%s2878 + $0x249] sm:$0x1] %vm787, 0.0
        %2942 = vst.msk [vmem:[%s2878 + $0x259] sm:$0x1] %vm787, 0.0
        %2943 = vst.msk [vmem:[%s2878 + $0x1] sm:$0xff] %vm767, %v2829
        %2944 = vst.msk [vmem:[%s2878 + $0x11] sm:$0xff] %vm767, %v2830
        %2945 = vst.msk [vmem:[%s2878 + $0x21] sm:$0xff] %vm767, %v2831
        %2946 = vst.msk [vmem:[%s2878 + $0x31] sm:$0xff] %vm767, %v2832
        %2947 = vst.msk [vmem:[%s2878 + $0x41] sm:$0xff] %vm767, %v2833
        %2948 = vst.msk [vmem:[%s2878 + $0x51] sm:$0xff] %vm767, %v2834
        %2949 = vst.msk [vmem:[%s2878 + $0x61] sm:$0xff] %vm767, %v2835
        %2950 = vst.msk [vmem:[%s2878 + $0x71] sm:$0xff] %vm767, %v2836
        %2951 = vst.msk [vmem:[%s2878 + $0xa1] sm:$0xff] %vm767, %v2837
        %2952 = vst.msk [vmem:[%s2878 + $0xb1] sm:$0xff] %vm767, %v2838
        %2953 = vst.msk [vmem:[%s2878 + $0xc1] sm:$0xff] %vm767, %v2839
        %2954 = vst.msk [vmem:[%s2878 + $0xd1] sm:$0xff] %vm767, %v2840
        %2955 = vst.msk [vmem:[%s2878 + $0xe1] sm:$0xff] %vm767, %v2841
        %2956 = vst.msk [vmem:[%s2878 + $0xf1] sm:$0xff] %vm767, %v2842
        %2957 = vst.msk [vmem:[%s2878 + $0x101] sm:$0xff] %vm767, %v2843
        %2958 = vst.msk [vmem:[%s2878 + $0x111] sm:$0xff] %vm767, %v2844
        %2959 = vst.msk [vmem:[%s2878 + $0x141] sm:$0xff] %vm767, %v2845
        %2960 = vst.msk [vmem:[%s2878 + $0x151] sm:$0xff] %vm767, %v2846
        %2961 = vst.msk [vmem:[%s2878 + $0x161] sm:$0xff] %vm767, %v2847
        %2962 = vst.msk [vmem:[%s2878 + $0x171] sm:$0xff] %vm767, %v2848
        %2963 = vst.msk [vmem:[%s2878 + $0x181] sm:$0xff] %vm767, %v2849
        %2964 = vst.msk [vmem:[%s2878 + $0x191] sm:$0xff] %vm767, %v2850
        %2965 = vst.msk [vmem:[%s2878 + $0x1a1] sm:$0xff] %vm767, %v2851
        %2966 = vst.msk [vmem:[%s2878 + $0x1b1] sm:$0xff] %vm767, %v2852
        %2967 = vst.msk [vmem:[%s2878 + $0x1e1] sm:$0xff] %vm767, %v2853
        %2968 = vst.msk [vmem:[%s2878 + $0x1f1] sm:$0xff] %vm767, %v2854
        %2969 = vst.msk [vmem:[%s2878 + $0x201] sm:$0xff] %vm767, %v2855
        %2970 = vst.msk [vmem:[%s2878 + $0x211] sm:$0xff] %vm767, %v2856
        %2971 = vst.msk [vmem:[%s2878 + $0x221] sm:$0xff] %vm767, %v2857
        %2972 = vst.msk [vmem:[%s2878 + $0x231] sm:$0xff] %vm767, %v2858
        %2973 = vst.msk [vmem:[%s2878 + $0x241] sm:$0xff] %vm767, %v2859
        %2974 = vst.msk [vmem:[%s2878 + $0x251] sm:$0xff] %vm767, %v2860
        %v2975 = vld [vmem:[#allocation3] ss:$2 sm:$0xf]
        %s2976 = scalar_lea.vmem [#allocation3], 32
        %v2977 = vld [vmem:[%s2976] ss:$2 sm:$0xf]
        %s2978 = scalar_lea.vmem [#allocation3], 64
        %v2979 = vld [vmem:[%s2978] ss:$2 sm:$0xf]
        %s2980 = scalar_lea.vmem [#allocation3], 96
        %v2981 = vld [vmem:[%s2980] ss:$2 sm:$0xf]
        %s2982 = scalar_lea.vmem [#allocation3], 160
        %v2983 = vld [vmem:[%s2982] ss:$2 sm:$0xf]
        %s2984 = scalar_lea.vmem [#allocation3], 192
        %v2985 = vld [vmem:[%s2984] ss:$2 sm:$0xf]
        %s2986 = scalar_lea.vmem [#allocation3], 224
        %v2987 = vld [vmem:[%s2986] ss:$2 sm:$0xf]
        %s2988 = scalar_lea.vmem [#allocation3], 256
        %v2989 = vld [vmem:[%s2988] ss:$2 sm:$0xf]
        %s2990 = scalar_lea.vmem [#allocation3], 320
        %v2991 = vld [vmem:[%s2990] ss:$2 sm:$0xf]
        %s2992 = scalar_lea.vmem [#allocation3], 352
        %v2993 = vld [vmem:[%s2992] ss:$2 sm:$0xf]
        %s2994 = scalar_lea.vmem [#allocation3], 384
        %v2995 = vld [vmem:[%s2994] ss:$2 sm:$0xf]
        %s2996 = scalar_lea.vmem [#allocation3], 416
        %v2997 = vld [vmem:[%s2996] ss:$2 sm:$0xf]
        %s2998 = scalar_lea.vmem [#allocation3], 480
        %v2999 = vld [vmem:[%s2998] ss:$2 sm:$0xf]
        %s3000 = scalar_lea.vmem [#allocation3], 512
        %v3001 = vld [vmem:[%s3000] ss:$2 sm:$0xf]
        %s3002 = scalar_lea.vmem [#allocation3], 544
        %v3003 = vld [vmem:[%s3002] ss:$2 sm:$0xf]
        %s3004 = scalar_lea.vmem [#allocation3], 576
        %v3005 = vld [vmem:[%s3004] ss:$2 sm:$0xf]
        %s3006 = scalar_lea.vmem [#allocation3], 1
        %v3007 = vld [vmem:[%s3006] ss:$2 sm:$0xf]
        %s3008 = scalar_lea.vmem [#allocation3], 33
        %v3009 = vld [vmem:[%s3008] ss:$2 sm:$0xf]
        %s3010 = scalar_lea.vmem [#allocation3], 65
        %v3011 = vld [vmem:[%s3010] ss:$2 sm:$0xf]
        %s3012 = scalar_lea.vmem [#allocation3], 97
        %v3013 = vld [vmem:[%s3012] ss:$2 sm:$0xf]
        %s3014 = scalar_lea.vmem [#allocation3], 161
        %v3015 = vld [vmem:[%s3014] ss:$2 sm:$0xf]
        %s3016 = scalar_lea.vmem [#allocation3], 193
        %v3017 = vld [vmem:[%s3016] ss:$2 sm:$0xf]
        %s3018 = scalar_lea.vmem [#allocation3], 225
        %v3019 = vld [vmem:[%s3018] ss:$2 sm:$0xf]
        %s3020 = scalar_lea.vmem [#allocation3], 257
        %v3021 = vld [vmem:[%s3020] ss:$2 sm:$0xf]
        %s3022 = scalar_lea.vmem [#allocation3], 321
        %v3023 = vld [vmem:[%s3022] ss:$2 sm:$0xf]
        %s3024 = scalar_lea.vmem [#allocation3], 353
        %v3025 = vld [vmem:[%s3024] ss:$2 sm:$0xf]
        %s3026 = scalar_lea.vmem [#allocation3], 385
        %v3027 = vld [vmem:[%s3026] ss:$2 sm:$0xf]
        %s3028 = scalar_lea.vmem [#allocation3], 417
        %v3029 = vld [vmem:[%s3028] ss:$2 sm:$0xf]
        %s3030 = scalar_lea.vmem [#allocation3], 481
        %v3031 = vld [vmem:[%s3030] ss:$2 sm:$0xf]
        %s3032 = scalar_lea.vmem [#allocation3], 513
        %v3033 = vld [vmem:[%s3032] ss:$2 sm:$0xf]
        %s3034 = scalar_lea.vmem [#allocation3], 545
        %v3035 = vld [vmem:[%s3034] ss:$2 sm:$0xf]
        %s3036 = scalar_lea.vmem [#allocation3], 577
        %v3037 = vld [vmem:[%s3036] ss:$2 sm:$0xf]
        %s3038 = scalar_lea.vmem [#allocation3], 2
        %v3039 = vld [vmem:[%s3038] ss:$2 sm:$0xf]
        %s3040 = scalar_lea.vmem [#allocation3], 34
        %v3041 = vld [vmem:[%s3040] ss:$2 sm:$0xf]
        %s3042 = scalar_lea.vmem [#allocation3], 66
        %v3043 = vld [vmem:[%s3042] ss:$2 sm:$0xf]
        %s3044 = scalar_lea.vmem [#allocation3], 98
        %v3045 = vld [vmem:[%s3044] ss:$2 sm:$0xf]
        %s3046 = scalar_lea.vmem [#allocation3], 162
        %v3047 = vld [vmem:[%s3046] ss:$2 sm:$0xf]
        %s3048 = scalar_lea.vmem [#allocation3], 194
        %v3049 = vld [vmem:[%s3048] ss:$2 sm:$0xf]
        %s3050 = scalar_lea.vmem [#allocation3], 226
        %v3051 = vld [vmem:[%s3050] ss:$2 sm:$0xf]
        %s3052 = scalar_lea.vmem [#allocation3], 258
        %v3053 = vld [vmem:[%s3052] ss:$2 sm:$0xf]
        %s3054 = scalar_lea.vmem [#allocation3], 322
        %v3055 = vld [vmem:[%s3054] ss:$2 sm:$0xf]
        %s3056 = scalar_lea.vmem [#allocation3], 354
        %v3057 = vld [vmem:[%s3056] ss:$2 sm:$0xf]
        %s3058 = scalar_lea.vmem [#allocation3], 386
        %v3059 = vld [vmem:[%s3058] ss:$2 sm:$0xf]
        %s3060 = scalar_lea.vmem [#allocation3], 418
        %v3061 = vld [vmem:[%s3060] ss:$2 sm:$0xf]
        %s3062 = scalar_lea.vmem [#allocation3], 482
        %v3063 = vld [vmem:[%s3062] ss:$2 sm:$0xf]
        %s3064 = scalar_lea.vmem [#allocation3], 514
        %v3065 = vld [vmem:[%s3064] ss:$2 sm:$0xf]
        %s3066 = scalar_lea.vmem [#allocation3], 546
        %v3067 = vld [vmem:[%s3066] ss:$2 sm:$0xf]
        %s3068 = scalar_lea.vmem [#allocation3], 578
        %v3069 = vld [vmem:[%s3068] ss:$2 sm:$0xf]
        %s3070 = scalar_lea.vmem [#allocation3], 3
        %v3071 = vld [vmem:[%s3070] ss:$2 sm:$0xf]
        %s3072 = scalar_lea.vmem [#allocation3], 35
        %v3073 = vld [vmem:[%s3072] ss:$2 sm:$0xf]
        %s3074 = scalar_lea.vmem [#allocation3], 67
        %v3075 = vld [vmem:[%s3074] ss:$2 sm:$0xf]
        %s3076 = scalar_lea.vmem [#allocation3], 99
        %v3077 = vld [vmem:[%s3076] ss:$2 sm:$0xf]
        %s3078 = scalar_lea.vmem [#allocation3], 163
        %v3079 = vld [vmem:[%s3078] ss:$2 sm:$0xf]
        %s3080 = scalar_lea.vmem [#allocation3], 195
        %v3081 = vld [vmem:[%s3080] ss:$2 sm:$0xf]
        %s3082 = scalar_lea.vmem [#allocation3], 227
        %v3083 = vld [vmem:[%s3082] ss:$2 sm:$0xf]
        %s3084 = scalar_lea.vmem [#allocation3], 259
        %v3085 = vld [vmem:[%s3084] ss:$2 sm:$0xf]
        %s3086 = scalar_lea.vmem [#allocation3], 323
        %v3087 = vld [vmem:[%s3086] ss:$2 sm:$0xf]
        %s3088 = scalar_lea.vmem [#allocation3], 355
        %v3089 = vld [vmem:[%s3088] ss:$2 sm:$0xf]
        %s3090 = scalar_lea.vmem [#allocation3], 387
        %v3091 = vld [vmem:[%s3090] ss:$2 sm:$0xf]
        %s3092 = scalar_lea.vmem [#allocation3], 419
        %v3093 = vld [vmem:[%s3092] ss:$2 sm:$0xf]
        %s3094 = scalar_lea.vmem [#allocation3], 483
        %v3095 = vld [vmem:[%s3094] ss:$2 sm:$0xf]
        %s3096 = scalar_lea.vmem [#allocation3], 515
        %v3097 = vld [vmem:[%s3096] ss:$2 sm:$0xf]
        %s3098 = scalar_lea.vmem [#allocation3], 547
        %v3099 = vld [vmem:[%s3098] ss:$2 sm:$0xf]
        %s3100 = scalar_lea.vmem [#allocation3], 579
        %v3101 = vld [vmem:[%s3100] ss:$2 sm:$0xf]
        %v3102 = vld [vmem:[%s2878] ss:$2 sm:$0xf]
        %s3103 = scalar_lea.vmem %s2878, 32 [#allocation3]
        %v3104 = vld [vmem:[%s3103] ss:$2 sm:$0xf]
        %s3105 = scalar_lea.vmem %s2878, 64 [#allocation3]
        %v3106 = vld [vmem:[%s3105] ss:$2 sm:$0xf]
        %s3107 = scalar_lea.vmem %s2878, 96 [#allocation3]
        %v3108 = vld [vmem:[%s3107] ss:$2 sm:$0xf]
        %s3109 = scalar_lea.vmem %s2878, 160 [#allocation3]
        %v3110 = vld [vmem:[%s3109] ss:$2 sm:$0xf]
        %s3111 = scalar_lea.vmem %s2878, 192 [#allocation3]
        %v3112 = vld [vmem:[%s3111] ss:$2 sm:$0xf]
        %s3113 = scalar_lea.vmem %s2878, 224 [#allocation3]
        %v3114 = vld [vmem:[%s3113] ss:$2 sm:$0xf]
        %s3115 = scalar_lea.vmem %s2878, 256 [#allocation3]
        %v3116 = vld [vmem:[%s3115] ss:$2 sm:$0xf]
        %s3117 = scalar_lea.vmem %s2878, 320 [#allocation3]
        %v3118 = vld [vmem:[%s3117] ss:$2 sm:$0xf]
        %s3119 = scalar_lea.vmem %s2878, 352 [#allocation3]
        %v3120 = vld [vmem:[%s3119] ss:$2 sm:$0xf]
        %s3121 = scalar_lea.vmem %s2878, 384 [#allocation3]
        %v3122 = vld [vmem:[%s3121] ss:$2 sm:$0xf]
        %s3123 = scalar_lea.vmem %s2878, 416 [#allocation3]
        %v3124 = vld [vmem:[%s3123] ss:$2 sm:$0xf]
        %s3125 = scalar_lea.vmem %s2878, 480 [#allocation3]
        %v3126 = vld [vmem:[%s3125] ss:$2 sm:$0xf]
        %s3127 = scalar_lea.vmem %s2878, 512 [#allocation3]
        %v3128 = vld [vmem:[%s3127] ss:$2 sm:$0xf]
        %s3129 = scalar_lea.vmem %s2878, 544 [#allocation3]
        %v3130 = vld [vmem:[%s3129] ss:$2 sm:$0xf]
        %s3131 = scalar_lea.vmem %s2878, 576 [#allocation3]
        %v3132 = vld [vmem:[%s3131] ss:$2 sm:$0xf]
        %s3133 = scalar_lea.vmem %s2878, 1 [#allocation3]
        %v3134 = vld [vmem:[%s3133] ss:$2 sm:$0xf]
        %s3135 = scalar_lea.vmem %s2878, 33 [#allocation3]
        %v3136 = vld [vmem:[%s3135] ss:$2 sm:$0xf]
        %s3137 = scalar_lea.vmem %s2878, 65 [#allocation3]
        %v3138 = vld [vmem:[%s3137] ss:$2 sm:$0xf]
        %s3139 = scalar_lea.vmem %s2878, 97 [#allocation3]
        %v3140 = vld [vmem:[%s3139] ss:$2 sm:$0xf]
        %s3141 = scalar_lea.vmem %s2878, 161 [#allocation3]
        %v3142 = vld [vmem:[%s3141] ss:$2 sm:$0xf]
        %s3143 = scalar_lea.vmem %s2878, 193 [#allocation3]
        %v3144 = vld [vmem:[%s3143] ss:$2 sm:$0xf]
        %s3145 = scalar_lea.vmem %s2878, 225 [#allocation3]
        %v3146 = vld [vmem:[%s3145] ss:$2 sm:$0xf]
        %s3147 = scalar_lea.vmem %s2878, 257 [#allocation3]
        %v3148 = vld [vmem:[%s3147] ss:$2 sm:$0xf]
        %s3149 = scalar_lea.vmem %s2878, 321 [#allocation3]
        %v3150 = vld [vmem:[%s3149] ss:$2 sm:$0xf]
        %s3151 = scalar_lea.vmem %s2878, 353 [#allocation3]
        %v3152 = vld [vmem:[%s3151] ss:$2 sm:$0xf]
        %s3153 = scalar_lea.vmem %s2878, 385 [#allocation3]
        %v3154 = vld [vmem:[%s3153] ss:$2 sm:$0xf]
        %s3155 = scalar_lea.vmem %s2878, 417 [#allocation3]
        %v3156 = vld [vmem:[%s3155] ss:$2 sm:$0xf]
        %s3157 = scalar_lea.vmem %s2878, 481 [#allocation3]
        %v3158 = vld [vmem:[%s3157] ss:$2 sm:$0xf]
        %s3159 = scalar_lea.vmem %s2878, 513 [#allocation3]
        %v3160 = vld [vmem:[%s3159] ss:$2 sm:$0xf]
        %s3161 = scalar_lea.vmem %s2878, 545 [#allocation3]
        %v3162 = vld [vmem:[%s3161] ss:$2 sm:$0xf]
        %s3163 = scalar_lea.vmem %s2878, 577 [#allocation3]
        %v3164 = vld [vmem:[%s3163] ss:$2 sm:$0xf]
        %s3165 = scalar_lea.vmem %s2878, 2 [#allocation3]
        %v3166 = vld [vmem:[%s3165] ss:$2 sm:$0xf]
        %s3167 = scalar_lea.vmem %s2878, 34 [#allocation3]
        %v3168 = vld [vmem:[%s3167] ss:$2 sm:$0xf]
        %s3169 = scalar_lea.vmem %s2878, 66 [#allocation3]
        %v3170 = vld [vmem:[%s3169] ss:$2 sm:$0xf]
        %s3171 = scalar_lea.vmem %s2878, 98 [#allocation3]
        %v3172 = vld [vmem:[%s3171] ss:$2 sm:$0xf]
        %s3173 = scalar_lea.vmem %s2878, 162 [#allocation3]
        %v3174 = vld [vmem:[%s3173] ss:$2 sm:$0xf]
        %s3175 = scalar_lea.vmem %s2878, 194 [#allocation3]
        %v3176 = vld [vmem:[%s3175] ss:$2 sm:$0xf]
        %s3177 = scalar_lea.vmem %s2878, 226 [#allocation3]
        %v3178 = vld [vmem:[%s3177] ss:$2 sm:$0xf]
        %s3179 = scalar_lea.vmem %s2878, 258 [#allocation3]
        %v3180 = vld [vmem:[%s3179] ss:$2 sm:$0xf]
        %s3181 = scalar_lea.vmem %s2878, 322 [#allocation3]
        %v3182 = vld [vmem:[%s3181] ss:$2 sm:$0xf]
        %s3183 = scalar_lea.vmem %s2878, 354 [#allocation3]
        %v3184 = vld [vmem:[%s3183] ss:$2 sm:$0xf]
        %s3185 = scalar_lea.vmem %s2878, 386 [#allocation3]
        %v3186 = vld [vmem:[%s3185] ss:$2 sm:$0xf]
        %s3187 = scalar_lea.vmem %s2878, 418 [#allocation3]
        %v3188 = vld [vmem:[%s3187] ss:$2 sm:$0xf]
        %s3189 = scalar_lea.vmem %s2878, 482 [#allocation3]
        %v3190 = vld [vmem:[%s3189] ss:$2 sm:$0xf]
        %s3191 = scalar_lea.vmem %s2878, 514 [#allocation3]
        %v3192 = vld [vmem:[%s3191] ss:$2 sm:$0xf]
        %s3193 = scalar_lea.vmem %s2878, 546 [#allocation3]
        %v3194 = vld [vmem:[%s3193] ss:$2 sm:$0xf]
        %s3195 = scalar_lea.vmem %s2878, 578 [#allocation3]
        %v3196 = vld [vmem:[%s3195] ss:$2 sm:$0xf]
        %s3197 = scalar_lea.vmem %s2878, 3 [#allocation3]
        %v3198 = vld [vmem:[%s3197] ss:$2 sm:$0xf]
        %s3199 = scalar_lea.vmem %s2878, 35 [#allocation3]
        %v3200 = vld [vmem:[%s3199] ss:$2 sm:$0xf]
        %s3201 = scalar_lea.vmem %s2878, 67 [#allocation3]
        %v3202 = vld [vmem:[%s3201] ss:$2 sm:$0xf]
        %s3203 = scalar_lea.vmem %s2878, 99 [#allocation3]
        %v3204 = vld [vmem:[%s3203] ss:$2 sm:$0xf]
        %s3205 = scalar_lea.vmem %s2878, 163 [#allocation3]
        %v3206 = vld [vmem:[%s3205] ss:$2 sm:$0xf]
        %s3207 = scalar_lea.vmem %s2878, 195 [#allocation3]
        %v3208 = vld [vmem:[%s3207] ss:$2 sm:$0xf]
        %s3209 = scalar_lea.vmem %s2878, 227 [#allocation3]
        %v3210 = vld [vmem:[%s3209] ss:$2 sm:$0xf]
        %s3211 = scalar_lea.vmem %s2878, 259 [#allocation3]
        %v3212 = vld [vmem:[%s3211] ss:$2 sm:$0xf]
        %s3213 = scalar_lea.vmem %s2878, 323 [#allocation3]
        %v3214 = vld [vmem:[%s3213] ss:$2 sm:$0xf]
        %s3215 = scalar_lea.vmem %s2878, 355 [#allocation3]
        %v3216 = vld [vmem:[%s3215] ss:$2 sm:$0xf]
        %s3217 = scalar_lea.vmem %s2878, 387 [#allocation3]
        %v3218 = vld [vmem:[%s3217] ss:$2 sm:$0xf]
        %s3219 = scalar_lea.vmem %s2878, 419 [#allocation3]
        %v3220 = vld [vmem:[%s3219] ss:$2 sm:$0xf]
        %s3221 = scalar_lea.vmem %s2878, 483 [#allocation3]
        %v3222 = vld [vmem:[%s3221] ss:$2 sm:$0xf]
        %s3223 = scalar_lea.vmem %s2878, 515 [#allocation3]
        %v3224 = vld [vmem:[%s3223] ss:$2 sm:$0xf]
        %s3225 = scalar_lea.vmem %s2878, 547 [#allocation3]
        %v3226 = vld [vmem:[%s3225] ss:$2 sm:$0xf]
        %s3227 = scalar_lea.vmem %s2878, 579 [#allocation3]
        %v3228 = vld [vmem:[%s3227] ss:$2 sm:$0xf]
        %s3229 = scalar_lea.vmem [#allocation3], 32
        %v3230 = vld [vmem:[%s3229] ss:$2 sm:$0xf]
        %s3231 = scalar_lea.vmem %s3229, 32 [#allocation3]
        %v3232 = vld [vmem:[%s3231] ss:$2 sm:$0xf]
        %s3233 = scalar_lea.vmem %s3229, 64 [#allocation3]
        %v3234 = vld [vmem:[%s3233] ss:$2 sm:$0xf]
        %s3235 = scalar_lea.vmem %s3229, 96 [#allocation3]
        %v3236 = vld [vmem:[%s3235] ss:$2 sm:$0xf]
        %s3237 = scalar_lea.vmem %s3229, 160 [#allocation3]
        %v3238 = vld [vmem:[%s3237] ss:$2 sm:$0xf]
        %s3239 = scalar_lea.vmem %s3229, 192 [#allocation3]
        %v3240 = vld [vmem:[%s3239] ss:$2 sm:$0xf]
        %s3241 = scalar_lea.vmem %s3229, 224 [#allocation3]
        %v3242 = vld [vmem:[%s3241] ss:$2 sm:$0xf]
        %s3243 = scalar_lea.vmem %s3229, 256 [#allocation3]
        %v3244 = vld [vmem:[%s3243] ss:$2 sm:$0xf]
        %s3245 = scalar_lea.vmem %s3229, 320 [#allocation3]
        %v3246 = vld [vmem:[%s3245] ss:$2 sm:$0xf]
        %s3247 = scalar_lea.vmem %s3229, 352 [#allocation3]
        %v3248 = vld [vmem:[%s3247] ss:$2 sm:$0xf]
        %s3249 = scalar_lea.vmem %s3229, 384 [#allocation3]
        %v3250 = vld [vmem:[%s3249] ss:$2 sm:$0xf]
        %s3251 = scalar_lea.vmem %s3229, 416 [#allocation3]
        %v3252 = vld [vmem:[%s3251] ss:$2 sm:$0xf]
        %s3253 = scalar_lea.vmem %s3229, 480 [#allocation3]
        %v3254 = vld [vmem:[%s3253] ss:$2 sm:$0xf]
        %s3255 = scalar_lea.vmem %s3229, 512 [#allocation3]
        %v3256 = vld [vmem:[%s3255] ss:$2 sm:$0xf]
        %s3257 = scalar_lea.vmem %s3229, 544 [#allocation3]
        %v3258 = vld [vmem:[%s3257] ss:$2 sm:$0xf]
        %s3259 = scalar_lea.vmem %s3229, 576 [#allocation3]
        %v3260 = vld [vmem:[%s3259] ss:$2 sm:$0xf]
        %s3261 = scalar_lea.vmem %s3229, 1 [#allocation3]
        %v3262 = vld [vmem:[%s3261] ss:$2 sm:$0xf]
        %s3263 = scalar_lea.vmem %s3229, 33 [#allocation3]
        %v3264 = vld [vmem:[%s3263] ss:$2 sm:$0xf]
        %s3265 = scalar_lea.vmem %s3229, 65 [#allocation3]
        %v3266 = vld [vmem:[%s3265] ss:$2 sm:$0xf]
        %s3267 = scalar_lea.vmem %s3229, 97 [#allocation3]
        %v3268 = vld [vmem:[%s3267] ss:$2 sm:$0xf]
        %s3269 = scalar_lea.vmem %s3229, 161 [#allocation3]
        %v3270 = vld [vmem:[%s3269] ss:$2 sm:$0xf]
        %s3271 = scalar_lea.vmem %s3229, 193 [#allocation3]
        %v3272 = vld [vmem:[%s3271] ss:$2 sm:$0xf]
        %s3273 = scalar_lea.vmem %s3229, 225 [#allocation3]
        %v3274 = vld [vmem:[%s3273] ss:$2 sm:$0xf]
        %s3275 = scalar_lea.vmem %s3229, 257 [#allocation3]
        %v3276 = vld [vmem:[%s3275] ss:$2 sm:$0xf]
        %s3277 = scalar_lea.vmem %s3229, 321 [#allocation3]
        %v3278 = vld [vmem:[%s3277] ss:$2 sm:$0xf]
        %s3279 = scalar_lea.vmem %s3229, 353 [#allocation3]
        %v3280 = vld [vmem:[%s3279] ss:$2 sm:$0xf]
        %s3281 = scalar_lea.vmem %s3229, 385 [#allocation3]
        %v3282 = vld [vmem:[%s3281] ss:$2 sm:$0xf]
        %s3283 = scalar_lea.vmem %s3229, 417 [#allocation3]
        %v3284 = vld [vmem:[%s3283] ss:$2 sm:$0xf]
        %s3285 = scalar_lea.vmem %s3229, 481 [#allocation3]
        %v3286 = vld [vmem:[%s3285] ss:$2 sm:$0xf]
        %s3287 = scalar_lea.vmem %s3229, 513 [#allocation3]
        %v3288 = vld [vmem:[%s3287] ss:$2 sm:$0xf]
        %s3289 = scalar_lea.vmem %s3229, 545 [#allocation3]
        %v3290 = vld [vmem:[%s3289] ss:$2 sm:$0xf]
        %s3291 = scalar_lea.vmem %s3229, 577 [#allocation3]
        %v3292 = vld [vmem:[%s3291] ss:$2 sm:$0xf]
        %s3293 = scalar_lea.vmem %s3229, 2 [#allocation3]
        %v3294 = vld [vmem:[%s3293] ss:$2 sm:$0xf]
        %s3295 = scalar_lea.vmem %s3229, 34 [#allocation3]
        %v3296 = vld [vmem:[%s3295] ss:$2 sm:$0xf]
        %s3297 = scalar_lea.vmem %s3229, 66 [#allocation3]
        %v3298 = vld [vmem:[%s3297] ss:$2 sm:$0xf]
        %s3299 = scalar_lea.vmem %s3229, 98 [#allocation3]
        %v3300 = vld [vmem:[%s3299] ss:$2 sm:$0xf]
        %s3301 = scalar_lea.vmem %s3229, 162 [#allocation3]
        %v3302 = vld [vmem:[%s3301] ss:$2 sm:$0xf]
        %s3303 = scalar_lea.vmem %s3229, 194 [#allocation3]
        %v3304 = vld [vmem:[%s3303] ss:$2 sm:$0xf]
        %s3305 = scalar_lea.vmem %s3229, 226 [#allocation3]
        %v3306 = vld [vmem:[%s3305] ss:$2 sm:$0xf]
        %s3307 = scalar_lea.vmem %s3229, 258 [#allocation3]
        %v3308 = vld [vmem:[%s3307] ss:$2 sm:$0xf]
        %s3309 = scalar_lea.vmem %s3229, 322 [#allocation3]
        %v3310 = vld [vmem:[%s3309] ss:$2 sm:$0xf]
        %s3311 = scalar_lea.vmem %s3229, 354 [#allocation3]
        %v3312 = vld [vmem:[%s3311] ss:$2 sm:$0xf]
        %s3313 = scalar_lea.vmem %s3229, 386 [#allocation3]
        %v3314 = vld [vmem:[%s3313] ss:$2 sm:$0xf]
        %s3315 = scalar_lea.vmem %s3229, 418 [#allocation3]
        %v3316 = vld [vmem:[%s3315] ss:$2 sm:$0xf]
        %s3317 = scalar_lea.vmem %s3229, 482 [#allocation3]
        %v3318 = vld [vmem:[%s3317] ss:$2 sm:$0xf]
        %s3319 = scalar_lea.vmem %s3229, 514 [#allocation3]
        %v3320 = vld [vmem:[%s3319] ss:$2 sm:$0xf]
        %s3321 = scalar_lea.vmem %s3229, 546 [#allocation3]
        %v3322 = vld [vmem:[%s3321] ss:$2 sm:$0xf]
        %s3323 = scalar_lea.vmem %s3229, 578 [#allocation3]
        %v3324 = vld [vmem:[%s3323] ss:$2 sm:$0xf]
        %s3325 = scalar_lea.vmem %s3229, 3 [#allocation3]
        %v3326 = vld [vmem:[%s3325] ss:$2 sm:$0xf]
        %s3327 = scalar_lea.vmem %s3229, 35 [#allocation3]
        %v3328 = vld [vmem:[%s3327] ss:$2 sm:$0xf]
        %s3329 = scalar_lea.vmem %s3229, 67 [#allocation3]
        %v3330 = vld [vmem:[%s3329] ss:$2 sm:$0xf]
        %s3331 = scalar_lea.vmem %s3229, 99 [#allocation3]
        %v3332 = vld [vmem:[%s3331] ss:$2 sm:$0xf]
        %s3333 = scalar_lea.vmem %s3229, 163 [#allocation3]
        %v3334 = vld [vmem:[%s3333] ss:$2 sm:$0xf]
        %s3335 = scalar_lea.vmem %s3229, 195 [#allocation3]
        %v3336 = vld [vmem:[%s3335] ss:$2 sm:$0xf]
        %s3337 = scalar_lea.vmem %s3229, 227 [#allocation3]
        %v3338 = vld [vmem:[%s3337] ss:$2 sm:$0xf]
        %s3339 = scalar_lea.vmem %s3229, 259 [#allocation3]
        %v3340 = vld [vmem:[%s3339] ss:$2 sm:$0xf]
        %s3341 = scalar_lea.vmem %s3229, 323 [#allocation3]
        %v3342 = vld [vmem:[%s3341] ss:$2 sm:$0xf]
        %s3343 = scalar_lea.vmem %s3229, 355 [#allocation3]
        %v3344 = vld [vmem:[%s3343] ss:$2 sm:$0xf]
        %s3345 = scalar_lea.vmem %s3229, 387 [#allocation3]
        %v3346 = vld [vmem:[%s3345] ss:$2 sm:$0xf]
        %s3347 = scalar_lea.vmem %s3229, 419 [#allocation3]
        %v3348 = vld [vmem:[%s3347] ss:$2 sm:$0xf]
        %s3349 = scalar_lea.vmem %s3229, 483 [#allocation3]
        %v3350 = vld [vmem:[%s3349] ss:$2 sm:$0xf]
        %s3351 = scalar_lea.vmem %s3229, 515 [#allocation3]
        %v3352 = vld [vmem:[%s3351] ss:$2 sm:$0xf]
        %s3353 = scalar_lea.vmem %s3229, 547 [#allocation3]
        %v3354 = vld [vmem:[%s3353] ss:$2 sm:$0xf]
        %s3355 = scalar_lea.vmem %s3229, 579 [#allocation3]
        %v3356 = vld [vmem:[%s3355] ss:$2 sm:$0xf]
        %s3357 = scalar_lea.vmem [#allocation3], 48
        %v3358 = vld [vmem:[%s3357] ss:$2 sm:$0xf]
        %s3359 = scalar_lea.vmem %s3357, 32 [#allocation3]
        %v3360 = vld [vmem:[%s3359] ss:$2 sm:$0xf]
        %s3361 = scalar_lea.vmem %s3357, 64 [#allocation3]
        %v3362 = vld [vmem:[%s3361] ss:$2 sm:$0xf]
        %s3363 = scalar_lea.vmem %s3357, 96 [#allocation3]
        %v3364 = vld [vmem:[%s3363] ss:$2 sm:$0xf]
        %s3365 = scalar_lea.vmem %s3357, 160 [#allocation3]
        %v3366 = vld [vmem:[%s3365] ss:$2 sm:$0xf]
        %s3367 = scalar_lea.vmem %s3357, 192 [#allocation3]
        %v3368 = vld [vmem:[%s3367] ss:$2 sm:$0xf]
        %s3369 = scalar_lea.vmem %s3357, 224 [#allocation3]
        %v3370 = vld [vmem:[%s3369] ss:$2 sm:$0xf]
        %s3371 = scalar_lea.vmem %s3357, 256 [#allocation3]
        %v3372 = vld [vmem:[%s3371] ss:$2 sm:$0xf]
        %s3373 = scalar_lea.vmem %s3357, 320 [#allocation3]
        %v3374 = vld [vmem:[%s3373] ss:$2 sm:$0xf]
        %s3375 = scalar_lea.vmem %s3357, 352 [#allocation3]
        %v3376 = vld [vmem:[%s3375] ss:$2 sm:$0xf]
        %s3377 = scalar_lea.vmem %s3357, 384 [#allocation3]
        %v3378 = vld [vmem:[%s3377] ss:$2 sm:$0xf]
        %s3379 = scalar_lea.vmem %s3357, 416 [#allocation3]
        %v3380 = vld [vmem:[%s3379] ss:$2 sm:$0xf]
        %s3381 = scalar_lea.vmem %s3357, 480 [#allocation3]
        %v3382 = vld [vmem:[%s3381] ss:$2 sm:$0xf]
        %s3383 = scalar_lea.vmem %s3357, 512 [#allocation3]
        %v3384 = vld [vmem:[%s3383] ss:$2 sm:$0xf]
        %s3385 = scalar_lea.vmem %s3357, 544 [#allocation3]
        %v3386 = vld [vmem:[%s3385] ss:$2 sm:$0xf]
        %s3387 = scalar_lea.vmem %s3357, 576 [#allocation3]
        %v3388 = vld [vmem:[%s3387] ss:$2 sm:$0xf]
        %s3389 = scalar_lea.vmem %s3357, 1 [#allocation3]
        %v3390 = vld [vmem:[%s3389] ss:$2 sm:$0xf]
        %s3391 = scalar_lea.vmem %s3357, 33 [#allocation3]
        %v3392 = vld [vmem:[%s3391] ss:$2 sm:$0xf]
        %s3393 = scalar_lea.vmem %s3357, 65 [#allocation3]
        %v3394 = vld [vmem:[%s3393] ss:$2 sm:$0xf]
        %s3395 = scalar_lea.vmem %s3357, 97 [#allocation3]
        %v3396 = vld [vmem:[%s3395] ss:$2 sm:$0xf]
        %s3397 = scalar_lea.vmem %s3357, 161 [#allocation3]
        %v3398 = vld [vmem:[%s3397] ss:$2 sm:$0xf]
        %s3399 = scalar_lea.vmem %s3357, 193 [#allocation3]
        %v3400 = vld [vmem:[%s3399] ss:$2 sm:$0xf]
        %s3401 = scalar_lea.vmem %s3357, 225 [#allocation3]
        %v3402 = vld [vmem:[%s3401] ss:$2 sm:$0xf]
        %s3403 = scalar_lea.vmem %s3357, 257 [#allocation3]
        %v3404 = vld [vmem:[%s3403] ss:$2 sm:$0xf]
        %s3405 = scalar_lea.vmem %s3357, 321 [#allocation3]
        %v3406 = vld [vmem:[%s3405] ss:$2 sm:$0xf]
        %s3407 = scalar_lea.vmem %s3357, 353 [#allocation3]
        %v3408 = vld [vmem:[%s3407] ss:$2 sm:$0xf]
        %s3409 = scalar_lea.vmem %s3357, 385 [#allocation3]
        %v3410 = vld [vmem:[%s3409] ss:$2 sm:$0xf]
        %s3411 = scalar_lea.vmem %s3357, 417 [#allocation3]
        %v3412 = vld [vmem:[%s3411] ss:$2 sm:$0xf]
        %s3413 = scalar_lea.vmem %s3357, 481 [#allocation3]
        %v3414 = vld [vmem:[%s3413] ss:$2 sm:$0xf]
        %s3415 = scalar_lea.vmem %s3357, 513 [#allocation3]
        %v3416 = vld [vmem:[%s3415] ss:$2 sm:$0xf]
        %s3417 = scalar_lea.vmem %s3357, 545 [#allocation3]
        %v3418 = vld [vmem:[%s3417] ss:$2 sm:$0xf]
        %s3419 = scalar_lea.vmem %s3357, 577 [#allocation3]
        %v3420 = vld [vmem:[%s3419] ss:$2 sm:$0xf]
        %s3421 = scalar_lea.vmem %s3357, 2 [#allocation3]
        %v3422 = vld [vmem:[%s3421] ss:$2 sm:$0xf]
        %s3423 = scalar_lea.vmem %s3357, 34 [#allocation3]
        %v3424 = vld [vmem:[%s3423] ss:$2 sm:$0xf]
        %s3425 = scalar_lea.vmem %s3357, 66 [#allocation3]
        %v3426 = vld [vmem:[%s3425] ss:$2 sm:$0xf]
        %s3427 = scalar_lea.vmem %s3357, 98 [#allocation3]
        %v3428 = vld [vmem:[%s3427] ss:$2 sm:$0xf]
        %s3429 = scalar_lea.vmem %s3357, 162 [#allocation3]
        %v3430 = vld [vmem:[%s3429] ss:$2 sm:$0xf]
        %s3431 = scalar_lea.vmem %s3357, 194 [#allocation3]
        %v3432 = vld [vmem:[%s3431] ss:$2 sm:$0xf]
        %s3433 = scalar_lea.vmem %s3357, 226 [#allocation3]
        %v3434 = vld [vmem:[%s3433] ss:$2 sm:$0xf]
        %s3435 = scalar_lea.vmem %s3357, 258 [#allocation3]
        %v3436 = vld [vmem:[%s3435] ss:$2 sm:$0xf]
        %s3437 = scalar_lea.vmem %s3357, 322 [#allocation3]
        %v3438 = vld [vmem:[%s3437] ss:$2 sm:$0xf]
        %s3439 = scalar_lea.vmem %s3357, 354 [#allocation3]
        %v3440 = vld [vmem:[%s3439] ss:$2 sm:$0xf]
        %s3441 = scalar_lea.vmem %s3357, 386 [#allocation3]
        %v3442 = vld [vmem:[%s3441] ss:$2 sm:$0xf]
        %s3443 = scalar_lea.vmem %s3357, 418 [#allocation3]
        %v3444 = vld [vmem:[%s3443] ss:$2 sm:$0xf]
        %s3445 = scalar_lea.vmem %s3357, 482 [#allocation3]
        %v3446 = vld [vmem:[%s3445] ss:$2 sm:$0xf]
        %s3447 = scalar_lea.vmem %s3357, 514 [#allocation3]
        %v3448 = vld [vmem:[%s3447] ss:$2 sm:$0xf]
        %s3449 = scalar_lea.vmem %s3357, 546 [#allocation3]
        %v3450 = vld [vmem:[%s3449] ss:$2 sm:$0xf]
        %s3451 = scalar_lea.vmem %s3357, 578 [#allocation3]
        %v3452 = vld [vmem:[%s3451] ss:$2 sm:$0xf]
        %s3453 = scalar_lea.vmem %s3357, 3 [#allocation3]
        %v3454 = vld [vmem:[%s3453] ss:$2 sm:$0xf]
        %s3455 = scalar_lea.vmem %s3357, 35 [#allocation3]
        %v3456 = vld [vmem:[%s3455] ss:$2 sm:$0xf]
        %s3457 = scalar_lea.vmem %s3357, 67 [#allocation3]
        %v3458 = vld [vmem:[%s3457] ss:$2 sm:$0xf]
        %s3459 = scalar_lea.vmem %s3357, 99 [#allocation3]
        %v3460 = vld [vmem:[%s3459] ss:$2 sm:$0xf]
        %s3461 = scalar_lea.vmem %s3357, 163 [#allocation3]
        %v3462 = vld [vmem:[%s3461] ss:$2 sm:$0xf]
        %s3463 = scalar_lea.vmem %s3357, 195 [#allocation3]
        %v3464 = vld [vmem:[%s3463] ss:$2 sm:$0xf]
        %s3465 = scalar_lea.vmem %s3357, 227 [#allocation3]
        %v3466 = vld [vmem:[%s3465] ss:$2 sm:$0xf]
        %s3467 = scalar_lea.vmem %s3357, 259 [#allocation3]
        %v3468 = vld [vmem:[%s3467] ss:$2 sm:$0xf]
        %s3469 = scalar_lea.vmem %s3357, 323 [#allocation3]
        %v3470 = vld [vmem:[%s3469] ss:$2 sm:$0xf]
        %s3471 = scalar_lea.vmem %s3357, 355 [#allocation3]
        %v3472 = vld [vmem:[%s3471] ss:$2 sm:$0xf]
        %s3473 = scalar_lea.vmem %s3357, 387 [#allocation3]
        %v3474 = vld [vmem:[%s3473] ss:$2 sm:$0xf]
        %s3475 = scalar_lea.vmem %s3357, 419 [#allocation3]
        %v3476 = vld [vmem:[%s3475] ss:$2 sm:$0xf]
        %s3477 = scalar_lea.vmem %s3357, 483 [#allocation3]
        %v3478 = vld [vmem:[%s3477] ss:$2 sm:$0xf]
        %s3479 = scalar_lea.vmem %s3357, 515 [#allocation3]
        %v3480 = vld [vmem:[%s3479] ss:$2 sm:$0xf]
        %s3481 = scalar_lea.vmem %s3357, 547 [#allocation3]
        %v3482 = vld [vmem:[%s3481] ss:$2 sm:$0xf]
        %s3483 = scalar_lea.vmem %s3357, 579 [#allocation3]
        %v3484 = vld [vmem:[%s3483] ss:$2 sm:$0xf]
        %v3485 = vld [vmem:[%s5] sm:$0xff]
        %v3486 = vld [vmem:[%s5 + $0x8] sm:$0xff]
        %v3487 = vld [vmem:[%s5 + $0x10] sm:$0xff]
        %v3488 = vld [vmem:[%s5 + $0x18] sm:$0xff]
        %v3489 = vld [vmem:[%s5 + $0x20] sm:$0xff]
        %v3490 = vld [vmem:[%s5 + $0x28] sm:$0xff]
        %v3491 = vld [vmem:[%s5 + $0x30] sm:$0xff]
        %v3492 = vld [vmem:[%s5 + $0x38] sm:$0xff]
        %v3493 = vld [vmem:[%s5 + $0x40] sm:$0xff]
        %v3494 = vld [vmem:[%s5 + $0x48] sm:$0xff]
        %v3495 = vld [vmem:[%s5 + $0x50] sm:$0xff]
        %v3496 = vld [vmem:[%s5 + $0x58] sm:$0xff]
        %v3497 = vld [vmem:[%s5 + $0x60] sm:$0xff]
        %v3498 = vld [vmem:[%s5 + $0x68] sm:$0xff]
        %v3499 = vld [vmem:[%s5 + $0x70] sm:$0xff]
        %v3500 = vld [vmem:[%s5 + $0x78] sm:$0xff]
        %v3517 = vcombine.low %v2975, %v2977
        %v3518 = vcombine.low %v2979, %v2981
        %v3519 = vcombine.low %v2983, %v2985
        %v3520 = vcombine.low %v2987, %v2989
        %v3521 = vcombine.low %v2991, %v2993
        %v3522 = vcombine.low %v2995, %v2997
        %v3523 = vcombine.low %v2999, %v3001
        %v3524 = vcombine.low %v3003, %v3005
        %v3549 = vcombine.low %v3007, %v3009
        %v3550 = vcombine.low %v3011, %v3013
        %v3551 = vcombine.low %v3015, %v3017
        %v3552 = vcombine.low %v3019, %v3021
        %v3553 = vcombine.low %v3023, %v3025
        %v3554 = vcombine.low %v3027, %v3029
        %v3555 = vcombine.low %v3031, %v3033
        %v3556 = vcombine.low %v3035, %v3037
        %3557 = vrot.lane.b32.xlu0 %v3549, 8
        %v3558 = vpop.permute.xlu0 %3557
        %3559 = vrot.lane.b32.xlu0 %v3550, 8
        %v3560 = vpop.permute.xlu0 %3559
        %3561 = vrot.lane.b32.xlu0 %v3551, 8
        %v3562 = vpop.permute.xlu0 %3561
        %3563 = vrot.lane.b32.xlu0 %v3552, 8
        %v3564 = vpop.permute.xlu0 %3563
        %3565 = vrot.lane.b32.xlu0 %v3553, 8
        %v3566 = vpop.permute.xlu0 %3565
        %3567 = vrot.lane.b32.xlu0 %v3554, 8
        %v3568 = vpop.permute.xlu0 %3567
        %3569 = vrot.lane.b32.xlu0 %v3555, 8
        %v3570 = vpop.permute.xlu0 %3569
        %3571 = vrot.lane.b32.xlu0 %v3556, 8
        %v3572 = vpop.permute.xlu0 %3571
        %v3597 = vcombine.low %v3039, %v3041
        %v3598 = vcombine.low %v3043, %v3045
        %v3599 = vcombine.low %v3047, %v3049
        %v3600 = vcombine.low %v3051, %v3053
        %v3601 = vcombine.low %v3055, %v3057
        %v3602 = vcombine.low %v3059, %v3061
        %v3603 = vcombine.low %v3063, %v3065
        %v3604 = vcombine.low %v3067, %v3069
        %3605 = vrot.lane.b32.xlu0 %v3597, 16
        %v3606 = vpop.permute.xlu0 %3605
        %3607 = vrot.lane.b32.xlu0 %v3598, 16
        %v3608 = vpop.permute.xlu0 %3607
        %3609 = vrot.lane.b32.xlu0 %v3599, 16
        %v3610 = vpop.permute.xlu0 %3609
        %3611 = vrot.lane.b32.xlu0 %v3600, 16
        %v3612 = vpop.permute.xlu0 %3611
        %3613 = vrot.lane.b32.xlu0 %v3601, 16
        %v3614 = vpop.permute.xlu0 %3613
        %3615 = vrot.lane.b32.xlu0 %v3602, 16
        %v3616 = vpop.permute.xlu0 %3615
        %3617 = vrot.lane.b32.xlu0 %v3603, 16
        %v3618 = vpop.permute.xlu0 %3617
        %3619 = vrot.lane.b32.xlu0 %v3604, 16
        %v3620 = vpop.permute.xlu0 %3619
        %v3645 = vcombine.low %v3071, %v3073
        %v3646 = vcombine.low %v3075, %v3077
        %v3647 = vcombine.low %v3079, %v3081
        %v3648 = vcombine.low %v3083, %v3085
        %v3649 = vcombine.low %v3087, %v3089
        %v3650 = vcombine.low %v3091, %v3093
        %v3651 = vcombine.low %v3095, %v3097
        %v3652 = vcombine.low %v3099, %v3101
        %3653 = vrot.lane.b32.xlu0 %v3645, 24
        %v3654 = vpop.permute.xlu0 %3653
        %3655 = vrot.lane.b32.xlu0 %v3646, 24
        %v3656 = vpop.permute.xlu0 %3655
        %3657 = vrot.lane.b32.xlu0 %v3647, 24
        %v3658 = vpop.permute.xlu0 %3657
        %3659 = vrot.lane.b32.xlu0 %v3648, 24
        %v3660 = vpop.permute.xlu0 %3659
        %3661 = vrot.lane.b32.xlu0 %v3649, 24
        %v3662 = vpop.permute.xlu0 %3661
        %3663 = vrot.lane.b32.xlu0 %v3650, 24
        %v3664 = vpop.permute.xlu0 %3663
        %3665 = vrot.lane.b32.xlu0 %v3651, 24
        %v3666 = vpop.permute.xlu0 %3665
        %3667 = vrot.lane.b32.xlu0 %v3652, 24
        %v3668 = vpop.permute.xlu0 %3667
        %v3693 = vcombine.low %v3102, %v3104
        %v3694 = vcombine.low %v3106, %v3108
        %v3695 = vcombine.low %v3110, %v3112
        %v3696 = vcombine.low %v3114, %v3116
        %v3697 = vcombine.low %v3118, %v3120
        %v3698 = vcombine.low %v3122, %v3124
        %v3699 = vcombine.low %v3126, %v3128
        %v3700 = vcombine.low %v3130, %v3132
        %3701 = vrot.lane.b32.xlu0 %v3693, 32
        %v3702 = vpop.permute.xlu0 %3701
        %3703 = vrot.lane.b32.xlu0 %v3694, 32
        %v3704 = vpop.permute.xlu0 %3703
        %3705 = vrot.lane.b32.xlu0 %v3695, 32
        %v3706 = vpop.permute.xlu0 %3705
        %3707 = vrot.lane.b32.xlu0 %v3696, 32
        %v3708 = vpop.permute.xlu0 %3707
        %3709 = vrot.lane.b32.xlu0 %v3697, 32
        %v3710 = vpop.permute.xlu0 %3709
        %3711 = vrot.lane.b32.xlu0 %v3698, 32
        %v3712 = vpop.permute.xlu0 %3711
        %3713 = vrot.lane.b32.xlu0 %v3699, 32
        %v3714 = vpop.permute.xlu0 %3713
        %3715 = vrot.lane.b32.xlu0 %v3700, 32
        %v3716 = vpop.permute.xlu0 %3715
        %v3741 = vcombine.low %v3134, %v3136
        %v3742 = vcombine.low %v3138, %v3140
        %v3743 = vcombine.low %v3142, %v3144
        %v3744 = vcombine.low %v3146, %v3148
        %v3745 = vcombine.low %v3150, %v3152
        %v3746 = vcombine.low %v3154, %v3156
        %v3747 = vcombine.low %v3158, %v3160
        %v3748 = vcombine.low %v3162, %v3164
        %3749 = vrot.lane.b32.xlu0 %v3741, 40
        %v3750 = vpop.permute.xlu0 %3749
        %3751 = vrot.lane.b32.xlu0 %v3742, 40
        %v3752 = vpop.permute.xlu0 %3751
        %3753 = vrot.lane.b32.xlu0 %v3743, 40
        %v3754 = vpop.permute.xlu0 %3753
        %3755 = vrot.lane.b32.xlu0 %v3744, 40
        %v3756 = vpop.permute.xlu0 %3755
        %3757 = vrot.lane.b32.xlu0 %v3745, 40
        %v3758 = vpop.permute.xlu0 %3757
        %3759 = vrot.lane.b32.xlu0 %v3746, 40
        %v3760 = vpop.permute.xlu0 %3759
        %3761 = vrot.lane.b32.xlu0 %v3747, 40
        %v3762 = vpop.permute.xlu0 %3761
        %3763 = vrot.lane.b32.xlu0 %v3748, 40
        %v3764 = vpop.permute.xlu0 %3763
        %v3789 = vcombine.low %v3166, %v3168
        %v3790 = vcombine.low %v3170, %v3172
        %v3791 = vcombine.low %v3174, %v3176
        %v3792 = vcombine.low %v3178, %v3180
        %v3793 = vcombine.low %v3182, %v3184
        %v3794 = vcombine.low %v3186, %v3188
        %v3795 = vcombine.low %v3190, %v3192
        %v3796 = vcombine.low %v3194, %v3196
        %3797 = vrot.lane.b32.xlu0 %v3789, 48
        %v3798 = vpop.permute.xlu0 %3797
        %3799 = vrot.lane.b32.xlu0 %v3790, 48
        %v3800 = vpop.permute.xlu0 %3799
        %3801 = vrot.lane.b32.xlu0 %v3791, 48
        %v3802 = vpop.permute.xlu0 %3801
        %3803 = vrot.lane.b32.xlu0 %v3792, 48
        %v3804 = vpop.permute.xlu0 %3803
        %3805 = vrot.lane.b32.xlu0 %v3793, 48
        %v3806 = vpop.permute.xlu0 %3805
        %3807 = vrot.lane.b32.xlu0 %v3794, 48
        %v3808 = vpop.permute.xlu0 %3807
        %3809 = vrot.lane.b32.xlu0 %v3795, 48
        %v3810 = vpop.permute.xlu0 %3809
        %3811 = vrot.lane.b32.xlu0 %v3796, 48
        %v3812 = vpop.permute.xlu0 %3811
        %v3837 = vcombine.low %v3198, %v3200
        %v3838 = vcombine.low %v3202, %v3204
        %v3839 = vcombine.low %v3206, %v3208
        %v3840 = vcombine.low %v3210, %v3212
        %v3841 = vcombine.low %v3214, %v3216
        %v3842 = vcombine.low %v3218, %v3220
        %v3843 = vcombine.low %v3222, %v3224
        %v3844 = vcombine.low %v3226, %v3228
        %3845 = vrot.lane.b32.xlu0 %v3837, 56
        %v3846 = vpop.permute.xlu0 %3845
        %3847 = vrot.lane.b32.xlu0 %v3838, 56
        %v3848 = vpop.permute.xlu0 %3847
        %3849 = vrot.lane.b32.xlu0 %v3839, 56
        %v3850 = vpop.permute.xlu0 %3849
        %3851 = vrot.lane.b32.xlu0 %v3840, 56
        %v3852 = vpop.permute.xlu0 %3851
        %3853 = vrot.lane.b32.xlu0 %v3841, 56
        %v3854 = vpop.permute.xlu0 %3853
        %3855 = vrot.lane.b32.xlu0 %v3842, 56
        %v3856 = vpop.permute.xlu0 %3855
        %3857 = vrot.lane.b32.xlu0 %v3843, 56
        %v3858 = vpop.permute.xlu0 %3857
        %3859 = vrot.lane.b32.xlu0 %v3844, 56
        %v3860 = vpop.permute.xlu0 %3859
        %v3885 = vcombine.low %v3230, %v3232
        %v3886 = vcombine.low %v3234, %v3236
        %v3887 = vcombine.low %v3238, %v3240
        %v3888 = vcombine.low %v3242, %v3244
        %v3889 = vcombine.low %v3246, %v3248
        %v3890 = vcombine.low %v3250, %v3252
        %v3891 = vcombine.low %v3254, %v3256
        %v3892 = vcombine.low %v3258, %v3260
        %3893 = vrot.lane.b32.xlu0 %v3885, 64
        %v3894 = vpop.permute.xlu0 %3893
        %3895 = vrot.lane.b32.xlu0 %v3886, 64
        %v3896 = vpop.permute.xlu0 %3895
        %3897 = vrot.lane.b32.xlu0 %v3887, 64
        %v3898 = vpop.permute.xlu0 %3897
        %3899 = vrot.lane.b32.xlu0 %v3888, 64
        %v3900 = vpop.permute.xlu0 %3899
        %3901 = vrot.lane.b32.xlu0 %v3889, 64
        %v3902 = vpop.permute.xlu0 %3901
        %3903 = vrot.lane.b32.xlu0 %v3890, 64
        %v3904 = vpop.permute.xlu0 %3903
        %3905 = vrot.lane.b32.xlu0 %v3891, 64
        %v3906 = vpop.permute.xlu0 %3905
        %3907 = vrot.lane.b32.xlu0 %v3892, 64
        %v3908 = vpop.permute.xlu0 %3907
        %v3933 = vcombine.low %v3262, %v3264
        %v3934 = vcombine.low %v3266, %v3268
        %v3935 = vcombine.low %v3270, %v3272
        %v3936 = vcombine.low %v3274, %v3276
        %v3937 = vcombine.low %v3278, %v3280
        %v3938 = vcombine.low %v3282, %v3284
        %v3939 = vcombine.low %v3286, %v3288
        %v3940 = vcombine.low %v3290, %v3292
        %3941 = vrot.lane.b32.xlu0 %v3933, 72
        %v3942 = vpop.permute.xlu0 %3941
        %3943 = vrot.lane.b32.xlu0 %v3934, 72
        %v3944 = vpop.permute.xlu0 %3943
        %3945 = vrot.lane.b32.xlu0 %v3935, 72
        %v3946 = vpop.permute.xlu0 %3945
        %3947 = vrot.lane.b32.xlu0 %v3936, 72
        %v3948 = vpop.permute.xlu0 %3947
        %3949 = vrot.lane.b32.xlu0 %v3937, 72
        %v3950 = vpop.permute.xlu0 %3949
        %3951 = vrot.lane.b32.xlu0 %v3938, 72
        %v3952 = vpop.permute.xlu0 %3951
        %3953 = vrot.lane.b32.xlu0 %v3939, 72
        %v3954 = vpop.permute.xlu0 %3953
        %3955 = vrot.lane.b32.xlu0 %v3940, 72
        %v3956 = vpop.permute.xlu0 %3955
        %v3981 = vcombine.low %v3294, %v3296
        %v3982 = vcombine.low %v3298, %v3300
        %v3983 = vcombine.low %v3302, %v3304
        %v3984 = vcombine.low %v3306, %v3308
        %v3985 = vcombine.low %v3310, %v3312
        %v3986 = vcombine.low %v3314, %v3316
        %v3987 = vcombine.low %v3318, %v3320
        %v3988 = vcombine.low %v3322, %v3324
        %3989 = vrot.lane.b32.xlu0 %v3981, 80
        %v3990 = vpop.permute.xlu0 %3989
        %3991 = vrot.lane.b32.xlu0 %v3982, 80
        %v3992 = vpop.permute.xlu0 %3991
        %3993 = vrot.lane.b32.xlu0 %v3983, 80
        %v3994 = vpop.permute.xlu0 %3993
        %3995 = vrot.lane.b32.xlu0 %v3984, 80
        %v3996 = vpop.permute.xlu0 %3995
        %3997 = vrot.lane.b32.xlu0 %v3985, 80
        %v3998 = vpop.permute.xlu0 %3997
        %3999 = vrot.lane.b32.xlu0 %v3986, 80
        %v4000 = vpop.permute.xlu0 %3999
        %4001 = vrot.lane.b32.xlu0 %v3987, 80
        %v4002 = vpop.permute.xlu0 %4001
        %4003 = vrot.lane.b32.xlu0 %v3988, 80
        %v4004 = vpop.permute.xlu0 %4003
        %v4029 = vcombine.low %v3326, %v3328
        %v4030 = vcombine.low %v3330, %v3332
        %v4031 = vcombine.low %v3334, %v3336
        %v4032 = vcombine.low %v3338, %v3340
        %v4033 = vcombine.low %v3342, %v3344
        %v4034 = vcombine.low %v3346, %v3348
        %v4035 = vcombine.low %v3350, %v3352
        %v4036 = vcombine.low %v3354, %v3356
        %4037 = vrot.lane.b32.xlu0 %v4029, 88
        %v4038 = vpop.permute.xlu0 %4037
        %4039 = vrot.lane.b32.xlu0 %v4030, 88
        %v4040 = vpop.permute.xlu0 %4039
        %4041 = vrot.lane.b32.xlu0 %v4031, 88
        %v4042 = vpop.permute.xlu0 %4041
        %4043 = vrot.lane.b32.xlu0 %v4032, 88
        %v4044 = vpop.permute.xlu0 %4043
        %4045 = vrot.lane.b32.xlu0 %v4033, 88
        %v4046 = vpop.permute.xlu0 %4045
        %4047 = vrot.lane.b32.xlu0 %v4034, 88
        %v4048 = vpop.permute.xlu0 %4047
        %4049 = vrot.lane.b32.xlu0 %v4035, 88
        %v4050 = vpop.permute.xlu0 %4049
        %4051 = vrot.lane.b32.xlu0 %v4036, 88
        %v4052 = vpop.permute.xlu0 %4051
        %v4077 = vcombine.low %v3358, %v3360
        %v4078 = vcombine.low %v3362, %v3364
        %v4079 = vcombine.low %v3366, %v3368
        %v4080 = vcombine.low %v3370, %v3372
        %v4081 = vcombine.low %v3374, %v3376
        %v4082 = vcombine.low %v3378, %v3380
        %v4083 = vcombine.low %v3382, %v3384
        %v4084 = vcombine.low %v3386, %v3388
        %4085 = vrot.lane.b32.xlu0 %v4077, 96
        %v4086 = vpop.permute.xlu0 %4085
        %4087 = vrot.lane.b32.xlu0 %v4078, 96
        %v4088 = vpop.permute.xlu0 %4087
        %4089 = vrot.lane.b32.xlu0 %v4079, 96
        %v4090 = vpop.permute.xlu0 %4089
        %4091 = vrot.lane.b32.xlu0 %v4080, 96
        %v4092 = vpop.permute.xlu0 %4091
        %4093 = vrot.lane.b32.xlu0 %v4081, 96
        %v4094 = vpop.permute.xlu0 %4093
        %4095 = vrot.lane.b32.xlu0 %v4082, 96
        %v4096 = vpop.permute.xlu0 %4095
        %4097 = vrot.lane.b32.xlu0 %v4083, 96
        %v4098 = vpop.permute.xlu0 %4097
        %4099 = vrot.lane.b32.xlu0 %v4084, 96
        %v4100 = vpop.permute.xlu0 %4099
        %v4125 = vcombine.low %v3390, %v3392
        %v4126 = vcombine.low %v3394, %v3396
        %v4127 = vcombine.low %v3398, %v3400
        %v4128 = vcombine.low %v3402, %v3404
        %v4129 = vcombine.low %v3406, %v3408
        %v4130 = vcombine.low %v3410, %v3412
        %v4131 = vcombine.low %v3414, %v3416
        %v4132 = vcombine.low %v3418, %v3420
        %4133 = vrot.lane.b32.xlu0 %v4125, 104
        %v4134 = vpop.permute.xlu0 %4133
        %4135 = vrot.lane.b32.xlu0 %v4126, 104
        %v4136 = vpop.permute.xlu0 %4135
        %4137 = vrot.lane.b32.xlu0 %v4127, 104
        %v4138 = vpop.permute.xlu0 %4137
        %4139 = vrot.lane.b32.xlu0 %v4128, 104
        %v4140 = vpop.permute.xlu0 %4139
        %4141 = vrot.lane.b32.xlu0 %v4129, 104
        %v4142 = vpop.permute.xlu0 %4141
        %4143 = vrot.lane.b32.xlu0 %v4130, 104
        %v4144 = vpop.permute.xlu0 %4143
        %4145 = vrot.lane.b32.xlu0 %v4131, 104
        %v4146 = vpop.permute.xlu0 %4145
        %4147 = vrot.lane.b32.xlu0 %v4132, 104
        %v4148 = vpop.permute.xlu0 %4147
        %v4173 = vcombine.low %v3422, %v3424
        %v4174 = vcombine.low %v3426, %v3428
        %v4175 = vcombine.low %v3430, %v3432
        %v4176 = vcombine.low %v3434, %v3436
        %v4177 = vcombine.low %v3438, %v3440
        %v4178 = vcombine.low %v3442, %v3444
        %v4179 = vcombine.low %v3446, %v3448
        %v4180 = vcombine.low %v3450, %v3452
        %4181 = vrot.lane.b32.xlu0 %v4173, 112
        %v4182 = vpop.permute.xlu0 %4181
        %4183 = vrot.lane.b32.xlu0 %v4174, 112
        %v4184 = vpop.permute.xlu0 %4183
        %4185 = vrot.lane.b32.xlu0 %v4175, 112
        %v4186 = vpop.permute.xlu0 %4185
        %4187 = vrot.lane.b32.xlu0 %v4176, 112
        %v4188 = vpop.permute.xlu0 %4187
        %4189 = vrot.lane.b32.xlu0 %v4177, 112
        %v4190 = vpop.permute.xlu0 %4189
        %4191 = vrot.lane.b32.xlu0 %v4178, 112
        %v4192 = vpop.permute.xlu0 %4191
        %4193 = vrot.lane.b32.xlu0 %v4179, 112
        %v4194 = vpop.permute.xlu0 %4193
        %4195 = vrot.lane.b32.xlu0 %v4180, 112
        %v4196 = vpop.permute.xlu0 %4195
        %v4221 = vcombine.low %v3454, %v3456
        %v4222 = vcombine.low %v3458, %v3460
        %v4223 = vcombine.low %v3462, %v3464
        %v4224 = vcombine.low %v3466, %v3468
        %v4225 = vcombine.low %v3470, %v3472
        %v4226 = vcombine.low %v3474, %v3476
        %v4227 = vcombine.low %v3478, %v3480
        %v4228 = vcombine.low %v3482, %v3484
        %4229 = vrot.lane.b32.xlu0 %v4221, 120
        %v4230 = vpop.permute.xlu0 %4229
        %4231 = vrot.lane.b32.xlu0 %v4222, 120
        %v4232 = vpop.permute.xlu0 %4231
        %4233 = vrot.lane.b32.xlu0 %v4223, 120
        %v4234 = vpop.permute.xlu0 %4233
        %4235 = vrot.lane.b32.xlu0 %v4224, 120
        %v4236 = vpop.permute.xlu0 %4235
        %4237 = vrot.lane.b32.xlu0 %v4225, 120
        %v4238 = vpop.permute.xlu0 %4237
        %4239 = vrot.lane.b32.xlu0 %v4226, 120
        %v4240 = vpop.permute.xlu0 %4239
        %4241 = vrot.lane.b32.xlu0 %v4227, 120
        %v4242 = vpop.permute.xlu0 %4241
        %4243 = vrot.lane.b32.xlu0 %v4228, 120
        %v4244 = vpop.permute.xlu0 %4243
        %v4253 = vsel %vm767, %v3517, %v3558
        %v4254 = vsel %vm767, %v3518, %v3560
        %v4255 = vsel %vm767, %v3519, %v3562
        %v4256 = vsel %vm767, %v3520, %v3564
        %v4257 = vsel %vm767, %v3521, %v3566
        %v4258 = vsel %vm767, %v3522, %v3568
        %v4259 = vsel %vm767, %v3523, %v3570
        %v4260 = vsel %vm767, %v3524, %v3572
        %v4261 = vsel %vm2238, %v4253, %v3606
        %v4262 = vsel %vm2238, %v4254, %v3608
        %v4263 = vsel %vm2238, %v4255, %v3610
        %v4264 = vsel %vm2238, %v4256, %v3612
        %v4265 = vsel %vm2238, %v4257, %v3614
        %v4266 = vsel %vm2238, %v4258, %v3616
        %v4267 = vsel %vm2238, %v4259, %v3618
        %v4268 = vsel %vm2238, %v4260, %v3620
        %v4269 = vsel %vm2271, %v4261, %v3654
        %v4270 = vsel %vm2271, %v4262, %v3656
        %v4271 = vsel %vm2271, %v4263, %v3658
        %v4272 = vsel %vm2271, %v4264, %v3660
        %v4273 = vsel %vm2271, %v4265, %v3662
        %v4274 = vsel %vm2271, %v4266, %v3664
        %v4275 = vsel %vm2271, %v4267, %v3666
        %v4276 = vsel %vm2271, %v4268, %v3668
        %v4277 = vsel %vm2304, %v4269, %v3702
        %v4278 = vsel %vm2304, %v4270, %v3704
        %v4279 = vsel %vm2304, %v4271, %v3706
        %v4280 = vsel %vm2304, %v4272, %v3708
        %v4281 = vsel %vm2304, %v4273, %v3710
        %v4282 = vsel %vm2304, %v4274, %v3712
        %v4283 = vsel %vm2304, %v4275, %v3714
        %v4284 = vsel %vm2304, %v4276, %v3716
        %v4285 = vsel %vm2337, %v4277, %v3750
        %v4286 = vsel %vm2337, %v4278, %v3752
        %v4287 = vsel %vm2337, %v4279, %v3754
        %v4288 = vsel %vm2337, %v4280, %v3756
        %v4289 = vsel %vm2337, %v4281, %v3758
        %v4290 = vsel %vm2337, %v4282, %v3760
        %v4291 = vsel %vm2337, %v4283, %v3762
        %v4292 = vsel %vm2337, %v4284, %v3764
        %v4293 = vsel %vm2370, %v4285, %v3798
        %v4294 = vsel %vm2370, %v4286, %v3800
        %v4295 = vsel %vm2370, %v4287, %v3802
        %v4296 = vsel %vm2370, %v4288, %v3804
        %v4297 = vsel %vm2370, %v4289, %v3806
        %v4298 = vsel %vm2370, %v4290, %v3808
        %v4299 = vsel %vm2370, %v4291, %v3810
        %v4300 = vsel %vm2370, %v4292, %v3812
        %v4301 = vsel %vm2403, %v4293, %v3846
        %v4302 = vsel %vm2403, %v4294, %v3848
        %v4303 = vsel %vm2403, %v4295, %v3850
        %v4304 = vsel %vm2403, %v4296, %v3852
        %v4305 = vsel %vm2403, %v4297, %v3854
        %v4306 = vsel %vm2403, %v4298, %v3856
        %v4307 = vsel %vm2403, %v4299, %v3858
        %v4308 = vsel %vm2403, %v4300, %v3860
        %v4309 = vsel %vm381, %v4301, %v3894
        %v4310 = vsel %vm381, %v4302, %v3896
        %v4311 = vsel %vm381, %v4303, %v3898
        %v4312 = vsel %vm381, %v4304, %v3900
        %v4313 = vsel %vm381, %v4305, %v3902
        %v4314 = vsel %vm381, %v4306, %v3904
        %v4315 = vsel %vm381, %v4307, %v3906
        %v4316 = vsel %vm381, %v4308, %v3908
        %v4317 = vsel %vm2475, %v4309, %v3942
        %v4318 = vsel %vm2475, %v4310, %v3944
        %v4319 = vsel %vm2475, %v4311, %v3946
        %v4320 = vsel %vm2475, %v4312, %v3948
        %v4321 = vsel %vm2475, %v4313, %v3950
        %v4322 = vsel %vm2475, %v4314, %v3952
        %v4323 = vsel %vm2475, %v4315, %v3954
        %v4324 = vsel %vm2475, %v4316, %v3956
        %vm4325 = vcmask 654336
        %v4326 = vsel %vm4325, %v4317, %v3990
        %v4327 = vsel %vm4325, %v4318, %v3992
        %v4328 = vsel %vm4325, %v4319, %v3994
        %v4329 = vsel %vm4325, %v4320, %v3996
        %v4330 = vsel %vm4325, %v4321, %v3998
        %v4331 = vsel %vm4325, %v4322, %v4000
        %v4332 = vsel %vm4325, %v4323, %v4002
        %v4333 = vsel %vm4325, %v4324, %v4004
        %vm4334 = vcmask 719872
        %v4335 = vsel %vm4334, %v4326, %v4038
        %v4336 = vsel %vm4334, %v4327, %v4040
        %v4337 = vsel %vm4334, %v4328, %v4042
        %v4338 = vsel %vm4334, %v4329, %v4044
        %v4339 = vsel %vm4334, %v4330, %v4046
        %v4340 = vsel %vm4334, %v4331, %v4048
        %v4341 = vsel %vm4334, %v4332, %v4050
        %v4342 = vsel %vm4334, %v4333, %v4052
        %vm4343 = vcmask 785408
        %v4344 = vsel %vm4343, %v4335, %v4086
        %v4345 = vsel %vm4343, %v4336, %v4088
        %v4346 = vsel %vm4343, %v4337, %v4090
        %v4347 = vsel %vm4343, %v4338, %v4092
        %v4348 = vsel %vm4343, %v4339, %v4094
        %v4349 = vsel %vm4343, %v4340, %v4096
        %v4350 = vsel %vm4343, %v4341, %v4098
        %v4351 = vsel %vm4343, %v4342, %v4100
        %vm4352 = vcmask 850944
        %v4353 = vsel %vm4352, %v4344, %v4134
        %v4354 = vsel %vm4352, %v4345, %v4136
        %v4355 = vsel %vm4352, %v4346, %v4138
        %v4356 = vsel %vm4352, %v4347, %v4140
        %v4357 = vsel %vm4352, %v4348, %v4142
        %v4358 = vsel %vm4352, %v4349, %v4144
        %v4359 = vsel %vm4352, %v4350, %v4146
        %v4360 = vsel %vm4352, %v4351, %v4148
        %vm4361 = vcmask 916480
        %v4362 = vsel %vm4361, %v4353, %v4182
        %v4363 = vsel %vm4361, %v4354, %v4184
        %v4364 = vsel %vm4361, %v4355, %v4186
        %v4365 = vsel %vm4361, %v4356, %v4188
        %v4366 = vsel %vm4361, %v4357, %v4190
        %v4367 = vsel %vm4361, %v4358, %v4192
        %v4368 = vsel %vm4361, %v4359, %v4194
        %v4369 = vsel %vm4361, %v4360, %v4196
        %vm4370 = vcmask 982016
        %v4371 = vsel %vm4370, %v4362, %v4230
        %v4372 = vsel %vm4370, %v4363, %v4232
        %v4373 = vsel %vm4370, %v4364, %v4234
        %v4374 = vsel %vm4370, %v4365, %v4236
        %v4375 = vsel %vm4370, %v4366, %v4238
        %v4376 = vsel %vm4370, %v4367, %v4240
        %v4377 = vsel %vm4370, %v4368, %v4242
        %v4378 = vsel %vm4370, %v4369, %v4244
        %v4379 = vld [vmem:[%s6] sm:$0x1]
        %v4381 = vlaneseq
        %v4382 = vshrl.u32 %v4381, 7
        %v4383 = vsub.s32 0, %v4382
        %v4384 = vrot.slane %v4379, %v4383
        %4386 = vmatprep.subr.mxu0 0.0
        %4387 = vmatpush1.msra.mxu0 %v3485
        %4388 = vmatprep.subr.mxu0 0.0
        %4389 = vmatpush1.msra.mxu0 %v3486
        %4390 = vmatprep.subr.mxu0 0.0
        %4391 = vmatpush1.msra.mxu0 %v3487
        %4392 = vmatprep.subr.mxu0 0.0
        %4393 = vmatpush1.msra.mxu0 %v3488
        %4394 = vmatprep.subr.mxu0 0.0
        %4395 = vmatpush1.msra.mxu0 %v3489
        %4396 = vmatprep.subr.mxu0 0.0
        %4397 = vmatpush1.msra.mxu0 %v3490
        %4398 = vmatprep.subr.mxu0 0.0
        %4399 = vmatpush1.msra.mxu0 %v3491
        %4400 = vmatprep.subr.mxu0 0.0
        %4401 = vmatpush1.msra.mxu0 %v3492
        %4402 = vmatprep.subr.mxu0 0.0
        %4403 = vmatpush1.msra.mxu0 %v3493
        %4404 = vmatprep.subr.mxu0 0.0
        %4405 = vmatpush1.msra.mxu0 %v3494
        %4406 = vmatprep.subr.mxu0 0.0
        %4407 = vmatpush1.msra.mxu0 %v3495
        %4408 = vmatprep.subr.mxu0 0.0
        %4409 = vmatpush1.msra.mxu0 %v3496
        %4410 = vmatprep.subr.mxu0 0.0
        %4411 = vmatpush1.msra.mxu0 %v3497
        %4412 = vmatprep.subr.mxu0 0.0
        %4413 = vmatpush1.msra.mxu0 %v3498
        %4414 = vmatprep.subr.mxu0 0.0
        %4415 = vmatpush1.msra.mxu0 %v3499
        %4416 = vmatprep.subr.mxu0 0.0
        %4417 = vmatpush1.msra.mxu0 %v3500
        %4418 = vmatprep.subr.mxu0 0.0
        %4419 = vmatpush1.msra.mxu0 0.0
        %4420 = vmatprep.subr.mxu0 0.0
        %4421 = vmatpush1.msra.mxu0 0.0
        %4422 = vmatprep.subr.mxu0 0.0
        %4423 = vmatpush1.msra.mxu0 0.0
        %4424 = vmatprep.subr.mxu0 0.0
        %4425 = vmatpush1.msra.mxu0 0.0
        %4426 = vmatprep.subr.mxu0 0.0
        %4427 = vmatpush1.msra.mxu0 0.0
        %4428 = vmatprep.subr.mxu0 0.0
        %4429 = vmatpush1.msra.mxu0 0.0
        %4430 = vmatprep.subr.mxu0 0.0
        %4431 = vmatpush1.msra.mxu0 0.0
        %4432 = vmatprep.subr.mxu0 0.0
        %4433 = vmatpush1.msra.mxu0 0.0
        %4434 = vmatprep.subr.mxu0 0.0
        %4435 = vmatpush1.msra.mxu0 0.0
        %4436 = vmatprep.subr.mxu0 0.0
        %4437 = vmatpush1.msra.mxu0 0.0
        %4438 = vmatprep.subr.mxu0 0.0
        %4439 = vmatpush1.msra.mxu0 0.0
        %4440 = vmatprep.subr.mxu0 0.0
        %4441 = vmatpush1.msra.mxu0 0.0
        %4442 = vmatprep.subr.mxu0 0.0
        %4443 = vmatpush1.msra.mxu0 0.0
        %4444 = vmatprep.subr.mxu0 0.0
        %4445 = vmatpush1.msra.mxu0 0.0
        %4446 = vmatprep.subr.mxu0 0.0
        %4447 = vmatpush1.msra.mxu0 0.0
        %4448 = vmatprep.subr.mxu0 0.0
        %4449 = vmatpush1.msra.mxu0 0.0
        %4450 = vmatprep.mubr.f32.mxu0 0.0
        %4451 = vmatmul.mubr.f32.gmra.mrb[0].mxu0 %v4371
        %v4452 = vpop.f32.mrb[0].mxu0
        %v4453 = vadd.f32 %v4384, %v4452
        %v4454 = vpop.f32.mrb[0].mxu0
        %4455 = vmatprep.mubr.f32.mxu0 0.0
        %4456 = vmatmul.mubr.f32.gmra.mrb[0].mxu0 %v4372
        %v4457 = vpop.f32.mrb[0].mxu0
        %v4458 = vadd.f32 %v4384, %v4457
        %v4459 = vpop.f32.mrb[0].mxu0
        %4460 = vmatprep.mubr.f32.mxu0 0.0
        %4461 = vmatmul.mubr.f32.gmra.mrb[0].mxu0 %v4373
        %v4462 = vpop.f32.mrb[0].mxu0
        %v4463 = vadd.f32 %v4384, %v4462
        %v4464 = vpop.f32.mrb[0].mxu0
        %4465 = vmatprep.mubr.f32.mxu0 0.0
        %4466 = vmatmul.mubr.f32.gmra.mrb[0].mxu0 %v4374
        %v4467 = vpop.f32.mrb[0].mxu0
        %v4468 = vadd.f32 %v4384, %v4467
        %v4469 = vpop.f32.mrb[0].mxu0
        %4470 = vmatprep.mubr.f32.mxu0 0.0
        %4471 = vmatmul.mubr.f32.gmra.mrb[0].mxu0 %v4375
        %v4472 = vpop.f32.mrb[0].mxu0
        %v4473 = vadd.f32 %v4384, %v4472
        %v4474 = vpop.f32.mrb[0].mxu0
        %4475 = vmatprep.mubr.f32.mxu0 0.0
        %4476 = vmatmul.mubr.f32.gmra.mrb[0].mxu0 %v4376
        %v4477 = vpop.f32.mrb[0].mxu0
        %v4478 = vadd.f32 %v4384, %v4477
        %v4479 = vpop.f32.mrb[0].mxu0
        %4480 = vmatprep.mubr.f32.mxu0 0.0
        %4481 = vmatmul.mubr.f32.gmra.mrb[0].mxu0 %v4377
        %v4482 = vpop.f32.mrb[0].mxu0
        %v4483 = vadd.f32 %v4384, %v4482
        %v4484 = vpop.f32.mrb[0].mxu0
        %4485 = vmatprep.mubr.f32.mxu0 0.0
        %4486 = vmatmul.mubr.f32.gmra.mrb[0].mxu0 %v4378
        %v4487 = vpop.f32.mrb[0].mxu0
        %v4488 = vadd.f32 %v4384, %v4487
        %v4489 = vpop.f32.mrb[0].mxu0
        %4490 = vdwg.mxu0
        %v4491 = vmul.f32 %v4453, 0.2
        %v4492 = vmul.f32 %v4458, 0.2
        %v4493 = vmul.f32 %v4463, 0.2
        %v4494 = vmul.f32 %v4468, 0.2
        %v4495 = vmul.f32 %v4473, 0.2
        %v4496 = vmul.f32 %v4478, 0.2
        %v4497 = vmul.f32 %v4483, 0.2
        %v4498 = vmul.f32 %v4488, 0.2
        %v4499 = vmax.f32 %v4453, %v4491
        %v4500 = vmax.f32 %v4458, %v4492
        %v4501 = vmax.f32 %v4463, %v4493
        %v4502 = vmax.f32 %v4468, %v4494
        %v4503 = vmax.f32 %v4473, %v4495
        %v4504 = vmax.f32 %v4478, %v4496
        %v4505 = vmax.f32 %v4483, %v4497
        %v4506 = vmax.f32 %v4488, %v4498
        %v4515 = vcombine.high %v4499, %v4499
        %v4516 = vcombine.high %v4500, %v4500
        %v4517 = vcombine.high %v4501, %v4501
        %v4518 = vcombine.high %v4502, %v4502
        %v4519 = vcombine.high %v4503, %v4503
        %v4520 = vcombine.high %v4504, %v4504
        %v4521 = vcombine.high %v4505, %v4505
        %v4522 = vcombine.high %v4506, %v4506
        %vm4531 = vcmask 125952
        %4532 = vst.msk [vmem:[#allocation4] sm:$0xf] %vm4531, %v4499
        %4533 = vst.msk [vmem:[#allocation4 + $0x4] sm:$0xf] %vm4531, %v4515
        %4534 = vst.msk [vmem:[#allocation4 + $0x8] sm:$0xf] %vm4531, %v4500
        %4535 = vst.msk [vmem:[#allocation4 + $0xc] sm:$0xf] %vm4531, %v4516
        %4536 = vst.msk [vmem:[#allocation4 + $0x10] sm:$0xf] %vm4531, %v4501
        %4537 = vst.msk [vmem:[#allocation4 + $0x14] sm:$0xf] %vm4531, %v4517
        %4538 = vst.msk [vmem:[#allocation4 + $0x18] sm:$0xf] %vm4531, %v4502
        %4539 = vst.msk [vmem:[#allocation4 + $0x1c] sm:$0xf] %vm4531, %v4518
        %4540 = vst.msk [vmem:[#allocation4 + $0x20] sm:$0xf] %vm4531, %v4503
        %4541 = vst.msk [vmem:[#allocation4 + $0x24] sm:$0xf] %vm4531, %v4519
        %4542 = vst.msk [vmem:[#allocation4 + $0x28] sm:$0xf] %vm4531, %v4504
        %4543 = vst.msk [vmem:[#allocation4 + $0x2c] sm:$0xf] %vm4531, %v4520
        %4544 = vst.msk [vmem:[#allocation4 + $0x30] sm:$0xf] %vm4531, %v4505
        %4545 = vst.msk [vmem:[#allocation4 + $0x34] sm:$0xf] %vm4531, %v4521
        %4546 = vst.msk [vmem:[#allocation4 + $0x38] sm:$0xf] %vm4531, %v4506
        %4547 = vst.msk [vmem:[#allocation4 + $0x3c] sm:$0xf] %vm4531, %v4522
        %v4548 = vld [vmem:[#allocation4] sm:$0x1]
        %v4549 = vld [vmem:[#allocation4 + $0x10] sm:$0x1]
        %v4550 = vld [vmem:[#allocation4 + $0x20] sm:$0x1]
        %v4551 = vld [vmem:[#allocation4 + $0x30] sm:$0x1]
        %v4552 = vld [vmem:[#allocation4 + $0x1] sm:$0x1]
        %v4553 = vld [vmem:[#allocation4 + $0x11] sm:$0x1]
        %v4554 = vld [vmem:[#allocation4 + $0x21] sm:$0x1]
        %v4555 = vld [vmem:[#allocation4 + $0x31] sm:$0x1]
        %v4556 = vld [vmem:[#allocation4 + $0x2] sm:$0x1]
        %v4557 = vld [vmem:[#allocation4 + $0x12] sm:$0x1]
        %v4558 = vld [vmem:[#allocation4 + $0x22] sm:$0x1]
        %v4559 = vld [vmem:[#allocation4 + $0x32] sm:$0x1]
        %v4560 = vld [vmem:[#allocation4 + $0x3] sm:$0x1]
        %v4561 = vld [vmem:[#allocation4 + $0x13] sm:$0x1]
        %v4562 = vld [vmem:[#allocation4 + $0x23] sm:$0x1]
        %v4563 = vld [vmem:[#allocation4 + $0x33] sm:$0x1]
        %s4564 = scalar_lea.vmem [#allocation4], 4
        %v4565 = vld [vmem:[%s4564] sm:$0x1]
        %v4566 = vld [vmem:[%s4564 + $0x10] sm:$0x1]
        %v4567 = vld [vmem:[%s4564 + $0x20] sm:$0x1]
        %v4568 = vld [vmem:[%s4564 + $0x30] sm:$0x1]
        %v4569 = vld [vmem:[%s4564 + $0x1] sm:$0x1]
        %v4570 = vld [vmem:[%s4564 + $0x11] sm:$0x1]
        %v4571 = vld [vmem:[%s4564 + $0x21] sm:$0x1]
        %v4572 = vld [vmem:[%s4564 + $0x31] sm:$0x1]
        %v4573 = vld [vmem:[%s4564 + $0x2] sm:$0x1]
        %v4574 = vld [vmem:[%s4564 + $0x12] sm:$0x1]
        %v4575 = vld [vmem:[%s4564 + $0x22] sm:$0x1]
        %v4576 = vld [vmem:[%s4564 + $0x32] sm:$0x1]
        %v4577 = vld [vmem:[%s4564 + $0x3] sm:$0x1]
        %v4578 = vld [vmem:[%s4564 + $0x13] sm:$0x1]
        %v4579 = vld [vmem:[%s4564 + $0x23] sm:$0x1]
        %v4580 = vld [vmem:[%s4564 + $0x33] sm:$0x1]
        %s4581 = scalar_lea.vmem [#allocation4], 8
        %v4582 = vld [vmem:[%s4581] sm:$0x1]
        %v4583 = vld [vmem:[%s4581 + $0x10] sm:$0x1]
        %v4584 = vld [vmem:[%s4581 + $0x20] sm:$0x1]
        %v4585 = vld [vmem:[%s4581 + $0x30] sm:$0x1]
        %v4586 = vld [vmem:[%s4581 + $0x1] sm:$0x1]
        %v4587 = vld [vmem:[%s4581 + $0x11] sm:$0x1]
        %v4588 = vld [vmem:[%s4581 + $0x21] sm:$0x1]
        %v4589 = vld [vmem:[%s4581 + $0x31] sm:$0x1]
        %v4590 = vld [vmem:[%s4581 + $0x2] sm:$0x1]
        %v4591 = vld [vmem:[%s4581 + $0x12] sm:$0x1]
        %v4592 = vld [vmem:[%s4581 + $0x22] sm:$0x1]
        %v4593 = vld [vmem:[%s4581 + $0x32] sm:$0x1]
        %v4594 = vld [vmem:[%s4581 + $0x3] sm:$0x1]
        %v4595 = vld [vmem:[%s4581 + $0x13] sm:$0x1]
        %v4596 = vld [vmem:[%s4581 + $0x23] sm:$0x1]
        %v4597 = vld [vmem:[%s4581 + $0x33] sm:$0x1]
        %s4598 = scalar_lea.vmem [#allocation4], 12
        %v4599 = vld [vmem:[%s4598] sm:$0x1]
        %v4600 = vld [vmem:[%s4598 + $0x10] sm:$0x1]
        %v4601 = vld [vmem:[%s4598 + $0x20] sm:$0x1]
        %v4602 = vld [vmem:[%s4598 + $0x30] sm:$0x1]
        %v4603 = vld [vmem:[%s4598 + $0x1] sm:$0x1]
        %v4604 = vld [vmem:[%s4598 + $0x11] sm:$0x1]
        %v4605 = vld [vmem:[%s4598 + $0x21] sm:$0x1]
        %v4606 = vld [vmem:[%s4598 + $0x31] sm:$0x1]
        %v4607 = vld [vmem:[%s4598 + $0x2] sm:$0x1]
        %v4608 = vld [vmem:[%s4598 + $0x12] sm:$0x1]
        %v4609 = vld [vmem:[%s4598 + $0x22] sm:$0x1]
        %v4610 = vld [vmem:[%s4598 + $0x32] sm:$0x1]
        %v4611 = vld [vmem:[%s4598 + $0x3] sm:$0x1]
        %v4612 = vld [vmem:[%s4598 + $0x13] sm:$0x1]
        %v4613 = vld [vmem:[%s4598 + $0x23] sm:$0x1]
        %v4614 = vld [vmem:[%s4598 + $0x33] sm:$0x1]
        %v4615 = vld [vmem:[%s7] sm:$0x3]
        %v4620 = vrot.slane %v4549, 7
        %vm4621 = vcmask 1041409
        %v4622 = vsel %vm4621, %v4620, %v4548
        %v4623 = vrot.slane %v4550, 6
        %vm4624 = vcmask 1042434
        %v4625 = vsel %vm4624, %v4623, %v4622
        %v4626 = vrot.slane %v4551, 5
        %vm4627 = vcmask 1043459
        %v4628 = vsel %vm4627, %v4626, %v4625
        %v4634 = vrot.slane %v4553, 7
        %v4635 = vsel %vm4621, %v4634, %v4552
        %v4636 = vrot.slane %v4554, 6
        %v4637 = vsel %vm4624, %v4636, %v4635
        %v4638 = vrot.slane %v4555, 5
        %v4639 = vsel %vm4627, %v4638, %v4637
        %4640 = vrot.lane.b32.xlu0 %v4639, 16
        %v4641 = vpop.permute.xlu0 %4640
        %v4647 = vrot.slane %v4557, 7
        %v4648 = vsel %vm4621, %v4647, %v4556
        %v4649 = vrot.slane %v4558, 6
        %v4650 = vsel %vm4624, %v4649, %v4648
        %v4651 = vrot.slane %v4559, 5
        %v4652 = vsel %vm4627, %v4651, %v4650
        %4653 = vrot.lane.b32.xlu0 %v4652, 32
        %v4654 = vpop.permute.xlu0 %4653
        %v4660 = vrot.slane %v4561, 7
        %v4661 = vsel %vm4621, %v4660, %v4560
        %v4662 = vrot.slane %v4562, 6
        %v4663 = vsel %vm4624, %v4662, %v4661
        %v4664 = vrot.slane %v4563, 5
        %v4665 = vsel %vm4627, %v4664, %v4663
        %4666 = vrot.lane.b32.xlu0 %v4665, 48
        %v4667 = vpop.permute.xlu0 %4666
        %v4673 = vrot.slane %v4566, 7
        %v4674 = vsel %vm4621, %v4673, %v4565
        %v4675 = vrot.slane %v4567, 6
        %v4676 = vsel %vm4624, %v4675, %v4674
        %v4677 = vrot.slane %v4568, 5
        %v4678 = vsel %vm4627, %v4677, %v4676
        %4679 = vrot.lane.b32.xlu0 %v4678, 64
        %v4680 = vpop.permute.xlu0 %4679
        %v4686 = vrot.slane %v4570, 7
        %v4687 = vsel %vm4621, %v4686, %v4569
        %v4688 = vrot.slane %v4571, 6
        %v4689 = vsel %vm4624, %v4688, %v4687
        %v4690 = vrot.slane %v4572, 5
        %v4691 = vsel %vm4627, %v4690, %v4689
        %4692 = vrot.lane.b32.xlu0 %v4691, 80
        %v4693 = vpop.permute.xlu0 %4692
        %v4699 = vrot.slane %v4574, 7
        %v4700 = vsel %vm4621, %v4699, %v4573
        %v4701 = vrot.slane %v4575, 6
        %v4702 = vsel %vm4624, %v4701, %v4700
        %v4703 = vrot.slane %v4576, 5
        %v4704 = vsel %vm4627, %v4703, %v4702
        %4705 = vrot.lane.b32.xlu0 %v4704, 96
        %v4706 = vpop.permute.xlu0 %4705
        %v4712 = vrot.slane %v4578, 7
        %v4713 = vsel %vm4621, %v4712, %v4577
        %v4714 = vrot.slane %v4579, 6
        %v4715 = vsel %vm4624, %v4714, %v4713
        %v4716 = vrot.slane %v4580, 5
        %v4717 = vsel %vm4627, %v4716, %v4715
        %4718 = vrot.lane.b32.xlu0 %v4717, 112
        %v4719 = vpop.permute.xlu0 %4718
        %v4725 = vrot.slane %v4583, 7
        %v4726 = vsel %vm4621, %v4725, %v4582
        %v4727 = vrot.slane %v4584, 6
        %v4728 = vsel %vm4624, %v4727, %v4726
        %v4729 = vrot.slane %v4585, 5
        %v4730 = vsel %vm4627, %v4729, %v4728
        %v4736 = vrot.slane %v4587, 7
        %v4737 = vsel %vm4621, %v4736, %v4586
        %v4738 = vrot.slane %v4588, 6
        %v4739 = vsel %vm4624, %v4738, %v4737
        %v4740 = vrot.slane %v4589, 5
        %v4741 = vsel %vm4627, %v4740, %v4739
        %4742 = vrot.lane.b32.xlu0 %v4741, 16
        %v4743 = vpop.permute.xlu0 %4742
        %v4749 = vrot.slane %v4591, 7
        %v4750 = vsel %vm4621, %v4749, %v4590
        %v4751 = vrot.slane %v4592, 6
        %v4752 = vsel %vm4624, %v4751, %v4750
        %v4753 = vrot.slane %v4593, 5
        %v4754 = vsel %vm4627, %v4753, %v4752
        %4755 = vrot.lane.b32.xlu0 %v4754, 32
        %v4756 = vpop.permute.xlu0 %4755
        %v4762 = vrot.slane %v4595, 7
        %v4763 = vsel %vm4621, %v4762, %v4594
        %v4764 = vrot.slane %v4596, 6
        %v4765 = vsel %vm4624, %v4764, %v4763
        %v4766 = vrot.slane %v4597, 5
        %v4767 = vsel %vm4627, %v4766, %v4765
        %4768 = vrot.lane.b32.xlu0 %v4767, 48
        %v4769 = vpop.permute.xlu0 %4768
        %v4775 = vrot.slane %v4600, 7
        %v4776 = vsel %vm4621, %v4775, %v4599
        %v4777 = vrot.slane %v4601, 6
        %v4778 = vsel %vm4624, %v4777, %v4776
        %v4779 = vrot.slane %v4602, 5
        %v4780 = vsel %vm4627, %v4779, %v4778
        %4781 = vrot.lane.b32.xlu0 %v4780, 64
        %v4782 = vpop.permute.xlu0 %4781
        %v4788 = vrot.slane %v4604, 7
        %v4789 = vsel %vm4621, %v4788, %v4603
        %v4790 = vrot.slane %v4605, 6
        %v4791 = vsel %vm4624, %v4790, %v4789
        %v4792 = vrot.slane %v4606, 5
        %v4793 = vsel %vm4627, %v4792, %v4791
        %4794 = vrot.lane.b32.xlu0 %v4793, 80
        %v4795 = vpop.permute.xlu0 %4794
        %v4801 = vrot.slane %v4608, 7
        %v4802 = vsel %vm4621, %v4801, %v4607
        %v4803 = vrot.slane %v4609, 6
        %v4804 = vsel %vm4624, %v4803, %v4802
        %v4805 = vrot.slane %v4610, 5
        %v4806 = vsel %vm4627, %v4805, %v4804
        %4807 = vrot.lane.b32.xlu0 %v4806, 96
        %v4808 = vpop.permute.xlu0 %4807
        %v4814 = vrot.slane %v4612, 7
        %v4815 = vsel %vm4621, %v4814, %v4611
        %v4816 = vrot.slane %v4613, 6
        %v4817 = vsel %vm4624, %v4816, %v4815
        %v4818 = vrot.slane %v4614, 5
        %v4819 = vsel %vm4627, %v4818, %v4817
        %4820 = vrot.lane.b32.xlu0 %v4819, 112
        %v4821 = vpop.permute.xlu0 %4820
        %v4823 = vsel %vm2238, %v4628, %v4641
        %v4824 = vsel %vm2304, %v4823, %v4654
        %v4825 = vsel %vm2370, %v4824, %v4667
        %v4826 = vsel %vm381, %v4825, %v4680
        %v4827 = vsel %vm4325, %v4826, %v4693
        %v4828 = vsel %vm4343, %v4827, %v4706
        %v4829 = vsel %vm4361, %v4828, %v4719
        %v4830 = vsel %vm2238, %v4730, %v4743
        %v4831 = vsel %vm2304, %v4830, %v4756
        %v4832 = vsel %vm2370, %v4831, %v4769
        %v4833 = vsel %vm381, %v4832, %v4782
        %v4834 = vsel %vm4325, %v4833, %v4795
        %v4835 = vsel %vm4343, %v4834, %v4808
        %v4836 = vsel %vm4361, %v4835, %v4821
        %v4838 = vlaneseq
        %v4839 = vshrl.u32 %v4838, 7
        %v4840 = vsub.s32 0, %v4839
        %v4841 = vrot.slane %v4615, %v4840
        %v4842 = vlaneseq
        %v4843 = vshrl.u32 %v4842, 7
        %v4844 = vsub.s32 1, %v4843
        %v4845 = vrot.slane %v4615, %v4844
        %v4848 = vmul.f32 %v4829, %v4841
        %v4849 = vmul.f32 %v4836, %v4845
        %vm4850 = vcmask 1043456
        %v4851 = vsel %vm4850, %v4848, 0.0
        %v4852 = vsel %vm4850, %v4849, 0.0
        %v4853 = vadd.f32 %v4851, %v4852
        %4854 = vadd.xlane.f32.xlu0 %v4853
        %v4855 = vpop.xlane.xlu0 %4854
        %v4856 = vld [vmem:[#allocation5] sm:$0x1]
        %v4858 = vlaneseq
        %v4859 = vshrl.u32 %v4858, 7
        %v4860 = vsub.s32 0, %v4859
        %v4861 = vrot.slane %v4856, %v4860
        %v4863 = vadd.f32 %v4855, %v4861
        %4865 = vset.pattern.permute.xlu0 0
        %4866 = vperm.xlu0 %4865, %v4863
        %v4867 = vpop.permute.xlu0 %4866
        %v4868 = vlaneseq
        %v4869 = vand.u32 %v4868, 127
        %v4870 = vlaneseq
        %v4871 = vshrl.u32 %v4870, 7
        %v4872 = vsub.s32 %v4869, %v4871
        %v4873 = vrot.slane %v4867, %v4872
        %vm4875 = vcmask 24576
        %4876 = vst.msk [vmem:[%s327] sm:$0x1] %vm4875, %v4873
        %s4877 = sand.u32 %s227, 1
        %s4878 = scalar_lea.sflag [#allocation7], %s4877
        %s4879 = sand.u32 %s227, 1
        %s4880 = scalar_lea.vmem [#allocation6], %s4879
        // Predicated region
        $region57: #{tpu_custom_call.1} parent=55 // pred_check
          %p4881 = pneg %p237
        $region58: #{tpu_custom_call.1} parent=55 // pred_check_branch
          %4883 = sbr.rel (%p4881) target = $region60
        $region59: #{tpu_custom_call.1} parent=55 // pred_region
          %s4885 = ssub.s32 16, 16
          %4886 = vsyncadd %s4878, %s4885
          %s4887 = smul.addr %s25, 16
          %s4888 = scalar_lea.hbm %s9, %s4887
          %s4890 = sshll.u32 %s4880, 4
          %s4891 = int_to_ptr.vmem [resolvable:$true] %s4890
          %4893 = dma.vmem_to_hbm [thread:$0]  %s4891, 16, %s4888, %s4878
        $region60: #{tpu_custom_call.1} parent=55 // pred_fallthru
          _
      $region56: #{tpu_custom_call.1} parent=5 // pred_fallthru
        _
      %p4894 = scmp.le.s32.totalorder 2, %s20
      // Predicated region
      $region61: #{tpu_custom_call.1} parent=5 // pred_check
        %p4895 = pneg %p4894
      $region62: #{tpu_custom_call.1} parent=5 // pred_check_branch
        %4897 = sbr.rel (%p4895) target = $region64
      $region63: #{tpu_custom_call.1} parent=5 // pred_region
        %s4898 = ssub.s32 %s20, 2
        // Predicated region
        $region65: #{tpu_custom_call.1} parent=63 // pred_check
          %p4899 = pneg %p243
        $region66: #{tpu_custom_call.1} parent=63 // pred_check_branch
          %4901 = sbr.rel (%p4899) target = $region68
        $region67: #{tpu_custom_call.1} parent=63 // pred_region
          %s4902 = sand.u32 %s228, 1
          %s4903 = scalar_lea.sflag [#allocation7], %s4902
          %s4904 = sand.u32 %s228, 1
          %s4905 = scalar_lea.vmem [#allocation6], %s4904
          %4906 = dma.done %s4903, 16
        $region68: #{tpu_custom_call.1} parent=63 // pred_fallthru
          _
      $region64: #{tpu_custom_call.1} parent=5 // pred_fallthru
        _
    $region6: #{tpu_custom_call.1} parent=1 // loop_footer
      %s24 = sadd.s32 1, %s20
    $region7: #{tpu_custom_call.1} parent=1 // loop_footer_branch
      %19 = sbr.rel target = $region3
    $region8: #{tpu_custom_call.1} parent=1 // loop_exit
      _
    %4907 = vsyncpa [#allocation7], 1
    %s4908 = scalar_lea.sflag [#allocation7], 1
    %4909 = vsyncpa %s4908, 1

</llo_original>
